<compile_context>
chip_gen: v7x
topology: tpu7x:2x2x1
jax: 0.10.0
libtpu: 0.0.40
codegen_flags: <defaults>
</compile_context>

<pallas_src>
import functools

import jax
import jax.numpy as jnp
from jax import lax
from jax.experimental import pallas as pl
from jax.experimental.pallas import tpu as pltpu


# --------------------------------------------------------------------------
# Pass 1: conv (stride 1, 'same') + per-tile channel sum / sum-of-squares.
# --------------------------------------------------------------------------
def _conv_stats_kernel(x_ref, w_ref, conv_ref, psum_ref, pssq_ref, *,
                       kh, kw, th, wo):
    """One (image, H-tile) step.

    x_ref   : (1, Hp, Wp, Cin) bf16  -- full padded image, resident across tiles
    w_ref   : (KH*KW, Cin, Cout) bf16
    conv_ref: (1, TH*W, Cout) bf16   -- flat-spatial conv output tile
    psum/pssq: (1, 1, 8, Cout) f32   -- per-tile channel sum / sum-of-squares
    """
    t = pl.program_id(1)
    cin = x_ref.shape[-1]
    cout = w_ref.shape[-1]
    r0 = pl.multiple_of(t * th, th)           # top row of this tile (padded coords)

    acc = jnp.zeros((th * wo, cout), jnp.float32)
    # Per-tap accumulation: the KW column-shifted slabs are loaded once each
    # (the only sublane-offset relayout); the KH row shifts are free
    # leading-dim slices of the already-loaded value.
    for j in range(kw):
        slab = x_ref[0, pl.ds(r0, th + kh - 1), pl.ds(j, wo), :]   # (TH+KH-1, W, Cin)
        for i in range(kh):
            xt = slab[i:i + th].reshape(th * wo, cin)              # (TH*W, Cin) bf16
            acc = acc + jnp.dot(xt, w_ref[i * kw + j],
                                preferred_element_type=jnp.float32)

    conv_ref[0] = acc.astype(conv_ref.dtype)

    # Channel statistics from the f32 accumulator (tile-sized temporaries only,
    # since the spatial tiling bounds acc).
    s = jnp.sum(acc, axis=0)                  # (Cout,)
    q = jnp.sum(acc * acc, axis=0)            # (Cout,)
    psum_ref[...] = jnp.broadcast_to(s, psum_ref.shape)
    pssq_ref[...] = jnp.broadcast_to(q, pssq_ref.shape)


# --------------------------------------------------------------------------
# Pass 2: fused BatchNorm affine apply + optional ReLU (+ NCHW emission).
# --------------------------------------------------------------------------
def _bn_relu_kernel(conv_ref, scale_ref, shift_ref, out_ref, *,
                    use_act, transpose_out):
    y = conv_ref[0].astype(jnp.float32) * scale_ref[...] + shift_ref[...]
    if use_act:
        y = jnp.maximum(y, 0.0)
    if transpose_out:
        # (rows, Cout) -> (Cout, rows): emits NCHW directly, no XLA transpose.
        out_ref[0] = y.T.astype(out_ref.dtype)
    else:
        out_ref[0] = y.astype(out_ref.dtype)


# --------------------------------------------------------------------------
# Tile-size selection helpers.
# --------------------------------------------------------------------------
def _choose_rows(total, per_unit_bytes, budget, lane_unit):
    """Largest divisor d of `total` with d*per_unit_bytes <= budget, preferring
    lane-dense (d*lane_unit % 128 == 0) then sublane-aligned (% 8) sizes."""
    divs = [d for d in range(1, total + 1) if total % d == 0]
    fit = [d for d in divs if d * per_unit_bytes <= budget] or [divs[0]]
    for mult in (128, 8, 1):
        pref = [d for d in fit if (d * lane_unit) % mult == 0]
        if pref:
            return max(pref)
    return max(fit)


# --------------------------------------------------------------------------
# Wrapper.
# --------------------------------------------------------------------------
def convx_forward(x_nchw, weight_oihw, gamma, beta, *, use_act=True, eps=1e-5):
    """ConvX forward.  x_nchw: (N, Cin, H, W) f32; weight_oihw: (Cout, Cin, KH, KW)."""
    n, cin, h, w = x_nchw.shape
    cout, cin_w, kh, kw = weight_oihw.shape
    assert cin_w == cin, "groups != 1 not supported"           # TODO(synk)
    assert kh == kw and kh % 2 == 1, "odd square kernels only"  # pad = k//2 assumption
    pad = kh // 2
    ho, wo = h, w                              # stride 1, 'same' padding
    hp, wp = h + 2 * pad, w + 2 * pad

    # Layout prep (one fused XLA pass): NCHW -> NHWC, bf16 cast, 'same' pad.
    x_pad = jnp.pad(jnp.transpose(x_nchw, (0, 2, 3, 1)).astype(jnp.bfloat16),
                    ((0, 0), (pad, pad), (pad, pad), (0, 0)))
    # OIHW -> (KH*KW, Cin, Cout): one (Cin, Cout) matmul operand per tap.
    w_taps = jnp.transpose(weight_oihw, (2, 3, 1, 0)).reshape(kh * kw, cin, cout)
    w_taps = w_taps.astype(jnp.bfloat16)

    # ---- pass 1: conv + partial stats -------------------------------------
    per_row = wo * (4 * cout        # f32 accumulator
                    + 4 * cout      # acc*acc temporary for ssq
                    + 2 * 2 * cout  # bf16 conv output block (double-buffered)
                    + 2 * cin)      # one bf16 tap slab
    th = _choose_rows(h, per_row, budget=6 * 1024 * 1024, lane_unit=wo)
    n_th = h // th

    conv_flat, psum, pssq = pl.pallas_call(
        functools.partial(_conv_stats_kernel, kh=kh, kw=kw, th=th, wo=wo),
        out_shape=(
            jax.ShapeDtypeStruct((n, ho * wo, cout), jnp.bfloat16),
            jax.ShapeDtypeStruct((n, n_th, 8, cout), jnp.float32),
            jax.ShapeDtypeStruct((n, n_th, 8, cout), jnp.float32),
        ),
        grid_spec=pltpu.PrefetchScalarGridSpec(
            num_scalar_prefetch=0,
            grid=(n, n_th),
            in_specs=[
                # Full padded image; index map ignores the tile axis so the
                # block is DMA'd once per image and stays resident (free halo).
                pl.BlockSpec((1, hp, wp, cin), lambda b, t: (b, 0, 0, 0)),
                pl.BlockSpec((kh * kw, cin, cout), lambda b, t: (0, 0, 0)),
            ],
            out_specs=[
                pl.BlockSpec((1, th * wo, cout), lambda b, t: (b, t, 0)),
                pl.BlockSpec((1, 1, 8, cout), lambda b, t: (b, t, 0, 0)),
                pl.BlockSpec((1, 1, 8, cout), lambda b, t: (b, t, 0, 0)),
            ],
        ),
        compiler_params=pltpu.CompilerParams(
            dimension_semantics=("parallel", "parallel"),
            vmem_limit_bytes=32 * 1024 * 1024),
    )(x_pad, w_taps)

    # ---- BatchNorm2d training-mode batch statistics (f32, in XLA) ---------
    count = jnp.float32(n * ho * wo)
    ch_sum = jnp.sum(psum[:, :, 0, :], axis=(0, 1))            # (Cout,)
    ch_ssq = jnp.sum(pssq[:, :, 0, :], axis=(0, 1))            # (Cout,)
    mean = ch_sum / count
    var = jnp.maximum(ch_ssq / count - mean * mean, 0.0)       # clamp single-pass var
    inv_std = lax.rsqrt(var + eps)
    g = gamma.astype(jnp.float32)
    scale = (g * inv_std).reshape(1, cout)
    shift = (beta.astype(jnp.float32) - mean * g * inv_std).reshape(1, cout)

    # ---- pass 2: BN apply + ReLU ------------------------------------------
    rows_blk = _choose_rows(ho * wo, cout * 16, budget=8 * 1024 * 1024, lane_unit=1)
    n_rb = (ho * wo) // rows_blk
    # Emit NCHW directly only when the in-kernel transpose is lane-safe.
    fuse_nchw = (cout % 128 == 0) and (rows_blk % 128 == 0)

    if fuse_nchw:
        out_shape = jax.ShapeDtypeStruct((n, cout, ho * wo), jnp.float32)
        out_spec = pl.BlockSpec((1, cout, rows_blk), lambda b, t: (b, 0, t))
    else:
        out_shape = jax.ShapeDtypeStruct((n, ho * wo, cout), jnp.float32)
        out_spec = pl.BlockSpec((1, rows_blk, cout), lambda b, t: (b, t, 0))

    out = pl.pallas_call(
        functools.partial(_bn_relu_kernel, use_act=use_act, transpose_out=fuse_nchw),
        out_shape=out_shape,
        grid_spec=pltpu.PrefetchScalarGridSpec(
            num_scalar_prefetch=0,
            grid=(n, n_rb),
            in_specs=[
                pl.BlockSpec((1, rows_blk, cout), lambda b, t: (b, t, 0)),
                pl.BlockSpec((1, cout), lambda b, t: (0, 0)),
                pl.BlockSpec((1, cout), lambda b, t: (0, 0)),
            ],
            out_specs=out_spec,
        ),
        compiler_params=pltpu.CompilerParams(
            dimension_semantics=("parallel", "parallel"),
            vmem_limit_bytes=32 * 1024 * 1024),
    )(conv_flat, scale, shift)

    if fuse_nchw:
        return out.reshape(n, cout, ho, wo)          # free metadata reshape
    # Small-Cout / small-W fallback: one XLA NHWC->NCHW transpose.
    return jnp.transpose(out.reshape(n, ho, wo, cout), (0, 3, 1, 2))


# --------------------------------------------------------------------------
# Pure-JAX f32 reference mirroring PyTorch ConvX.forward (train-mode BN).
# --------------------------------------------------------------------------
def _reference(x_nchw, weight_oihw, gamma, beta, *, use_act=True, eps=1e-5):
    khr = weight_oihw.shape[2]
    pad = khr // 2
    conv = lax.conv_general_dilated(
        x_nchw, weight_oihw, window_strides=(1, 1),
        padding=[(pad, pad), (pad, pad)],
        dimension_numbers=("NCHW", "OIHW", "NCHW"))
    mean = jnp.mean(conv, axis=(0, 2, 3), keepdims=True)
    var = jnp.mean((conv - mean) ** 2, axis=(0, 2, 3), keepdims=True)  # biased
    y = (conv - mean) * lax.rsqrt(var + eps)
    y = y * gamma.reshape(1, -1, 1, 1) + beta.reshape(1, -1, 1, 1)
    return jnp.maximum(y, 0.0) if use_act else y


if __name__ == "__main__":
    key = jax.random.PRNGKey(0)
    k_x, k_w, k_g, k_b = jax.random.split(key, 4)

    N, Cin, H, W = 2, 4, 16, 16
    Cout, K = 8, 3

    x = jax.random.normal(k_x, (N, Cin, H, W), dtype=jnp.float32)
    weight = jax.random.normal(k_w, (Cout, Cin, K, K), dtype=jnp.float32) * 0.1
    gamma = 1.0 + 0.1 * jax.random.normal(k_g, (Cout,), dtype=jnp.float32)
    beta = 0.1 * jax.random.normal(k_b, (Cout,), dtype=jnp.float32)

    out = convx_forward(x, weight, gamma, beta, use_act=True)
    out = jax.block_until_ready(out)

    ref = _reference(x, weight, gamma, beta, use_act=True)
    assert out.shape == (N, Cout, H, W)
    # Tolerance accounts for bf16 MXU inputs / bf16 intermediate (f32 accumulation
    # and f32 BN math) vs the f32 reference.
    assert jnp.allclose(out, ref, atol=5e-2, rtol=5e-2), (
        float(jnp.max(jnp.abs(out - ref))))

    print("KERNEL_OK")
</pallas_src>

<mosaic_0001>
module attributes {stable_mosaic.version = 11 : i64} {
  func.func @_conv_stats_kernel(%arg0: i32, %arg1: i32, %arg2: memref<1x18x18x4xbf16, #tpu.memory_space<vmem>>, %arg3: memref<9x4x8xbf16, #tpu.memory_space<vmem>>, %arg4: memref<1x256x8xbf16, #tpu.memory_space<vmem>>, %arg5: memref<1x1x8x8xf32, #tpu.memory_space<vmem>>, %arg6: memref<1x1x8x8xf32, #tpu.memory_space<vmem>>) attributes {dimension_semantics = [#tpu.dimension_semantics<parallel>, #tpu.dimension_semantics<parallel>], iteration_bounds = array<i64: 2, 1>, scalar_prefetch = 0 : i64, scratch_operands = 0 : i64, tpu.core_type = #tpu.core_type<tc>, window_params = [{transform_indices = @transform_0, window_bounds = array<i64: 1, 18, 18, 4>}, {pipeline_mode = #tpu.pipeline_mode<synchronous>, transform_indices = @transform_1, window_bounds = array<i64: 9, 4, 8>}, {transform_indices = @transform_2, window_bounds = array<i64: 1, 256, 8>}, {transform_indices = @transform_3, window_bounds = array<i64: 1, 1, 8, 8>}, {transform_indices = @transform_4, window_bounds = array<i64: 1, 1, 8, 8>}]} {
    %c16_i32 = arith.constant 16 : i32
    %0 = arith.muli %arg1, %c16_i32 : i32
    %1 = tpu.assume_multiple %0, 16 : i32
    %cst = arith.constant 0.000000e+00 : f32
    %2 = vector.broadcast %cst : f32 to vector<256x8xf32>
    %c0 = arith.constant 0 : index
    %3 = arith.index_cast %1 : i32 to index
    %c0_0 = arith.constant 0 : index
    %c0_1 = arith.constant 0 : index
    %4 = vector.load %arg2[%c0, %3, %c0_0, %c0_1] : memref<1x18x18x4xbf16, #tpu.memory_space<vmem>>, vector<1x18x16x4xbf16>
    %5 = vector.shape_cast %4 : vector<1x18x16x4xbf16> to vector<18x16x4xbf16>
    %6 = vector.extract_strided_slice %5 {offsets = [0, 0, 0], sizes = [16, 16, 4], strides = [1, 1, 1]} : vector<18x16x4xbf16> to vector<16x16x4xbf16>
    %7 = vector.shape_cast %6 : vector<16x16x4xbf16> to vector<256x4xbf16>
    %c0_2 = arith.constant 0 : index
    %c0_3 = arith.constant 0 : index
    %c0_4 = arith.constant 0 : index
    %8 = vector.load %arg3[%c0_2, %c0_3, %c0_4] : memref<9x4x8xbf16, #tpu.memory_space<vmem>>, vector<1x4x8xbf16>
    %9 = vector.shape_cast %8 : vector<1x4x8xbf16> to vector<4x8xbf16>
    %cst_5 = arith.constant dense<0.000000e+00> : vector<256x8xf32>
    %10 = tpu.matmul %7, %9, %cst_5 {dimension_numbers = #tpu.dot_dimension_numbers<[1], [0], [0], [1], [0, 0, 1, 1], [], []>} : vector<256x4xbf16>, vector<4x8xbf16>, vector<256x8xf32> -> vector<256x8xf32>
    %11 = arith.addf %2, %10 : vector<256x8xf32>
    %12 = vector.extract_strided_slice %5 {offsets = [1, 0, 0], sizes = [16, 16, 4], strides = [1, 1, 1]} : vector<18x16x4xbf16> to vector<16x16x4xbf16>
    %13 = vector.shape_cast %12 : vector<16x16x4xbf16> to vector<256x4xbf16>
    %c3 = arith.constant 3 : index
    %c0_6 = arith.constant 0 : index
    %c0_7 = arith.constant 0 : index
    %14 = vector.load %arg3[%c3, %c0_6, %c0_7] : memref<9x4x8xbf16, #tpu.memory_space<vmem>>, vector<1x4x8xbf16>
    %15 = vector.shape_cast %14 : vector<1x4x8xbf16> to vector<4x8xbf16>
    %cst_8 = arith.constant dense<0.000000e+00> : vector<256x8xf32>
    %16 = tpu.matmul %13, %15, %cst_8 {dimension_numbers = #tpu.dot_dimension_numbers<[1], [0], [0], [1], [0, 0, 1, 1], [], []>} : vector<256x4xbf16>, vector<4x8xbf16>, vector<256x8xf32> -> vector<256x8xf32>
    %17 = arith.addf %11, %16 : vector<256x8xf32>
    %18 = vector.extract_strided_slice %5 {offsets = [2, 0, 0], sizes = [16, 16, 4], strides = [1, 1, 1]} : vector<18x16x4xbf16> to vector<16x16x4xbf16>
    %19 = vector.shape_cast %18 : vector<16x16x4xbf16> to vector<256x4xbf16>
    %c6 = arith.constant 6 : index
    %c0_9 = arith.constant 0 : index
    %c0_10 = arith.constant 0 : index
    %20 = vector.load %arg3[%c6, %c0_9, %c0_10] : memref<9x4x8xbf16, #tpu.memory_space<vmem>>, vector<1x4x8xbf16>
    %21 = vector.shape_cast %20 : vector<1x4x8xbf16> to vector<4x8xbf16>
    %cst_11 = arith.constant dense<0.000000e+00> : vector<256x8xf32>
    %22 = tpu.matmul %19, %21, %cst_11 {dimension_numbers = #tpu.dot_dimension_numbers<[1], [0], [0], [1], [0, 0, 1, 1], [], []>} : vector<256x4xbf16>, vector<4x8xbf16>, vector<256x8xf32> -> vector<256x8xf32>
    %23 = arith.addf %17, %22 : vector<256x8xf32>
    %c0_12 = arith.constant 0 : index
    %24 = arith.index_cast %1 : i32 to index
    %c1 = arith.constant 1 : index
    %c0_13 = arith.constant 0 : index
    %25 = vector.load %arg2[%c0_12, %24, %c1, %c0_13] : memref<1x18x18x4xbf16, #tpu.memory_space<vmem>>, vector<1x18x16x4xbf16>
    %26 = vector.shape_cast %25 : vector<1x18x16x4xbf16> to vector<18x16x4xbf16>
    %27 = vector.extract_strided_slice %26 {offsets = [0, 0, 0], sizes = [16, 16, 4], strides = [1, 1, 1]} : vector<18x16x4xbf16> to vector<16x16x4xbf16>
    %28 = vector.shape_cast %27 : vector<16x16x4xbf16> to vector<256x4xbf16>
    %c1_14 = arith.constant 1 : index
    %c0_15 = arith.constant 0 : index
    %c0_16 = arith.constant 0 : index
    %29 = vector.load %arg3[%c1_14, %c0_15, %c0_16] : memref<9x4x8xbf16, #tpu.memory_space<vmem>>, vector<1x4x8xbf16>
    %30 = vector.shape_cast %29 : vector<1x4x8xbf16> to vector<4x8xbf16>
    %cst_17 = arith.constant dense<0.000000e+00> : vector<256x8xf32>
    %31 = tpu.matmul %28, %30, %cst_17 {dimension_numbers = #tpu.dot_dimension_numbers<[1], [0], [0], [1], [0, 0, 1, 1], [], []>} : vector<256x4xbf16>, vector<4x8xbf16>, vector<256x8xf32> -> vector<256x8xf32>
    %32 = arith.addf %23, %31 : vector<256x8xf32>
    %33 = vector.extract_strided_slice %26 {offsets = [1, 0, 0], sizes = [16, 16, 4], strides = [1, 1, 1]} : vector<18x16x4xbf16> to vector<16x16x4xbf16>
    %34 = vector.shape_cast %33 : vector<16x16x4xbf16> to vector<256x4xbf16>
    %c4 = arith.constant 4 : index
    %c0_18 = arith.constant 0 : index
    %c0_19 = arith.constant 0 : index
    %35 = vector.load %arg3[%c4, %c0_18, %c0_19] : memref<9x4x8xbf16, #tpu.memory_space<vmem>>, vector<1x4x8xbf16>
    %36 = vector.shape_cast %35 : vector<1x4x8xbf16> to vector<4x8xbf16>
    %cst_20 = arith.constant dense<0.000000e+00> : vector<256x8xf32>
    %37 = tpu.matmul %34, %36, %cst_20 {dimension_numbers = #tpu.dot_dimension_numbers<[1], [0], [0], [1], [0, 0, 1, 1], [], []>} : vector<256x4xbf16>, vector<4x8xbf16>, vector<256x8xf32> -> vector<256x8xf32>
    %38 = arith.addf %32, %37 : vector<256x8xf32>
    %39 = vector.extract_strided_slice %26 {offsets = [2, 0, 0], sizes = [16, 16, 4], strides = [1, 1, 1]} : vector<18x16x4xbf16> to vector<16x16x4xbf16>
    %40 = vector.shape_cast %39 : vector<16x16x4xbf16> to vector<256x4xbf16>
    %c7 = arith.constant 7 : index
    %c0_21 = arith.constant 0 : index
    %c0_22 = arith.constant 0 : index
    %41 = vector.load %arg3[%c7, %c0_21, %c0_22] : memref<9x4x8xbf16, #tpu.memory_space<vmem>>, vector<1x4x8xbf16>
    %42 = vector.shape_cast %41 : vector<1x4x8xbf16> to vector<4x8xbf16>
    %cst_23 = arith.constant dense<0.000000e+00> : vector<256x8xf32>
    %43 = tpu.matmul %40, %42, %cst_23 {dimension_numbers = #tpu.dot_dimension_numbers<[1], [0], [0], [1], [0, 0, 1, 1], [], []>} : vector<256x4xbf16>, vector<4x8xbf16>, vector<256x8xf32> -> vector<256x8xf32>
    %44 = arith.addf %38, %43 : vector<256x8xf32>
    %c0_24 = arith.constant 0 : index
    %45 = arith.index_cast %1 : i32 to index
    %c2 = arith.constant 2 : index
    %c0_25 = arith.constant 0 : index
    %46 = vector.load %arg2[%c0_24, %45, %c2, %c0_25] : memref<1x18x18x4xbf16, #tpu.memory_space<vmem>>, vector<1x18x16x4xbf16>
    %47 = vector.shape_cast %46 : vector<1x18x16x4xbf16> to vector<18x16x4xbf16>
    %48 = vector.extract_strided_slice %47 {offsets = [0, 0, 0], sizes = [16, 16, 4], strides = [1, 1, 1]} : vector<18x16x4xbf16> to vector<16x16x4xbf16>
    %49 = vector.shape_cast %48 : vector<16x16x4xbf16> to vector<256x4xbf16>
    %c2_26 = arith.constant 2 : index
    %c0_27 = arith.constant 0 : index
    %c0_28 = arith.constant 0 : index
    %50 = vector.load %arg3[%c2_26, %c0_27, %c0_28] : memref<9x4x8xbf16, #tpu.memory_space<vmem>>, vector<1x4x8xbf16>
    %51 = vector.shape_cast %50 : vector<1x4x8xbf16> to vector<4x8xbf16>
    %cst_29 = arith.constant dense<0.000000e+00> : vector<256x8xf32>
    %52 = tpu.matmul %49, %51, %cst_29 {dimension_numbers = #tpu.dot_dimension_numbers<[1], [0], [0], [1], [0, 0, 1, 1], [], []>} : vector<256x4xbf16>, vector<4x8xbf16>, vector<256x8xf32> -> vector<256x8xf32>
    %53 = arith.addf %44, %52 : vector<256x8xf32>
    %54 = vector.extract_strided_slice %47 {offsets = [1, 0, 0], sizes = [16, 16, 4], strides = [1, 1, 1]} : vector<18x16x4xbf16> to vector<16x16x4xbf16>
    %55 = vector.shape_cast %54 : vector<16x16x4xbf16> to vector<256x4xbf16>
    %c5 = arith.constant 5 : index
    %c0_30 = arith.constant 0 : index
    %c0_31 = arith.constant 0 : index
    %56 = vector.load %arg3[%c5, %c0_30, %c0_31] : memref<9x4x8xbf16, #tpu.memory_space<vmem>>, vector<1x4x8xbf16>
    %57 = vector.shape_cast %56 : vector<1x4x8xbf16> to vector<4x8xbf16>
    %cst_32 = arith.constant dense<0.000000e+00> : vector<256x8xf32>
    %58 = tpu.matmul %55, %57, %cst_32 {dimension_numbers = #tpu.dot_dimension_numbers<[1], [0], [0], [1], [0, 0, 1, 1], [], []>} : vector<256x4xbf16>, vector<4x8xbf16>, vector<256x8xf32> -> vector<256x8xf32>
    %59 = arith.addf %53, %58 : vector<256x8xf32>
    %60 = vector.extract_strided_slice %47 {offsets = [2, 0, 0], sizes = [16, 16, 4], strides = [1, 1, 1]} : vector<18x16x4xbf16> to vector<16x16x4xbf16>
    %61 = vector.shape_cast %60 : vector<16x16x4xbf16> to vector<256x4xbf16>
    %c8 = arith.constant 8 : index
    %c0_33 = arith.constant 0 : index
    %c0_34 = arith.constant 0 : index
    %62 = vector.load %arg3[%c8, %c0_33, %c0_34] : memref<9x4x8xbf16, #tpu.memory_space<vmem>>, vector<1x4x8xbf16>
    %63 = vector.shape_cast %62 : vector<1x4x8xbf16> to vector<4x8xbf16>
    %cst_35 = arith.constant dense<0.000000e+00> : vector<256x8xf32>
    %64 = tpu.matmul %61, %63, %cst_35 {dimension_numbers = #tpu.dot_dimension_numbers<[1], [0], [0], [1], [0, 0, 1, 1], [], []>} : vector<256x4xbf16>, vector<4x8xbf16>, vector<256x8xf32> -> vector<256x8xf32>
    %65 = arith.addf %59, %64 : vector<256x8xf32>
    %66 = arith.truncf %65 : vector<256x8xf32> to vector<256x8xbf16>
    %c0_36 = arith.constant 0 : index
    %c0_37 = arith.constant 0 : index
    %c0_38 = arith.constant 0 : index
    %67 = vector.load %arg4[%c0_36, %c0_37, %c0_38] : memref<1x256x8xbf16, #tpu.memory_space<vmem>>, vector<1x256x8xbf16>
    %68 = vector.shape_cast %67 : vector<1x256x8xbf16> to vector<256x8xbf16>
    %69 = vector.shape_cast %66 : vector<256x8xbf16> to vector<1x256x8xbf16>
    tpu.vector_store %arg4[%c0_36, %c0_37, %c0_38], %69 {strides = array<i32>} : memref<1x256x8xbf16, #tpu.memory_space<vmem>>, vector<1x256x8xbf16>,
    %cst_39 = arith.constant dense<0.000000e+00> : vector<8xf32>
    %70 = vector.multi_reduction <add>, %65, %cst_39 [0] : vector<256x8xf32> to vector<8xf32>
    %71 = arith.mulf %65, %65 : vector<256x8xf32>
    %cst_40 = arith.constant dense<0.000000e+00> : vector<8xf32>
    %72 = vector.multi_reduction <add>, %71, %cst_40 [0] : vector<256x8xf32> to vector<8xf32>
    %73 = vector.shape_cast %70 : vector<8xf32> to vector<1x1x1x8xf32>
    %74 = vector.broadcast %73 : vector<1x1x1x8xf32> to vector<1x1x8x8xf32>
    %c0_41 = arith.constant 0 : index
    %c0_42 = arith.constant 0 : index
    %c0_43 = arith.constant 0 : index
    %c0_44 = arith.constant 0 : index
    %75 = vector.load %arg5[%c0_41, %c0_42, %c0_43, %c0_44] : memref<1x1x8x8xf32, #tpu.memory_space<vmem>>, vector<1x1x8x8xf32>
    tpu.vector_store %arg5[%c0_41, %c0_42, %c0_43, %c0_44], %74 {strides = array<i32>} : memref<1x1x8x8xf32, #tpu.memory_space<vmem>>, vector<1x1x8x8xf32>,
    %76 = vector.shape_cast %72 : vector<8xf32> to vector<1x1x1x8xf32>
    %77 = vector.broadcast %76 : vector<1x1x1x8xf32> to vector<1x1x8x8xf32>
    %c0_45 = arith.constant 0 : index
    %c0_46 = arith.constant 0 : index
    %c0_47 = arith.constant 0 : index
    %c0_48 = arith.constant 0 : index
    %78 = vector.load %arg6[%c0_45, %c0_46, %c0_47, %c0_48] : memref<1x1x8x8xf32, #tpu.memory_space<vmem>>, vector<1x1x8x8xf32>
    tpu.vector_store %arg6[%c0_45, %c0_46, %c0_47, %c0_48], %77 {strides = array<i32>} : memref<1x1x8x8xf32, #tpu.memory_space<vmem>>, vector<1x1x8x8xf32>,
    return
  }
  func.func @transform_0(%arg0: i32, %arg1: i32) -> (i32, i32, i32, i32) {
    %c0_i32 = arith.constant 0 : i32
    %c0_i32_0 = arith.constant 0 : i32
    %c0_i32_1 = arith.constant 0 : i32
    %c0_i32_2 = arith.constant 0 : i32
    return %arg0, %c0_i32, %c0_i32_0, %c0_i32_1 : i32, i32, i32, i32
  }
  func.func @transform_1(%arg0: i32, %arg1: i32) -> (i32, i32, i32) {
    %c0_i32 = arith.constant 0 : i32
    %c0_i32_0 = arith.constant 0 : i32
    %c0_i32_1 = arith.constant 0 : i32
    %c0_i32_2 = arith.constant 0 : i32
    return %c0_i32, %c0_i32_0, %c0_i32_1 : i32, i32, i32
  }
  func.func @transform_2(%arg0: i32, %arg1: i32) -> (i32, i32, i32) {
    %c0_i32 = arith.constant 0 : i32
    %c0_i32_0 = arith.constant 0 : i32
    return %arg0, %arg1, %c0_i32 : i32, i32, i32
  }
  func.func @transform_3(%arg0: i32, %arg1: i32) -> (i32, i32, i32, i32) {
    %c0_i32 = arith.constant 0 : i32
    %c0_i32_0 = arith.constant 0 : i32
    %c0_i32_1 = arith.constant 0 : i32
    return %arg0, %arg1, %c0_i32, %c0_i32_0 : i32, i32, i32, i32
  }
  func.func @transform_4(%arg0: i32, %arg1: i32) -> (i32, i32, i32, i32) {
    %c0_i32 = arith.constant 0 : i32
    %c0_i32_0 = arith.constant 0 : i32
    %c0_i32_1 = arith.constant 0 : i32
    return %arg0, %arg1, %c0_i32, %c0_i32_0 : i32, i32, i32, i32
  }
}

</mosaic_0001>

<llo_original>
// kernel: tpu_custom_call.1
$region0: #{tpu_custom_call.1}
  #allocation0 [shape = 'u32[]', space=smem, size = 0x4, offset = 0x4, fixed_abs, tag = 'smem constant byte address 0x4 - core index']
  #allocation1 [shape = 'u32[144,128]{1,0:T(1,128)}', space=vmem, size = 0x12000, scoped, tag = 'internal scratch']
  %s0 = inlined_call_operand.vmem [shape: bf16[2,18,18,4], index: 0, kind: input, shape index: {}]
  %s1 = inlined_call_operand.vmem [shape: bf16[9,4,8], index: 1, kind: input, shape index: {}]
  %s2 = inlined_call_operand.vmem [shape: bf16[2,256,8], index: 2, kind: output, shape index: {0}]
  %s3 = inlined_call_operand.hbm [shape: f32[2,1,8,8], index: 3, kind: output, shape index: {1}]
  %s4 = inlined_call_operand.hbm [shape: f32[2,1,8,8], index: 4, kind: output, shape index: {2}]
  %5 = xla_tuple %s2, %s3, %s4
  %s6 = sld [smem:[#allocation0]]
  $region57: #{tpu_custom_call.1} parent=0
    _
  %s8 = ssub.s32 1, %s6
  %s9 = scalar_select 0, %s8, %s6
  $region1: #{tpu_custom_call.1} parent=0
    #allocation2 [shape = 'u8[8192]{0}', space=vmem, size = 0x2000, scoped, tag = 'output window, operand 1']
    #allocation3 [shape = 's32[2]{0}', space=sflag, size = 0x8, scoped, tag = 'scoped memory for tpu_custom_call.1']
    #allocation4 [shape = 'u8[8192]{0}', space=vmem, size = 0x2000, scoped, tag = 'output window, operand 2']
    #allocation5 [shape = 's32[2]{0}', space=sflag, size = 0x8, scoped, tag = 'scoped memory for tpu_custom_call.1']
    %10 = vsyncpa [#allocation3], 0
    %s11 = scalar_lea.sflag [#allocation3], 1
    %12 = vsyncpa %s11, 0
    %13 = vsyncpa [#allocation5], 0
    %s14 = scalar_lea.sflag [#allocation5], 1
    %15 = vsyncpa %s14, 0
    loop: start=0, step=1, limit=4
    $region2: #{tpu_custom_call.1} parent=1 // loop_pre_header
      _
    $region3: #{tpu_custom_call.1} parent=1 // loop_header
      %s17 = sphi 0, %s21
      %p18 = scmp.ge.s32.totalorder %s17, 4
      %s24 = sphi 0, %s36
      %s25 = sphi 0, %s32
      %s26 = sphi 0, %s24
      %s27 = sphi 0, %s25
      %s28 = sphi 0, %s26
      %s29 = sphi 0, %s27
      %s39 = sphi 0, %s41
      %s42 = sphi 0, %s39
      %s43 = sphi 0, %s42
      %s59 = sphi 0, %s43
      %s63 = sphi 0, %s63
      %s65 = sphi 0, %s63
      %s66 = sphi 0, %s65
      %s80 = sphi 0, %s66
      %s88 = sphi 0, %s90
      %s91 = sphi 0, %s88
      %s92 = sphi 0, %s91
      %s108 = sphi 0, %s92
      %s116 = sphi 0, %s118
      %s119 = sphi 0, %s116
      %s120 = sphi 0, %s119
      %s136 = sphi 0, %s120
      %s144 = sphi 0, %s146
      %s147 = sphi 0, %s144
      %s148 = sphi 0, %s147
      %s164 = sphi 0, %s148
    $region4: #{tpu_custom_call.1} parent=1 // loop_header_branch
      %20 = sbr.rel (%p18) target = $region8
    $region5: #{tpu_custom_call.1} parent=1 // loop_body
      %s22 = ssub.s32 %s17, 1
      %s23 = ssub.s32 %s17, 2
      %s30 = sadd.s32 1, %s25
      %p31 = scmp.ge.s32.totalorder %s30, 1
      %s32 = scalar_select %p31, 0, %s30
      %s33 = sadd.s32 1, %s24
      %s34 = scalar_select %p31, %s33, %s24
      %p35 = scmp.ge.s32.totalorder %s34, 2
      %s36 = scalar_select %p35, 0, %s34
      %s37 = ssub.s32 %s24, %s36
      %p38 = scmp.eq.s32.totalorder %s37, 0
      %s40 = sadd.s32 %s39, 1
      %s41 = scalar_select %p38, %s39, %s40
      %p44 = pneg %p38
      %p45 = scmp.eq.s32.totalorder %s17, 1
      %p46 = por %p44, %p45
      %p47 = scmp.ne.s32.totalorder %s39, %s42
      %p48 = scmp.eq.s32.totalorder %s17, 0
      %p49 = por %p47, %p48
      %p50 = scmp.ne.s32.totalorder %s39, %s42
      %p51 = scmp.eq.s32.totalorder %s22, 1
      %p52 = por %p50, %p51
      %p53 = scmp.ne.s32.totalorder %s42, %s43
      %p54 = scmp.eq.s32.totalorder %s22, 0
      %p55 = por %p53, %p54
      %p56 = scmp.ne.s32.totalorder %s42, %s43
      %p57 = scmp.eq.s32.totalorder %s23, 1
      %p58 = por %p56, %p57
      %p60 = scmp.ne.s32.totalorder %s43, %s59
      %p61 = scmp.eq.s32.totalorder %s23, 0
      %p62 = por %p60, %p61
      %s64 = sadd.s32 %s63, 1
      %p67 = scmp.eq.s32.totalorder %s17, 1
      %p68 = scmp.ne.s32.totalorder %s63, %s65
      %p69 = scmp.eq.s32.totalorder %s17, 0
      %p70 = por %p68, %p69
      %p71 = scmp.ne.s32.totalorder %s63, %s65
      %p72 = scmp.eq.s32.totalorder %s22, 1
      %p73 = por %p71, %p72
      %p74 = scmp.ne.s32.totalorder %s65, %s66
      %p75 = scmp.eq.s32.totalorder %s22, 0
      %p76 = por %p74, %p75
      %p77 = scmp.ne.s32.totalorder %s65, %s66
      %p78 = scmp.eq.s32.totalorder %s23, 1
      %p79 = por %p77, %p78
      %p81 = scmp.ne.s32.totalorder %s66, %s80
      %p82 = scmp.eq.s32.totalorder %s23, 0
      %p83 = por %p81, %p82
      %s84 = ssub.s32 %s24, %s36
      %s85 = ssub.s32 %s25, %s32
      %s86 = sor.u32 %s84, %s85
      %p87 = scmp.eq.s32.totalorder %s86, 0
      %s89 = sadd.s32 %s88, 1
      %s90 = scalar_select %p87, %s88, %s89
      %p93 = pneg %p87
      %p94 = scmp.eq.s32.totalorder %s17, 1
      %p95 = por %p93, %p94
      %p96 = scmp.ne.s32.totalorder %s88, %s91
      %p97 = scmp.eq.s32.totalorder %s17, 0
      %p98 = por %p96, %p97
      %p99 = scmp.ne.s32.totalorder %s88, %s91
      %p100 = scmp.eq.s32.totalorder %s22, 1
      %p101 = por %p99, %p100
      %p102 = scmp.ne.s32.totalorder %s91, %s92
      %p103 = scmp.eq.s32.totalorder %s22, 0
      %p104 = por %p102, %p103
      %p105 = scmp.ne.s32.totalorder %s91, %s92
      %p106 = scmp.eq.s32.totalorder %s23, 1
      %p107 = por %p105, %p106
      %p109 = scmp.ne.s32.totalorder %s92, %s108
      %p110 = scmp.eq.s32.totalorder %s23, 0
      %p111 = por %p109, %p110
      %s112 = ssub.s32 %s24, %s36
      %s113 = ssub.s32 %s25, %s32
      %s114 = sor.u32 %s112, %s113
      %p115 = scmp.eq.s32.totalorder %s114, 0
      %s117 = sadd.s32 %s116, 1
      %s118 = scalar_select %p115, %s116, %s117
      %p121 = pneg %p115
      %p122 = scmp.eq.s32.totalorder %s17, 1
      %p123 = por %p121, %p122
      %p124 = scmp.ne.s32.totalorder %s116, %s119
      %p125 = scmp.eq.s32.totalorder %s17, 0
      %p126 = por %p124, %p125
      %p127 = scmp.ne.s32.totalorder %s116, %s119
      %p128 = scmp.eq.s32.totalorder %s22, 1
      %p129 = por %p127, %p128
      %p130 = scmp.ne.s32.totalorder %s119, %s120
      %p131 = scmp.eq.s32.totalorder %s22, 0
      %p132 = por %p130, %p131
      %p133 = scmp.ne.s32.totalorder %s119, %s120
      %p134 = scmp.eq.s32.totalorder %s23, 1
      %p135 = por %p133, %p134
      %p137 = scmp.ne.s32.totalorder %s120, %s136
      %p138 = scmp.eq.s32.totalorder %s23, 0
      %p139 = por %p137, %p138
      %s140 = ssub.s32 %s24, %s36
      %s141 = ssub.s32 %s25, %s32
      %s142 = sor.u32 %s140, %s141
      %p143 = scmp.eq.s32.totalorder %s142, 0
      %s145 = sadd.s32 %s144, 1
      %s146 = scalar_select %p143, %s144, %s145
      %p149 = pneg %p143
      %p150 = scmp.eq.s32.totalorder %s17, 1
      %p151 = por %p149, %p150
      %p152 = scmp.ne.s32.totalorder %s144, %s147
      %p153 = scmp.eq.s32.totalorder %s17, 0
      %p154 = por %p152, %p153
      %p155 = scmp.ne.s32.totalorder %s144, %s147
      %p156 = scmp.eq.s32.totalorder %s22, 1
      %p157 = por %p155, %p156
      %p158 = scmp.ne.s32.totalorder %s147, %s148
      %p159 = scmp.eq.s32.totalorder %s22, 0
      %p160 = por %p158, %p159
      %p161 = scmp.ne.s32.totalorder %s147, %s148
      %p162 = scmp.eq.s32.totalorder %s23, 1
      %p163 = por %p161, %p162
      %p165 = scmp.ne.s32.totalorder %s148, %s164
      %p166 = scmp.eq.s32.totalorder %s23, 0
      %p167 = por %p165, %p166
      %p168 = scmp.le.s32.totalorder 1, %s17
      %p169 = scmp.lt.s32.totalorder %s17, 3
      %p170 = pnand %p168, %p169
      %p171 = pneg %p170
      // Predicated region
      $region9: #{tpu_custom_call.1} parent=5 // pred_check
        _
      $region10: #{tpu_custom_call.1} parent=5 // pred_check_branch
        %173 = sbr.rel (%p170) target = $region12
      $region11: #{tpu_custom_call.1} parent=5 // pred_region
        %s174 = ssub.s32 %s17, 1
        // Predicated region
        $region13: #{tpu_custom_call.1} parent=11 // pred_check
          %p175 = pneg %p76
        $region14: #{tpu_custom_call.1} parent=11 // pred_check_branch
          %177 = sbr.rel (%p175) target = $region16
        $region15: #{tpu_custom_call.1} parent=11 // pred_region
          _
        $region16: #{tpu_custom_call.1} parent=11 // pred_fallthru
          _
      $region12: #{tpu_custom_call.1} parent=5 // pred_fallthru
        _
      %p178 = scmp.lt.s32.totalorder %s17, 2
      // Predicated region
      $region17: #{tpu_custom_call.1} parent=5 // pred_check
        %p179 = pneg %p178
      $region18: #{tpu_custom_call.1} parent=5 // pred_check_branch
        %181 = sbr.rel (%p179) target = $region20
      $region19: #{tpu_custom_call.1} parent=5 // pred_region
        // Predicated region
        $region21: #{tpu_custom_call.1} parent=19 // pred_check
          %p182 = pneg %p49
        $region22: #{tpu_custom_call.1} parent=19 // pred_check_branch
          %184 = sbr.rel (%p182) target = $region24
        $region23: #{tpu_custom_call.1} parent=19 // pred_region
          %p185 = scmp.lt.s32.totalorder %s24, 1
          %s186 = scalar_select %p185, %s24, 1
          %s187 = smul.addr %s186, 54
          %s188 = smul.addr %s187, 4
          %s189 = scalar_lea.vmem %s0, %s188
        $region24: #{tpu_custom_call.1} parent=19 // pred_fallthru
          _
      $region20: #{tpu_custom_call.1} parent=5 // pred_fallthru
        _
      %p190 = scmp.le.s32.totalorder 1, %s17
      %p191 = scmp.lt.s32.totalorder %s17, 3
      %p192 = pnand %p190, %p191
      %p193 = pneg %p192
      // Predicated region
      $region25: #{tpu_custom_call.1} parent=5 // pred_check
        _
      $region26: #{tpu_custom_call.1} parent=5 // pred_check_branch
        %195 = sbr.rel (%p192) target = $region28
      $region27: #{tpu_custom_call.1} parent=5 // pred_region
        %s196 = ssub.s32 %s17, 1
        %p197 = scmp.lt.s32.totalorder %s26, 1
        %s198 = scalar_select %p197, %s26, 1
        %s199 = smul.addr %s198, 54
        %s200 = smul.addr %s199, 4
        %s201 = scalar_lea.vmem %s0, %s200
        %p202 = pneg %p55
        %p203 = pneg %p52
        %p204 = pneg %p76
        %p205 = pneg %p73
        %p206 = pneg %p104
        %p207 = pneg %p101
        %s208 = smul.u32 32, %s27
        %p209 = scmp.lt.s32.totalorder %s26, 1
        %s210 = scalar_select %p209, %s26, 1
        %p211 = scmp.lt.s32.totalorder %s208, 31
        %s212 = scalar_select %p211, %s208, 31
        %s213 = smul.addr %s210, 32
        %s214 = sadd.s32 %s212, %s213
        %s215 = smul.addr %s214, 4
        %s216 = scalar_lea.vmem %s2, %s215
        %p217 = pneg %p132
        %p218 = pneg %p129
        %s219 = sand.u32 %s119, 1
        %s220 = scalar_lea.sflag [#allocation3], %s219
        %s221 = sand.u32 %s119, 1
        %s222 = smul.addr %s221, 8
        %s223 = scalar_lea.vmem [#allocation2], %s222
        %p224 = pneg %p160
        %p225 = pneg %p157
        %s226 = sand.u32 %s147, 1
        %s227 = scalar_lea.sflag [#allocation5], %s226
        %s228 = sand.u32 %s147, 1
        %s229 = smul.addr %s228, 8
        %s230 = scalar_lea.vmem [#allocation4], %s229
        %p231 = scmp.lt.s32.totalorder %s26, 1
        %s232 = scalar_select %p231, %s26, 1
        %s233 = smul.addr %s232, 54
        %s234 = smul.addr %s233, 4
        %s235 = scalar_lea.vmem %s0, %s234
        %s236 = smul.u32 32, %s27
        %p237 = scmp.lt.s32.totalorder %s26, 1
        %s238 = scalar_select %p237, %s26, 1
        %p239 = scmp.lt.s32.totalorder %s236, 31
        %s240 = scalar_select %p239, %s236, 31
        %s241 = smul.addr %s238, 32
        %s242 = sadd.s32 %s240, %s241
        %s243 = smul.addr %s242, 4
        %s244 = scalar_lea.vmem %s2, %s243
        %s245 = smul.u32 32, %s27
        %s247 = smul.u32 %s27, 16
        %s248 = smul.u32 %s247, 3
        %s249 = smul.addr %s248, 4
        %s250 = scalar_lea.vmem %s235, %s249
        %v251 = vld [vmem:[%s250] sm:$0xf]
        %v252 = vld [vmem:[%s250 + $0x4] sm:$0xf]
        %v253 = vld [vmem:[%s250 + $0xc] sm:$0xf]
        %v254 = vld [vmem:[%s250 + $0x10] sm:$0xf]
        %v255 = vld [vmem:[%s250 + $0x18] sm:$0xf]
        %v256 = vld [vmem:[%s250 + $0x1c] sm:$0xf]
        %v257 = vld [vmem:[%s250 + $0x24] sm:$0xf]
        %v258 = vld [vmem:[%s250 + $0x28] sm:$0xf]
        %v259 = vld [vmem:[%s250 + $0x30] sm:$0xf]
        %v260 = vld [vmem:[%s250 + $0x34] sm:$0xf]
        %v261 = vld [vmem:[%s250 + $0x3c] sm:$0xf]
        %v262 = vld [vmem:[%s250 + $0x40] sm:$0xf]
        %v263 = vld [vmem:[%s250 + $0x48] sm:$0xf]
        %v264 = vld [vmem:[%s250 + $0x4c] sm:$0xf]
        %v265 = vld [vmem:[%s250 + $0x54] sm:$0xf]
        %v266 = vld [vmem:[%s250 + $0x58] sm:$0xf]
        %v267 = vld [vmem:[%s250 + $0x60] sm:$0xf]
        %v268 = vld [vmem:[%s250 + $0x64] sm:$0xf]
        %v269 = vld [vmem:[%s250 + $0x6c] sm:$0xf]
        %v270 = vld [vmem:[%s250 + $0x70] sm:$0xf]
        %v271 = vld [vmem:[%s250 + $0x78] sm:$0xf]
        %v272 = vld [vmem:[%s250 + $0x7c] sm:$0xf]
        %v273 = vld [vmem:[%s250 + $0x84] sm:$0xf]
        %v274 = vld [vmem:[%s250 + $0x88] sm:$0xf]
        %v275 = vld [vmem:[%s250 + $0x90] sm:$0xf]
        %v276 = vld [vmem:[%s250 + $0x94] sm:$0xf]
        %v277 = vld [vmem:[%s250 + $0x9c] sm:$0xf]
        %v278 = vld [vmem:[%s250 + $0xa0] sm:$0xf]
        %v279 = vld [vmem:[%s250 + $0xa8] sm:$0xf]
        %v280 = vld [vmem:[%s250 + $0xac] sm:$0xf]
        %v281 = vld [vmem:[%s250 + $0xb4] sm:$0xf]
        %v282 = vld [vmem:[%s250 + $0xb8] sm:$0xf]
        %v283 = vld [vmem:[%s250 + $0xc0] sm:$0xf]
        %v284 = vld [vmem:[%s250 + $0xc4] sm:$0xf]
        %v285 = vld [vmem:[%s250 + $0xcc] sm:$0xf]
        %v286 = vld [vmem:[%s250 + $0xd0] sm:$0xf]
        %v287 = vld [vmem:[%s1] sm:$0x3]
        %s288 = scalar_lea.vmem %s1, 6
        %v289 = vld [vmem:[%s288] sm:$0x3]
        %v322 = vunpack.c.l.b16 %v253
        %v323 = vunpack.c.l.b16 %v254
        %v324 = vunpack.c.l.b16 %v255
        %v325 = vunpack.c.l.b16 %v256
        %v326 = vunpack.c.l.b16 %v257
        %v327 = vunpack.c.l.b16 %v258
        %v328 = vunpack.c.l.b16 %v259
        %v329 = vunpack.c.l.b16 %v260
        %v330 = vunpack.c.l.b16 %v261
        %v331 = vunpack.c.l.b16 %v262
        %v332 = vunpack.c.l.b16 %v263
        %v333 = vunpack.c.l.b16 %v264
        %v334 = vunpack.c.l.b16 %v265
        %v335 = vunpack.c.l.b16 %v266
        %v336 = vunpack.c.l.b16 %v267
        %v337 = vunpack.c.l.b16 %v268
        %v338 = vunpack.c.l.b16 %v269
        %v339 = vunpack.c.l.b16 %v270
        %v340 = vunpack.c.l.b16 %v271
        %v341 = vunpack.c.l.b16 %v272
        %v342 = vunpack.c.l.b16 %v273
        %v343 = vunpack.c.l.b16 %v274
        %v344 = vunpack.c.l.b16 %v275
        %v345 = vunpack.c.l.b16 %v276
        %v346 = vunpack.c.l.b16 %v277
        %v347 = vunpack.c.l.b16 %v278
        %v348 = vunpack.c.l.b16 %v279
        %v349 = vunpack.c.l.b16 %v280
        %v350 = vunpack.c.l.b16 %v281
        %v351 = vunpack.c.l.b16 %v282
        %v352 = vunpack.c.l.b16 %v283
        %v353 = vunpack.c.l.b16 %v284
        %v354 = vpack.c.b16 %v323, %v322
        %v355 = vpack.c.b16 %v325, %v324
        %v356 = vpack.c.b16 %v327, %v326
        %v357 = vpack.c.b16 %v329, %v328
        %v358 = vpack.c.b16 %v331, %v330
        %v359 = vpack.c.b16 %v333, %v332
        %v360 = vpack.c.b16 %v335, %v334
        %v361 = vpack.c.b16 %v337, %v336
        %v362 = vpack.c.b16 %v339, %v338
        %v363 = vpack.c.b16 %v341, %v340
        %v364 = vpack.c.b16 %v343, %v342
        %v365 = vpack.c.b16 %v345, %v344
        %v366 = vpack.c.b16 %v347, %v346
        %v367 = vpack.c.b16 %v349, %v348
        %v368 = vpack.c.b16 %v351, %v350
        %v369 = vpack.c.b16 %v353, %v352
        %vm370 = vcmask 31744
        %v372 = vsel %vm370, %v354, 0
        %v375 = vsel %vm370, %v355, 0
        %v378 = vsel %vm370, %v356, 0
        %v381 = vsel %vm370, %v357, 0
        %v384 = vsel %vm370, %v358, 0
        %v387 = vsel %vm370, %v359, 0
        %v390 = vsel %vm370, %v360, 0
        %v393 = vsel %vm370, %v361, 0
        %v396 = vsel %vm370, %v362, 0
        %v399 = vsel %vm370, %v363, 0
        %v402 = vsel %vm370, %v364, 0
        %v405 = vsel %vm370, %v365, 0
        %v408 = vsel %vm370, %v366, 0
        %v411 = vsel %vm370, %v367, 0
        %v414 = vsel %vm370, %v368, 0
        %v417 = vsel %vm370, %v369, 0
        %vm419 = vcmask 1041408
        %v421 = vsel %vm419, %v289, 0
        %423 = vmatprep.subr.bf16.mxu0 0
        %424 = vmatpush1.bf16.msra.mxu0 %v421
        %425 = vmatprep.subr.bf16.mxu0 0
        %426 = vmatpush1.bf16.msra.mxu0 0
        %427 = vmatprep.subr.bf16.mxu0 0
        %428 = vmatpush1.bf16.msra.mxu0 0
        %429 = vmatprep.subr.bf16.mxu0 0
        %430 = vmatpush1.bf16.msra.mxu0 0
        %431 = vmatprep.subr.bf16.mxu0 0
        %432 = vmatpush1.bf16.msra.mxu0 0
        %433 = vmatprep.subr.bf16.mxu0 0
        %434 = vmatpush1.bf16.msra.mxu0 0
        %435 = vmatprep.subr.bf16.mxu0 0
        %436 = vmatpush1.bf16.msra.mxu0 0
        %437 = vmatprep.subr.bf16.mxu0 0
        %438 = vmatpush1.bf16.msra.mxu0 0
        %439 = vmatprep.subr.bf16.mxu0 0
        %440 = vmatpush1.bf16.msra.mxu0 0
        %441 = vmatprep.subr.bf16.mxu0 0
        %442 = vmatpush1.bf16.msra.mxu0 0
        %443 = vmatprep.subr.bf16.mxu0 0
        %444 = vmatpush1.bf16.msra.mxu0 0
        %445 = vmatprep.subr.bf16.mxu0 0
        %446 = vmatpush1.bf16.msra.mxu0 0
        %447 = vmatprep.subr.bf16.mxu0 0
        %448 = vmatpush1.bf16.msra.mxu0 0
        %449 = vmatprep.subr.bf16.mxu0 0
        %450 = vmatpush1.bf16.msra.mxu0 0
        %451 = vmatprep.subr.bf16.mxu0 0
        %452 = vmatpush1.bf16.msra.mxu0 0
        %453 = vmatprep.subr.bf16.mxu0 0
        %454 = vmatpush1.bf16.msra.mxu0 0
        %455 = vmatprep.mubr.bf16.mxu0 0
        %456 = vmatmul.mubr.bf16.gmra.mrb[0].mxu0 %v372
        %v457 = vpop.f32.mrb[0].mxu0
        %v458 = vadd.f32 0.0, %v457
        %v459 = vpop.f32.mrb[0].mxu0
        %v460 = vpop.f32.mrb[0].mxu0
        %v461 = vadd.f32 0.0, %v460
        %v462 = vpop.f32.mrb[0].mxu0
        %463 = vmatprep.mubr.bf16.mxu0 0
        %464 = vmatmul.mubr.bf16.gmra.mrb[0].mxu0 %v375
        %v465 = vpop.f32.mrb[0].mxu0
        %v466 = vadd.f32 0.0, %v465
        %v467 = vpop.f32.mrb[0].mxu0
        %v468 = vpop.f32.mrb[0].mxu0
        %v469 = vadd.f32 0.0, %v468
        %v470 = vpop.f32.mrb[0].mxu0
        %471 = vmatprep.mubr.bf16.mxu0 0
        %472 = vmatmul.mubr.bf16.gmra.mrb[0].mxu0 %v378
        %v473 = vpop.f32.mrb[0].mxu0
        %v474 = vadd.f32 0.0, %v473
        %v475 = vpop.f32.mrb[0].mxu0
        %v476 = vpop.f32.mrb[0].mxu0
        %v477 = vadd.f32 0.0, %v476
        %v478 = vpop.f32.mrb[0].mxu0
        %479 = vmatprep.mubr.bf16.mxu0 0
        %480 = vmatmul.mubr.bf16.gmra.mrb[0].mxu0 %v381
        %v481 = vpop.f32.mrb[0].mxu0
        %v482 = vadd.f32 0.0, %v481
        %v483 = vpop.f32.mrb[0].mxu0
        %v484 = vpop.f32.mrb[0].mxu0
        %v485 = vadd.f32 0.0, %v484
        %v486 = vpop.f32.mrb[0].mxu0
        %487 = vmatprep.mubr.bf16.mxu0 0
        %488 = vmatmul.mubr.bf16.gmra.mrb[0].mxu0 %v384
        %v489 = vpop.f32.mrb[0].mxu0
        %v490 = vadd.f32 0.0, %v489
        %v491 = vpop.f32.mrb[0].mxu0
        %v492 = vpop.f32.mrb[0].mxu0
        %v493 = vadd.f32 0.0, %v492
        %v494 = vpop.f32.mrb[0].mxu0
        %495 = vmatprep.mubr.bf16.mxu0 0
        %496 = vmatmul.mubr.bf16.gmra.mrb[0].mxu0 %v387
        %v497 = vpop.f32.mrb[0].mxu0
        %v498 = vadd.f32 0.0, %v497
        %v499 = vpop.f32.mrb[0].mxu0
        %v500 = vpop.f32.mrb[0].mxu0
        %v501 = vadd.f32 0.0, %v500
        %v502 = vpop.f32.mrb[0].mxu0
        %503 = vmatprep.mubr.bf16.mxu0 0
        %504 = vmatmul.mubr.bf16.gmra.mrb[0].mxu0 %v390
        %v505 = vpop.f32.mrb[0].mxu0
        %v506 = vadd.f32 0.0, %v505
        %v507 = vpop.f32.mrb[0].mxu0
        %v508 = vpop.f32.mrb[0].mxu0
        %v509 = vadd.f32 0.0, %v508
        %v510 = vpop.f32.mrb[0].mxu0
        %511 = vmatprep.mubr.bf16.mxu0 0
        %512 = vmatmul.mubr.bf16.gmra.mrb[0].mxu0 %v393
        %v513 = vpop.f32.mrb[0].mxu0
        %v514 = vadd.f32 0.0, %v513
        %v515 = vpop.f32.mrb[0].mxu0
        %v516 = vpop.f32.mrb[0].mxu0
        %v517 = vadd.f32 0.0, %v516
        %v518 = vpop.f32.mrb[0].mxu0
        %519 = vmatprep.mubr.bf16.mxu0 0
        %520 = vmatmul.mubr.bf16.gmra.mrb[0].mxu0 %v396
        %v521 = vpop.f32.mrb[0].mxu0
        %v522 = vadd.f32 0.0, %v521
        %v523 = vpop.f32.mrb[0].mxu0
        %v524 = vpop.f32.mrb[0].mxu0
        %v525 = vadd.f32 0.0, %v524
        %v526 = vpop.f32.mrb[0].mxu0
        %527 = vmatprep.mubr.bf16.mxu0 0
        %528 = vmatmul.mubr.bf16.gmra.mrb[0].mxu0 %v399
        %v529 = vpop.f32.mrb[0].mxu0
        %v530 = vadd.f32 0.0, %v529
        %v531 = vpop.f32.mrb[0].mxu0
        %v532 = vpop.f32.mrb[0].mxu0
        %v533 = vadd.f32 0.0, %v532
        %v534 = vpop.f32.mrb[0].mxu0
        %535 = vmatprep.mubr.bf16.mxu0 0
        %536 = vmatmul.mubr.bf16.gmra.mrb[0].mxu0 %v402
        %v537 = vpop.f32.mrb[0].mxu0
        %v538 = vadd.f32 0.0, %v537
        %v539 = vpop.f32.mrb[0].mxu0
        %v540 = vpop.f32.mrb[0].mxu0
        %v541 = vadd.f32 0.0, %v540
        %v542 = vpop.f32.mrb[0].mxu0
        %543 = vmatprep.mubr.bf16.mxu0 0
        %544 = vmatmul.mubr.bf16.gmra.mrb[0].mxu0 %v405
        %v545 = vpop.f32.mrb[0].mxu0
        %v546 = vadd.f32 0.0, %v545
        %v547 = vpop.f32.mrb[0].mxu0
        %v548 = vpop.f32.mrb[0].mxu0
        %v549 = vadd.f32 0.0, %v548
        %v550 = vpop.f32.mrb[0].mxu0
        %551 = vmatprep.mubr.bf16.mxu0 0
        %552 = vmatmul.mubr.bf16.gmra.mrb[0].mxu0 %v408
        %v553 = vpop.f32.mrb[0].mxu0
        %v554 = vadd.f32 0.0, %v553
        %v555 = vpop.f32.mrb[0].mxu0
        %v556 = vpop.f32.mrb[0].mxu0
        %v557 = vadd.f32 0.0, %v556
        %v558 = vpop.f32.mrb[0].mxu0
        %559 = vmatprep.mubr.bf16.mxu0 0
        %560 = vmatmul.mubr.bf16.gmra.mrb[0].mxu0 %v411
        %v561 = vpop.f32.mrb[0].mxu0
        %v562 = vadd.f32 0.0, %v561
        %v563 = vpop.f32.mrb[0].mxu0
        %v564 = vpop.f32.mrb[0].mxu0
        %v565 = vadd.f32 0.0, %v564
        %v566 = vpop.f32.mrb[0].mxu0
        %567 = vmatprep.mubr.bf16.mxu0 0
        %568 = vmatmul.mubr.bf16.gmra.mrb[0].mxu0 %v414
        %v569 = vpop.f32.mrb[0].mxu0
        %v570 = vadd.f32 0.0, %v569
        %v571 = vpop.f32.mrb[0].mxu0
        %v572 = vpop.f32.mrb[0].mxu0
        %v573 = vadd.f32 0.0, %v572
        %v574 = vpop.f32.mrb[0].mxu0
        %575 = vmatprep.mubr.bf16.mxu0 0
        %576 = vmatmul.mubr.bf16.gmra.mrb[0].mxu0 %v417
        %v577 = vpop.f32.mrb[0].mxu0
        %v578 = vadd.f32 0.0, %v577
        %v579 = vpop.f32.mrb[0].mxu0
        %v580 = vpop.f32.mrb[0].mxu0
        %v581 = vadd.f32 0.0, %v580
        %v582 = vpop.f32.mrb[0].mxu0
        %583 = vdwg.mxu0
        %v586 = vunpack.c.l.b16 %v251
        %v587 = vunpack.c.l.b16 %v252
        %v588 = vpack.c.b16 %v587, %v586
        %v590 = vsel %vm370, %v588, 0
        %v593 = vsel %vm419, %v287, 0
        %595 = vmatprep.subr.bf16.mxu0 0
        %596 = vmatpush1.bf16.msra.mxu0 %v593
        %597 = vmatprep.subr.bf16.mxu0 0
        %598 = vmatpush1.bf16.msra.mxu0 0
        %599 = vmatprep.subr.bf16.mxu0 0
        %600 = vmatpush1.bf16.msra.mxu0 0
        %601 = vmatprep.subr.bf16.mxu0 0
        %602 = vmatpush1.bf16.msra.mxu0 0
        %603 = vmatprep.subr.bf16.mxu0 0
        %604 = vmatpush1.bf16.msra.mxu0 0
        %605 = vmatprep.subr.bf16.mxu0 0
        %606 = vmatpush1.bf16.msra.mxu0 0
        %607 = vmatprep.subr.bf16.mxu0 0
        %608 = vmatpush1.bf16.msra.mxu0 0
        %609 = vmatprep.subr.bf16.mxu0 0
        %610 = vmatpush1.bf16.msra.mxu0 0
        %611 = vmatprep.subr.bf16.mxu0 0
        %612 = vmatpush1.bf16.msra.mxu0 0
        %613 = vmatprep.subr.bf16.mxu0 0
        %614 = vmatpush1.bf16.msra.mxu0 0
        %615 = vmatprep.subr.bf16.mxu0 0
        %616 = vmatpush1.bf16.msra.mxu0 0
        %617 = vmatprep.subr.bf16.mxu0 0
        %618 = vmatpush1.bf16.msra.mxu0 0
        %619 = vmatprep.subr.bf16.mxu0 0
        %620 = vmatpush1.bf16.msra.mxu0 0
        %621 = vmatprep.subr.bf16.mxu0 0
        %622 = vmatpush1.bf16.msra.mxu0 0
        %623 = vmatprep.subr.bf16.mxu0 0
        %624 = vmatpush1.bf16.msra.mxu0 0
        %625 = vmatprep.subr.bf16.mxu0 0
        %626 = vmatpush1.bf16.msra.mxu0 0
        %627 = vmatprep.mubr.bf16.mxu0 0
        %628 = vmatmul.mubr.bf16.gmra.mrb[0].mxu0 %v590
        %v629 = vpop.f32.mrb[0].mxu0
        %v630 = vadd.f32 %v458, %v629
        %v631 = vpop.f32.mrb[0].mxu0
        %v632 = vpop.f32.mrb[0].mxu0
        %v633 = vadd.f32 %v461, %v632
        %v634 = vpop.f32.mrb[0].mxu0
        %635 = vmatprep.mubr.bf16.mxu0 0
        %636 = vmatmul.mubr.bf16.gmra.mrb[0].mxu0 %v372
        %v637 = vpop.f32.mrb[0].mxu0
        %v638 = vadd.f32 %v466, %v637
        %v639 = vpop.f32.mrb[0].mxu0
        %v640 = vpop.f32.mrb[0].mxu0
        %v641 = vadd.f32 %v469, %v640
        %v642 = vpop.f32.mrb[0].mxu0
        %643 = vmatprep.mubr.bf16.mxu0 0
        %644 = vmatmul.mubr.bf16.gmra.mrb[0].mxu0 %v375
        %v645 = vpop.f32.mrb[0].mxu0
        %v646 = vadd.f32 %v474, %v645
        %v647 = vpop.f32.mrb[0].mxu0
        %v648 = vpop.f32.mrb[0].mxu0
        %v649 = vadd.f32 %v477, %v648
        %v650 = vpop.f32.mrb[0].mxu0
        %651 = vmatprep.mubr.bf16.mxu0 0
        %652 = vmatmul.mubr.bf16.gmra.mrb[0].mxu0 %v378
        %v653 = vpop.f32.mrb[0].mxu0
        %v654 = vadd.f32 %v482, %v653
        %v655 = vpop.f32.mrb[0].mxu0
        %v656 = vpop.f32.mrb[0].mxu0
        %v657 = vadd.f32 %v485, %v656
        %v658 = vpop.f32.mrb[0].mxu0
        %659 = vmatprep.mubr.bf16.mxu0 0
        %660 = vmatmul.mubr.bf16.gmra.mrb[0].mxu0 %v381
        %v661 = vpop.f32.mrb[0].mxu0
        %v662 = vadd.f32 %v490, %v661
        %v663 = vpop.f32.mrb[0].mxu0
        %v664 = vpop.f32.mrb[0].mxu0
        %v665 = vadd.f32 %v493, %v664
        %v666 = vpop.f32.mrb[0].mxu0
        %667 = vmatprep.mubr.bf16.mxu0 0
        %668 = vmatmul.mubr.bf16.gmra.mrb[0].mxu0 %v384
        %v669 = vpop.f32.mrb[0].mxu0
        %v670 = vadd.f32 %v498, %v669
        %v671 = vpop.f32.mrb[0].mxu0
        %v672 = vpop.f32.mrb[0].mxu0
        %v673 = vadd.f32 %v501, %v672
        %v674 = vpop.f32.mrb[0].mxu0
        %675 = vmatprep.mubr.bf16.mxu0 0
        %676 = vmatmul.mubr.bf16.gmra.mrb[0].mxu0 %v387
        %v677 = vpop.f32.mrb[0].mxu0
        %v678 = vadd.f32 %v506, %v677
        %v679 = vpop.f32.mrb[0].mxu0
        %v680 = vpop.f32.mrb[0].mxu0
        %v681 = vadd.f32 %v509, %v680
        %v682 = vpop.f32.mrb[0].mxu0
        %683 = vmatprep.mubr.bf16.mxu0 0
        %684 = vmatmul.mubr.bf16.gmra.mrb[0].mxu0 %v390
        %v685 = vpop.f32.mrb[0].mxu0
        %v686 = vadd.f32 %v514, %v685
        %v687 = vpop.f32.mrb[0].mxu0
        %v688 = vpop.f32.mrb[0].mxu0
        %v689 = vadd.f32 %v517, %v688
        %v690 = vpop.f32.mrb[0].mxu0
        %691 = vmatprep.mubr.bf16.mxu0 0
        %692 = vmatmul.mubr.bf16.gmra.mrb[0].mxu0 %v393
        %v693 = vpop.f32.mrb[0].mxu0
        %v694 = vadd.f32 %v522, %v693
        %v695 = vpop.f32.mrb[0].mxu0
        %v696 = vpop.f32.mrb[0].mxu0
        %v697 = vadd.f32 %v525, %v696
        %v698 = vpop.f32.mrb[0].mxu0
        %699 = vmatprep.mubr.bf16.mxu0 0
        %700 = vmatmul.mubr.bf16.gmra.mrb[0].mxu0 %v396
        %v701 = vpop.f32.mrb[0].mxu0
        %v702 = vadd.f32 %v530, %v701
        %v703 = vpop.f32.mrb[0].mxu0
        %v704 = vpop.f32.mrb[0].mxu0
        %v705 = vadd.f32 %v533, %v704
        %v706 = vpop.f32.mrb[0].mxu0
        %707 = vmatprep.mubr.bf16.mxu0 0
        %708 = vmatmul.mubr.bf16.gmra.mrb[0].mxu0 %v399
        %v709 = vpop.f32.mrb[0].mxu0
        %v710 = vadd.f32 %v538, %v709
        %v711 = vpop.f32.mrb[0].mxu0
        %v712 = vpop.f32.mrb[0].mxu0
        %v713 = vadd.f32 %v541, %v712
        %v714 = vpop.f32.mrb[0].mxu0
        %715 = vmatprep.mubr.bf16.mxu0 0
        %716 = vmatmul.mubr.bf16.gmra.mrb[0].mxu0 %v402
        %v717 = vpop.f32.mrb[0].mxu0
        %v718 = vadd.f32 %v546, %v717
        %v719 = vpop.f32.mrb[0].mxu0
        %v720 = vpop.f32.mrb[0].mxu0
        %v721 = vadd.f32 %v549, %v720
        %v722 = vpop.f32.mrb[0].mxu0
        %723 = vmatprep.mubr.bf16.mxu0 0
        %724 = vmatmul.mubr.bf16.gmra.mrb[0].mxu0 %v405
        %v725 = vpop.f32.mrb[0].mxu0
        %v726 = vadd.f32 %v554, %v725
        %v727 = vpop.f32.mrb[0].mxu0
        %v728 = vpop.f32.mrb[0].mxu0
        %v729 = vadd.f32 %v557, %v728
        %v730 = vpop.f32.mrb[0].mxu0
        %731 = vmatprep.mubr.bf16.mxu0 0
        %732 = vmatmul.mubr.bf16.gmra.mrb[0].mxu0 %v408
        %v733 = vpop.f32.mrb[0].mxu0
        %v734 = vadd.f32 %v562, %v733
        %v735 = vpop.f32.mrb[0].mxu0
        %v736 = vpop.f32.mrb[0].mxu0
        %v737 = vadd.f32 %v565, %v736
        %v738 = vpop.f32.mrb[0].mxu0
        %739 = vmatprep.mubr.bf16.mxu0 0
        %740 = vmatmul.mubr.bf16.gmra.mrb[0].mxu0 %v411
        %v741 = vpop.f32.mrb[0].mxu0
        %v742 = vadd.f32 %v570, %v741
        %v743 = vpop.f32.mrb[0].mxu0
        %v744 = vpop.f32.mrb[0].mxu0
        %v745 = vadd.f32 %v573, %v744
        %v746 = vpop.f32.mrb[0].mxu0
        %747 = vmatprep.mubr.bf16.mxu0 0
        %748 = vmatmul.mubr.bf16.gmra.mrb[0].mxu0 %v414
        %v749 = vpop.f32.mrb[0].mxu0
        %v750 = vadd.f32 %v578, %v749
        %v751 = vpop.f32.mrb[0].mxu0
        %v752 = vpop.f32.mrb[0].mxu0
        %v753 = vadd.f32 %v581, %v752
        %v754 = vpop.f32.mrb[0].mxu0
        %755 = vdwg.mxu0
        %s756 = scalar_lea.vmem %s1, 12
        %v757 = vld [vmem:[%s756] sm:$0x3]
        %v760 = vunpack.c.l.b16 %v285
        %v761 = vunpack.c.l.b16 %v286
        %v762 = vpack.c.b16 %v761, %v760
        %v764 = vsel %vm370, %v762, 0
        %v767 = vsel %vm419, %v757, 0
        %769 = vmatprep.subr.bf16.mxu0 0
        %770 = vmatpush1.bf16.msra.mxu0 %v767
        %771 = vmatprep.subr.bf16.mxu0 0
        %772 = vmatpush1.bf16.msra.mxu0 0
        %773 = vmatprep.subr.bf16.mxu0 0
        %774 = vmatpush1.bf16.msra.mxu0 0
        %775 = vmatprep.subr.bf16.mxu0 0
        %776 = vmatpush1.bf16.msra.mxu0 0
        %777 = vmatprep.subr.bf16.mxu0 0
        %778 = vmatpush1.bf16.msra.mxu0 0
        %779 = vmatprep.subr.bf16.mxu0 0
        %780 = vmatpush1.bf16.msra.mxu0 0
        %781 = vmatprep.subr.bf16.mxu0 0
        %782 = vmatpush1.bf16.msra.mxu0 0
        %783 = vmatprep.subr.bf16.mxu0 0
        %784 = vmatpush1.bf16.msra.mxu0 0
        %785 = vmatprep.subr.bf16.mxu0 0
        %786 = vmatpush1.bf16.msra.mxu0 0
        %787 = vmatprep.subr.bf16.mxu0 0
        %788 = vmatpush1.bf16.msra.mxu0 0
        %789 = vmatprep.subr.bf16.mxu0 0
        %790 = vmatpush1.bf16.msra.mxu0 0
        %791 = vmatprep.subr.bf16.mxu0 0
        %792 = vmatpush1.bf16.msra.mxu0 0
        %793 = vmatprep.subr.bf16.mxu0 0
        %794 = vmatpush1.bf16.msra.mxu0 0
        %795 = vmatprep.subr.bf16.mxu0 0
        %796 = vmatpush1.bf16.msra.mxu0 0
        %797 = vmatprep.subr.bf16.mxu0 0
        %798 = vmatpush1.bf16.msra.mxu0 0
        %799 = vmatprep.subr.bf16.mxu0 0
        %800 = vmatpush1.bf16.msra.mxu0 0
        %801 = vmatprep.mubr.bf16.mxu0 0
        %802 = vmatmul.mubr.bf16.gmra.mrb[0].mxu0 %v375
        %v803 = vpop.f32.mrb[0].mxu0
        %v804 = vadd.f32 0.0, %v803
        %v805 = vpop.f32.mrb[0].mxu0
        %v806 = vpop.f32.mrb[0].mxu0
        %v807 = vadd.f32 0.0, %v806
        %v808 = vpop.f32.mrb[0].mxu0
        %809 = vmatprep.mubr.bf16.mxu0 0
        %810 = vmatmul.mubr.bf16.gmra.mrb[0].mxu0 %v378
        %v811 = vpop.f32.mrb[0].mxu0
        %v812 = vadd.f32 0.0, %v811
        %v813 = vpop.f32.mrb[0].mxu0
        %v814 = vpop.f32.mrb[0].mxu0
        %v815 = vadd.f32 0.0, %v814
        %v816 = vpop.f32.mrb[0].mxu0
        %817 = vmatprep.mubr.bf16.mxu0 0
        %818 = vmatmul.mubr.bf16.gmra.mrb[0].mxu0 %v381
        %v819 = vpop.f32.mrb[0].mxu0
        %v820 = vadd.f32 0.0, %v819
        %v821 = vpop.f32.mrb[0].mxu0
        %v822 = vpop.f32.mrb[0].mxu0
        %v823 = vadd.f32 0.0, %v822
        %v824 = vpop.f32.mrb[0].mxu0
        %825 = vmatprep.mubr.bf16.mxu0 0
        %826 = vmatmul.mubr.bf16.gmra.mrb[0].mxu0 %v384
        %v827 = vpop.f32.mrb[0].mxu0
        %v828 = vadd.f32 0.0, %v827
        %v829 = vpop.f32.mrb[0].mxu0
        %v830 = vpop.f32.mrb[0].mxu0
        %v831 = vadd.f32 0.0, %v830
        %v832 = vpop.f32.mrb[0].mxu0
        %833 = vmatprep.mubr.bf16.mxu0 0
        %834 = vmatmul.mubr.bf16.gmra.mrb[0].mxu0 %v387
        %v835 = vpop.f32.mrb[0].mxu0
        %v836 = vadd.f32 0.0, %v835
        %v837 = vpop.f32.mrb[0].mxu0
        %v838 = vpop.f32.mrb[0].mxu0
        %v839 = vadd.f32 0.0, %v838
        %v840 = vpop.f32.mrb[0].mxu0
        %841 = vmatprep.mubr.bf16.mxu0 0
        %842 = vmatmul.mubr.bf16.gmra.mrb[0].mxu0 %v390
        %v843 = vpop.f32.mrb[0].mxu0
        %v844 = vadd.f32 0.0, %v843
        %v845 = vpop.f32.mrb[0].mxu0
        %v846 = vpop.f32.mrb[0].mxu0
        %v847 = vadd.f32 0.0, %v846
        %v848 = vpop.f32.mrb[0].mxu0
        %849 = vmatprep.mubr.bf16.mxu0 0
        %850 = vmatmul.mubr.bf16.gmra.mrb[0].mxu0 %v393
        %v851 = vpop.f32.mrb[0].mxu0
        %v852 = vadd.f32 0.0, %v851
        %v853 = vpop.f32.mrb[0].mxu0
        %v854 = vpop.f32.mrb[0].mxu0
        %v855 = vadd.f32 0.0, %v854
        %v856 = vpop.f32.mrb[0].mxu0
        %857 = vmatprep.mubr.bf16.mxu0 0
        %858 = vmatmul.mubr.bf16.gmra.mrb[0].mxu0 %v396
        %v859 = vpop.f32.mrb[0].mxu0
        %v860 = vadd.f32 0.0, %v859
        %v861 = vpop.f32.mrb[0].mxu0
        %v862 = vpop.f32.mrb[0].mxu0
        %v863 = vadd.f32 0.0, %v862
        %v864 = vpop.f32.mrb[0].mxu0
        %865 = vmatprep.mubr.bf16.mxu0 0
        %866 = vmatmul.mubr.bf16.gmra.mrb[0].mxu0 %v399
        %v867 = vpop.f32.mrb[0].mxu0
        %v868 = vadd.f32 0.0, %v867
        %v869 = vpop.f32.mrb[0].mxu0
        %v870 = vpop.f32.mrb[0].mxu0
        %v871 = vadd.f32 0.0, %v870
        %v872 = vpop.f32.mrb[0].mxu0
        %873 = vmatprep.mubr.bf16.mxu0 0
        %874 = vmatmul.mubr.bf16.gmra.mrb[0].mxu0 %v402
        %v875 = vpop.f32.mrb[0].mxu0
        %v876 = vadd.f32 0.0, %v875
        %v877 = vpop.f32.mrb[0].mxu0
        %v878 = vpop.f32.mrb[0].mxu0
        %v879 = vadd.f32 0.0, %v878
        %v880 = vpop.f32.mrb[0].mxu0
        %881 = vmatprep.mubr.bf16.mxu0 0
        %882 = vmatmul.mubr.bf16.gmra.mrb[0].mxu0 %v405
        %v883 = vpop.f32.mrb[0].mxu0
        %v884 = vadd.f32 0.0, %v883
        %v885 = vpop.f32.mrb[0].mxu0
        %v886 = vpop.f32.mrb[0].mxu0
        %v887 = vadd.f32 0.0, %v886
        %v888 = vpop.f32.mrb[0].mxu0
        %889 = vmatprep.mubr.bf16.mxu0 0
        %890 = vmatmul.mubr.bf16.gmra.mrb[0].mxu0 %v408
        %v891 = vpop.f32.mrb[0].mxu0
        %v892 = vadd.f32 0.0, %v891
        %v893 = vpop.f32.mrb[0].mxu0
        %v894 = vpop.f32.mrb[0].mxu0
        %v895 = vadd.f32 0.0, %v894
        %v896 = vpop.f32.mrb[0].mxu0
        %897 = vmatprep.mubr.bf16.mxu0 0
        %898 = vmatmul.mubr.bf16.gmra.mrb[0].mxu0 %v411
        %v899 = vpop.f32.mrb[0].mxu0
        %v900 = vadd.f32 0.0, %v899
        %v901 = vpop.f32.mrb[0].mxu0
        %v902 = vpop.f32.mrb[0].mxu0
        %v903 = vadd.f32 0.0, %v902
        %v904 = vpop.f32.mrb[0].mxu0
        %905 = vmatprep.mubr.bf16.mxu0 0
        %906 = vmatmul.mubr.bf16.gmra.mrb[0].mxu0 %v414
        %v907 = vpop.f32.mrb[0].mxu0
        %v908 = vadd.f32 0.0, %v907
        %v909 = vpop.f32.mrb[0].mxu0
        %v910 = vpop.f32.mrb[0].mxu0
        %v911 = vadd.f32 0.0, %v910
        %v912 = vpop.f32.mrb[0].mxu0
        %913 = vmatprep.mubr.bf16.mxu0 0
        %914 = vmatmul.mubr.bf16.gmra.mrb[0].mxu0 %v417
        %v915 = vpop.f32.mrb[0].mxu0
        %v916 = vadd.f32 0.0, %v915
        %v917 = vpop.f32.mrb[0].mxu0
        %v918 = vpop.f32.mrb[0].mxu0
        %v919 = vadd.f32 0.0, %v918
        %v920 = vpop.f32.mrb[0].mxu0
        %921 = vmatprep.mubr.bf16.mxu0 0
        %922 = vmatmul.mubr.bf16.gmra.mrb[0].mxu0 %v764
        %v923 = vpop.f32.mrb[0].mxu0
        %v924 = vadd.f32 0.0, %v923
        %v925 = vpop.f32.mrb[0].mxu0
        %v926 = vpop.f32.mrb[0].mxu0
        %v927 = vadd.f32 0.0, %v926
        %v928 = vpop.f32.mrb[0].mxu0
        %929 = vdwg.mxu0
        %v930 = vadd.f32 %v630, %v804
        %v931 = vadd.f32 %v633, %v807
        %v932 = vadd.f32 %v638, %v812
        %v933 = vadd.f32 %v641, %v815
        %v934 = vadd.f32 %v646, %v820
        %v935 = vadd.f32 %v649, %v823
        %v936 = vadd.f32 %v654, %v828
        %v937 = vadd.f32 %v657, %v831
        %v938 = vadd.f32 %v662, %v836
        %v939 = vadd.f32 %v665, %v839
        %v940 = vadd.f32 %v670, %v844
        %v941 = vadd.f32 %v673, %v847
        %v942 = vadd.f32 %v678, %v852
        %v943 = vadd.f32 %v681, %v855
        %v944 = vadd.f32 %v686, %v860
        %v945 = vadd.f32 %v689, %v863
        %v946 = vadd.f32 %v694, %v868
        %v947 = vadd.f32 %v697, %v871
        %v948 = vadd.f32 %v702, %v876
        %v949 = vadd.f32 %v705, %v879
        %v950 = vadd.f32 %v710, %v884
        %v951 = vadd.f32 %v713, %v887
        %v952 = vadd.f32 %v718, %v892
        %v953 = vadd.f32 %v721, %v895
        %v954 = vadd.f32 %v726, %v900
        %v955 = vadd.f32 %v729, %v903
        %v956 = vadd.f32 %v734, %v908
        %v957 = vadd.f32 %v737, %v911
        %v958 = vadd.f32 %v742, %v916
        %v959 = vadd.f32 %v745, %v919
        %v960 = vadd.f32 %v750, %v924
        %v961 = vadd.f32 %v753, %v927
        %v962 = vld [vmem:[%s250] sm:$0xf]
        %v963 = vld [vmem:[%s250 + $0x4] sm:$0xf]
        %v964 = vld [vmem:[%s250 + $0x8] sm:$0x1]
        %v965 = vld [vmem:[%s250 + $0xc] sm:$0xf]
        %v966 = vld [vmem:[%s250 + $0x10] sm:$0xf]
        %v967 = vld [vmem:[%s250 + $0x14] sm:$0x1]
        %v968 = vld [vmem:[%s250 + $0x18] sm:$0xf]
        %v969 = vld [vmem:[%s250 + $0x1c] sm:$0xf]
        %v970 = vld [vmem:[%s250 + $0x20] sm:$0x1]
        %v971 = vld [vmem:[%s250 + $0x24] sm:$0xf]
        %v972 = vld [vmem:[%s250 + $0x28] sm:$0xf]
        %v973 = vld [vmem:[%s250 + $0x2c] sm:$0x1]
        %v974 = vld [vmem:[%s250 + $0x30] sm:$0xf]
        %v975 = vld [vmem:[%s250 + $0x34] sm:$0xf]
        %v976 = vld [vmem:[%s250 + $0x38] sm:$0x1]
        %v977 = vld [vmem:[%s250 + $0x3c] sm:$0xf]
        %v978 = vld [vmem:[%s250 + $0x40] sm:$0xf]
        %v979 = vld [vmem:[%s250 + $0x44] sm:$0x1]
        %v980 = vld [vmem:[%s250 + $0x48] sm:$0xf]
        %v981 = vld [vmem:[%s250 + $0x4c] sm:$0xf]
        %v982 = vld [vmem:[%s250 + $0x50] sm:$0x1]
        %v983 = vld [vmem:[%s250 + $0x54] sm:$0xf]
        %v984 = vld [vmem:[%s250 + $0x58] sm:$0xf]
        %v985 = vld [vmem:[%s250 + $0x5c] sm:$0x1]
        %v986 = vld [vmem:[%s250 + $0x60] sm:$0xf]
        %v987 = vld [vmem:[%s250 + $0x64] sm:$0xf]
        %v988 = vld [vmem:[%s250 + $0x68] sm:$0x1]
        %v989 = vld [vmem:[%s250 + $0x6c] sm:$0xf]
        %v990 = vld [vmem:[%s250 + $0x70] sm:$0xf]
        %v991 = vld [vmem:[%s250 + $0x74] sm:$0x1]
        %v992 = vld [vmem:[%s250 + $0x78] sm:$0xf]
        %v993 = vld [vmem:[%s250 + $0x7c] sm:$0xf]
        %v994 = vld [vmem:[%s250 + $0x80] sm:$0x1]
        %v995 = vld [vmem:[%s250 + $0x84] sm:$0xf]
        %v996 = vld [vmem:[%s250 + $0x88] sm:$0xf]
        %v997 = vld [vmem:[%s250 + $0x8c] sm:$0x1]
        %v998 = vld [vmem:[%s250 + $0x90] sm:$0xf]
        %v999 = vld [vmem:[%s250 + $0x94] sm:$0xf]
        %v1000 = vld [vmem:[%s250 + $0x98] sm:$0x1]
        %v1001 = vld [vmem:[%s250 + $0x9c] sm:$0xf]
        %v1002 = vld [vmem:[%s250 + $0xa0] sm:$0xf]
        %v1003 = vld [vmem:[%s250 + $0xa4] sm:$0x1]
        %v1004 = vld [vmem:[%s250 + $0xa8] sm:$0xf]
        %v1005 = vld [vmem:[%s250 + $0xac] sm:$0xf]
        %v1006 = vld [vmem:[%s250 + $0xb0] sm:$0x1]
        %v1007 = vld [vmem:[%s250 + $0xb4] sm:$0xf]
        %v1008 = vld [vmem:[%s250 + $0xb8] sm:$0xf]
        %v1009 = vld [vmem:[%s250 + $0xbc] sm:$0x1]
        %v1010 = vld [vmem:[%s250 + $0xc0] sm:$0xf]
        %v1011 = vld [vmem:[%s250 + $0xc4] sm:$0xf]
        %v1012 = vld [vmem:[%s250 + $0xc8] sm:$0x1]
        %v1013 = vld [vmem:[%s250 + $0xcc] sm:$0xf]
        %v1014 = vld [vmem:[%s250 + $0xd0] sm:$0xf]
        %v1015 = vld [vmem:[%s250 + $0xd4] sm:$0x1]
        %vm1016 = vsmask.f32 3328
        %vm1017 = vsmask.f32 7440
        %vm1018 = vmor %vm1016, %vm1017
        %v1020 = vshrl.u32 %v962, 16
        %v1022 = vrot.slane %v1020, 4
        %v1023 = vshll.u32 %v962, 16
        %v1025 = vrot.slane %v1023, 5
        %v1026 = vor.u32 %v1022, %v1025
        %v1027 = vrot.slane %v1026, 4
        %v1029 = vshll.u32 %v963, 16
        %v1031 = vrot.slane %v1029, 5
        %v1032 = vsel %vm1018, %v1027, %v1031
        %v1033 = vshrl.u32 %v963, 16
        %v1035 = vrot.slane %v1033, 4
        %v1036 = vor.u32 %v1035, %v1031
        %v1037 = vrot.slane %v1036, 4
        %v1039 = vshll.u32 %v964, 16
        %v1041 = vrot.slane %v1039, 5
        %v1042 = vsel %vm1018, %v1037, %v1041
        %v1044 = vshrl.u32 %v965, 16
        %v1046 = vrot.slane %v1044, 4
        %v1047 = vshll.u32 %v965, 16
        %v1049 = vrot.slane %v1047, 5
        %v1050 = vor.u32 %v1046, %v1049
        %v1051 = vrot.slane %v1050, 4
        %v1053 = vshll.u32 %v966, 16
        %v1055 = vrot.slane %v1053, 5
        %v1056 = vsel %vm1018, %v1051, %v1055
        %v1057 = vshrl.u32 %v966, 16
        %v1059 = vrot.slane %v1057, 4
        %v1060 = vor.u32 %v1059, %v1055
        %v1061 = vrot.slane %v1060, 4
        %v1063 = vshll.u32 %v967, 16
        %v1065 = vrot.slane %v1063, 5
        %v1066 = vsel %vm1018, %v1061, %v1065
        %v1068 = vshrl.u32 %v968, 16
        %v1070 = vrot.slane %v1068, 4
        %v1071 = vshll.u32 %v968, 16
        %v1073 = vrot.slane %v1071, 5
        %v1074 = vor.u32 %v1070, %v1073
        %v1075 = vrot.slane %v1074, 4
        %v1077 = vshll.u32 %v969, 16
        %v1079 = vrot.slane %v1077, 5
        %v1080 = vsel %vm1018, %v1075, %v1079
        %v1081 = vshrl.u32 %v969, 16
        %v1083 = vrot.slane %v1081, 4
        %v1084 = vor.u32 %v1083, %v1079
        %v1085 = vrot.slane %v1084, 4
        %v1087 = vshll.u32 %v970, 16
        %v1089 = vrot.slane %v1087, 5
        %v1090 = vsel %vm1018, %v1085, %v1089
        %v1092 = vshrl.u32 %v971, 16
        %v1094 = vrot.slane %v1092, 4
        %v1095 = vshll.u32 %v971, 16
        %v1097 = vrot.slane %v1095, 5
        %v1098 = vor.u32 %v1094, %v1097
        %v1099 = vrot.slane %v1098, 4
        %v1101 = vshll.u32 %v972, 16
        %v1103 = vrot.slane %v1101, 5
        %v1104 = vsel %vm1018, %v1099, %v1103
        %v1105 = vshrl.u32 %v972, 16
        %v1107 = vrot.slane %v1105, 4
        %v1108 = vor.u32 %v1107, %v1103
        %v1109 = vrot.slane %v1108, 4
        %v1111 = vshll.u32 %v973, 16
        %v1113 = vrot.slane %v1111, 5
        %v1114 = vsel %vm1018, %v1109, %v1113
        %v1116 = vshrl.u32 %v974, 16
        %v1118 = vrot.slane %v1116, 4
        %v1119 = vshll.u32 %v974, 16
        %v1121 = vrot.slane %v1119, 5
        %v1122 = vor.u32 %v1118, %v1121
        %v1123 = vrot.slane %v1122, 4
        %v1125 = vshll.u32 %v975, 16
        %v1127 = vrot.slane %v1125, 5
        %v1128 = vsel %vm1018, %v1123, %v1127
        %v1129 = vshrl.u32 %v975, 16
        %v1131 = vrot.slane %v1129, 4
        %v1132 = vor.u32 %v1131, %v1127
        %v1133 = vrot.slane %v1132, 4
        %v1135 = vshll.u32 %v976, 16
        %v1137 = vrot.slane %v1135, 5
        %v1138 = vsel %vm1018, %v1133, %v1137
        %v1140 = vshrl.u32 %v977, 16
        %v1142 = vrot.slane %v1140, 4
        %v1143 = vshll.u32 %v977, 16
        %v1145 = vrot.slane %v1143, 5
        %v1146 = vor.u32 %v1142, %v1145
        %v1147 = vrot.slane %v1146, 4
        %v1149 = vshll.u32 %v978, 16
        %v1151 = vrot.slane %v1149, 5
        %v1152 = vsel %vm1018, %v1147, %v1151
        %v1153 = vshrl.u32 %v978, 16
        %v1155 = vrot.slane %v1153, 4
        %v1156 = vor.u32 %v1155, %v1151
        %v1157 = vrot.slane %v1156, 4
        %v1159 = vshll.u32 %v979, 16
        %v1161 = vrot.slane %v1159, 5
        %v1162 = vsel %vm1018, %v1157, %v1161
        %v1164 = vshrl.u32 %v980, 16
        %v1166 = vrot.slane %v1164, 4
        %v1167 = vshll.u32 %v980, 16
        %v1169 = vrot.slane %v1167, 5
        %v1170 = vor.u32 %v1166, %v1169
        %v1171 = vrot.slane %v1170, 4
        %v1173 = vshll.u32 %v981, 16
        %v1175 = vrot.slane %v1173, 5
        %v1176 = vsel %vm1018, %v1171, %v1175
        %v1177 = vshrl.u32 %v981, 16
        %v1179 = vrot.slane %v1177, 4
        %v1180 = vor.u32 %v1179, %v1175
        %v1181 = vrot.slane %v1180, 4
        %v1183 = vshll.u32 %v982, 16
        %v1185 = vrot.slane %v1183, 5
        %v1186 = vsel %vm1018, %v1181, %v1185
        %v1188 = vshrl.u32 %v983, 16
        %v1190 = vrot.slane %v1188, 4
        %v1191 = vshll.u32 %v983, 16
        %v1193 = vrot.slane %v1191, 5
        %v1194 = vor.u32 %v1190, %v1193
        %v1195 = vrot.slane %v1194, 4
        %v1197 = vshll.u32 %v984, 16
        %v1199 = vrot.slane %v1197, 5
        %v1200 = vsel %vm1018, %v1195, %v1199
        %v1201 = vshrl.u32 %v984, 16
        %v1203 = vrot.slane %v1201, 4
        %v1204 = vor.u32 %v1203, %v1199
        %v1205 = vrot.slane %v1204, 4
        %v1207 = vshll.u32 %v985, 16
        %v1209 = vrot.slane %v1207, 5
        %v1210 = vsel %vm1018, %v1205, %v1209
        %v1212 = vshrl.u32 %v986, 16
        %v1214 = vrot.slane %v1212, 4
        %v1215 = vshll.u32 %v986, 16
        %v1217 = vrot.slane %v1215, 5
        %v1218 = vor.u32 %v1214, %v1217
        %v1219 = vrot.slane %v1218, 4
        %v1221 = vshll.u32 %v987, 16
        %v1223 = vrot.slane %v1221, 5
        %v1224 = vsel %vm1018, %v1219, %v1223
        %v1225 = vshrl.u32 %v987, 16
        %v1227 = vrot.slane %v1225, 4
        %v1228 = vor.u32 %v1227, %v1223
        %v1229 = vrot.slane %v1228, 4
        %v1231 = vshll.u32 %v988, 16
        %v1233 = vrot.slane %v1231, 5
        %v1234 = vsel %vm1018, %v1229, %v1233
        %v1236 = vshrl.u32 %v989, 16
        %v1238 = vrot.slane %v1236, 4
        %v1239 = vshll.u32 %v989, 16
        %v1241 = vrot.slane %v1239, 5
        %v1242 = vor.u32 %v1238, %v1241
        %v1243 = vrot.slane %v1242, 4
        %v1245 = vshll.u32 %v990, 16
        %v1247 = vrot.slane %v1245, 5
        %v1248 = vsel %vm1018, %v1243, %v1247
        %v1249 = vshrl.u32 %v990, 16
        %v1251 = vrot.slane %v1249, 4
        %v1252 = vor.u32 %v1251, %v1247
        %v1253 = vrot.slane %v1252, 4
        %v1255 = vshll.u32 %v991, 16
        %v1257 = vrot.slane %v1255, 5
        %v1258 = vsel %vm1018, %v1253, %v1257
        %v1260 = vshrl.u32 %v992, 16
        %v1262 = vrot.slane %v1260, 4
        %v1263 = vshll.u32 %v992, 16
        %v1265 = vrot.slane %v1263, 5
        %v1266 = vor.u32 %v1262, %v1265
        %v1267 = vrot.slane %v1266, 4
        %v1269 = vshll.u32 %v993, 16
        %v1271 = vrot.slane %v1269, 5
        %v1272 = vsel %vm1018, %v1267, %v1271
        %v1273 = vshrl.u32 %v993, 16
        %v1275 = vrot.slane %v1273, 4
        %v1276 = vor.u32 %v1275, %v1271
        %v1277 = vrot.slane %v1276, 4
        %v1279 = vshll.u32 %v994, 16
        %v1281 = vrot.slane %v1279, 5
        %v1282 = vsel %vm1018, %v1277, %v1281
        %v1284 = vshrl.u32 %v995, 16
        %v1286 = vrot.slane %v1284, 4
        %v1287 = vshll.u32 %v995, 16
        %v1289 = vrot.slane %v1287, 5
        %v1290 = vor.u32 %v1286, %v1289
        %v1291 = vrot.slane %v1290, 4
        %v1293 = vshll.u32 %v996, 16
        %v1295 = vrot.slane %v1293, 5
        %v1296 = vsel %vm1018, %v1291, %v1295
        %v1297 = vshrl.u32 %v996, 16
        %v1299 = vrot.slane %v1297, 4
        %v1300 = vor.u32 %v1299, %v1295
        %v1301 = vrot.slane %v1300, 4
        %v1303 = vshll.u32 %v997, 16
        %v1305 = vrot.slane %v1303, 5
        %v1306 = vsel %vm1018, %v1301, %v1305
        %v1308 = vshrl.u32 %v998, 16
        %v1310 = vrot.slane %v1308, 4
        %v1311 = vshll.u32 %v998, 16
        %v1313 = vrot.slane %v1311, 5
        %v1314 = vor.u32 %v1310, %v1313
        %v1315 = vrot.slane %v1314, 4
        %v1317 = vshll.u32 %v999, 16
        %v1319 = vrot.slane %v1317, 5
        %v1320 = vsel %vm1018, %v1315, %v1319
        %v1321 = vshrl.u32 %v999, 16
        %v1323 = vrot.slane %v1321, 4
        %v1324 = vor.u32 %v1323, %v1319
        %v1325 = vrot.slane %v1324, 4
        %v1327 = vshll.u32 %v1000, 16
        %v1329 = vrot.slane %v1327, 5
        %v1330 = vsel %vm1018, %v1325, %v1329
        %v1332 = vshrl.u32 %v1001, 16
        %v1334 = vrot.slane %v1332, 4
        %v1335 = vshll.u32 %v1001, 16
        %v1337 = vrot.slane %v1335, 5
        %v1338 = vor.u32 %v1334, %v1337
        %v1339 = vrot.slane %v1338, 4
        %v1341 = vshll.u32 %v1002, 16
        %v1343 = vrot.slane %v1341, 5
        %v1344 = vsel %vm1018, %v1339, %v1343
        %v1345 = vshrl.u32 %v1002, 16
        %v1347 = vrot.slane %v1345, 4
        %v1348 = vor.u32 %v1347, %v1343
        %v1349 = vrot.slane %v1348, 4
        %v1351 = vshll.u32 %v1003, 16
        %v1353 = vrot.slane %v1351, 5
        %v1354 = vsel %vm1018, %v1349, %v1353
        %v1356 = vshrl.u32 %v1004, 16
        %v1358 = vrot.slane %v1356, 4
        %v1359 = vshll.u32 %v1004, 16
        %v1361 = vrot.slane %v1359, 5
        %v1362 = vor.u32 %v1358, %v1361
        %v1363 = vrot.slane %v1362, 4
        %v1365 = vshll.u32 %v1005, 16
        %v1367 = vrot.slane %v1365, 5
        %v1368 = vsel %vm1018, %v1363, %v1367
        %v1369 = vshrl.u32 %v1005, 16
        %v1371 = vrot.slane %v1369, 4
        %v1372 = vor.u32 %v1371, %v1367
        %v1373 = vrot.slane %v1372, 4
        %v1375 = vshll.u32 %v1006, 16
        %v1377 = vrot.slane %v1375, 5
        %v1378 = vsel %vm1018, %v1373, %v1377
        %v1380 = vshrl.u32 %v1007, 16
        %v1382 = vrot.slane %v1380, 4
        %v1383 = vshll.u32 %v1007, 16
        %v1385 = vrot.slane %v1383, 5
        %v1386 = vor.u32 %v1382, %v1385
        %v1387 = vrot.slane %v1386, 4
        %v1389 = vshll.u32 %v1008, 16
        %v1391 = vrot.slane %v1389, 5
        %v1392 = vsel %vm1018, %v1387, %v1391
        %v1393 = vshrl.u32 %v1008, 16
        %v1395 = vrot.slane %v1393, 4
        %v1396 = vor.u32 %v1395, %v1391
        %v1397 = vrot.slane %v1396, 4
        %v1399 = vshll.u32 %v1009, 16
        %v1401 = vrot.slane %v1399, 5
        %v1402 = vsel %vm1018, %v1397, %v1401
        %s1403 = scalar_lea.vmem %s1, 2
        %v1404 = vld [vmem:[%s1403] sm:$0x3]
        %v1405 = vunpack.c.l.b16 %v1032
        %v1406 = vunpack.c.l.b16 %v1042
        %v1407 = vunpack.c.l.b16 %v1056
        %v1408 = vunpack.c.l.b16 %v1066
        %v1409 = vunpack.c.l.b16 %v1080
        %v1410 = vunpack.c.l.b16 %v1090
        %v1411 = vunpack.c.l.b16 %v1104
        %v1412 = vunpack.c.l.b16 %v1114
        %v1413 = vunpack.c.l.b16 %v1128
        %v1414 = vunpack.c.l.b16 %v1138
        %v1415 = vunpack.c.l.b16 %v1152
        %v1416 = vunpack.c.l.b16 %v1162
        %v1417 = vunpack.c.l.b16 %v1176
        %v1418 = vunpack.c.l.b16 %v1186
        %v1419 = vunpack.c.l.b16 %v1200
        %v1420 = vunpack.c.l.b16 %v1210
        %v1421 = vunpack.c.l.b16 %v1224
        %v1422 = vunpack.c.l.b16 %v1234
        %v1423 = vunpack.c.l.b16 %v1248
        %v1424 = vunpack.c.l.b16 %v1258
        %v1425 = vunpack.c.l.b16 %v1272
        %v1426 = vunpack.c.l.b16 %v1282
        %v1427 = vunpack.c.l.b16 %v1296
        %v1428 = vunpack.c.l.b16 %v1306
        %v1429 = vunpack.c.l.b16 %v1320
        %v1430 = vunpack.c.l.b16 %v1330
        %v1431 = vunpack.c.l.b16 %v1344
        %v1432 = vunpack.c.l.b16 %v1354
        %v1433 = vunpack.c.l.b16 %v1368
        %v1434 = vunpack.c.l.b16 %v1378
        %v1435 = vunpack.c.l.b16 %v1392
        %v1436 = vunpack.c.l.b16 %v1402
        %v1437 = vpack.c.b16 %v1406, %v1405
        %v1438 = vpack.c.b16 %v1408, %v1407
        %v1439 = vpack.c.b16 %v1410, %v1409
        %v1440 = vpack.c.b16 %v1412, %v1411
        %v1441 = vpack.c.b16 %v1414, %v1413
        %v1442 = vpack.c.b16 %v1416, %v1415
        %v1443 = vpack.c.b16 %v1418, %v1417
        %v1444 = vpack.c.b16 %v1420, %v1419
        %v1445 = vpack.c.b16 %v1422, %v1421
        %v1446 = vpack.c.b16 %v1424, %v1423
        %v1447 = vpack.c.b16 %v1426, %v1425
        %v1448 = vpack.c.b16 %v1428, %v1427
        %v1449 = vpack.c.b16 %v1430, %v1429
        %v1450 = vpack.c.b16 %v1432, %v1431
        %v1451 = vpack.c.b16 %v1434, %v1433
        %v1452 = vpack.c.b16 %v1436, %v1435
        %v1454 = vsel %vm370, %v1437, 0
        %v1457 = vsel %vm370, %v1438, 0
        %v1460 = vsel %vm370, %v1439, 0
        %v1463 = vsel %vm370, %v1440, 0
        %v1466 = vsel %vm370, %v1441, 0
        %v1469 = vsel %vm370, %v1442, 0
        %v1472 = vsel %vm370, %v1443, 0
        %v1475 = vsel %vm370, %v1444, 0
        %v1478 = vsel %vm370, %v1445, 0
        %v1481 = vsel %vm370, %v1446, 0
        %v1484 = vsel %vm370, %v1447, 0
        %v1487 = vsel %vm370, %v1448, 0
        %v1490 = vsel %vm370, %v1449, 0
        %v1493 = vsel %vm370, %v1450, 0
        %v1496 = vsel %vm370, %v1451, 0
        %v1499 = vsel %vm370, %v1452, 0
        %v1502 = vsel %vm419, %v1404, 0
        %1504 = vmatprep.subr.bf16.mxu0 0
        %1505 = vmatpush1.bf16.msra.mxu0 %v1502
        %1506 = vmatprep.subr.bf16.mxu0 0
        %1507 = vmatpush1.bf16.msra.mxu0 0
        %1508 = vmatprep.subr.bf16.mxu0 0
        %1509 = vmatpush1.bf16.msra.mxu0 0
        %1510 = vmatprep.subr.bf16.mxu0 0
        %1511 = vmatpush1.bf16.msra.mxu0 0
        %1512 = vmatprep.subr.bf16.mxu0 0
        %1513 = vmatpush1.bf16.msra.mxu0 0
        %1514 = vmatprep.subr.bf16.mxu0 0
        %1515 = vmatpush1.bf16.msra.mxu0 0
        %1516 = vmatprep.subr.bf16.mxu0 0
        %1517 = vmatpush1.bf16.msra.mxu0 0
        %1518 = vmatprep.subr.bf16.mxu0 0
        %1519 = vmatpush1.bf16.msra.mxu0 0
        %1520 = vmatprep.subr.bf16.mxu0 0
        %1521 = vmatpush1.bf16.msra.mxu0 0
        %1522 = vmatprep.subr.bf16.mxu0 0
        %1523 = vmatpush1.bf16.msra.mxu0 0
        %1524 = vmatprep.subr.bf16.mxu0 0
        %1525 = vmatpush1.bf16.msra.mxu0 0
        %1526 = vmatprep.subr.bf16.mxu0 0
        %1527 = vmatpush1.bf16.msra.mxu0 0
        %1528 = vmatprep.subr.bf16.mxu0 0
        %1529 = vmatpush1.bf16.msra.mxu0 0
        %1530 = vmatprep.subr.bf16.mxu0 0
        %1531 = vmatpush1.bf16.msra.mxu0 0
        %1532 = vmatprep.subr.bf16.mxu0 0
        %1533 = vmatpush1.bf16.msra.mxu0 0
        %1534 = vmatprep.subr.bf16.mxu0 0
        %1535 = vmatpush1.bf16.msra.mxu0 0
        %1536 = vmatprep.mubr.bf16.mxu0 0
        %1537 = vmatmul.mubr.bf16.gmra.mrb[0].mxu0 %v1454
        %v1538 = vpop.f32.mrb[0].mxu0
        %v1539 = vadd.f32 0.0, %v1538
        %v1540 = vpop.f32.mrb[0].mxu0
        %v1541 = vpop.f32.mrb[0].mxu0
        %v1542 = vadd.f32 0.0, %v1541
        %v1543 = vpop.f32.mrb[0].mxu0
        %1544 = vmatprep.mubr.bf16.mxu0 0
        %1545 = vmatmul.mubr.bf16.gmra.mrb[0].mxu0 %v1457
        %v1546 = vpop.f32.mrb[0].mxu0
        %v1547 = vadd.f32 0.0, %v1546
        %v1548 = vpop.f32.mrb[0].mxu0
        %v1549 = vpop.f32.mrb[0].mxu0
        %v1550 = vadd.f32 0.0, %v1549
        %v1551 = vpop.f32.mrb[0].mxu0
        %1552 = vmatprep.mubr.bf16.mxu0 0
        %1553 = vmatmul.mubr.bf16.gmra.mrb[0].mxu0 %v1460
        %v1554 = vpop.f32.mrb[0].mxu0
        %v1555 = vadd.f32 0.0, %v1554
        %v1556 = vpop.f32.mrb[0].mxu0
        %v1557 = vpop.f32.mrb[0].mxu0
        %v1558 = vadd.f32 0.0, %v1557
        %v1559 = vpop.f32.mrb[0].mxu0
        %1560 = vmatprep.mubr.bf16.mxu0 0
        %1561 = vmatmul.mubr.bf16.gmra.mrb[0].mxu0 %v1463
        %v1562 = vpop.f32.mrb[0].mxu0
        %v1563 = vadd.f32 0.0, %v1562
        %v1564 = vpop.f32.mrb[0].mxu0
        %v1565 = vpop.f32.mrb[0].mxu0
        %v1566 = vadd.f32 0.0, %v1565
        %v1567 = vpop.f32.mrb[0].mxu0
        %1568 = vmatprep.mubr.bf16.mxu0 0
        %1569 = vmatmul.mubr.bf16.gmra.mrb[0].mxu0 %v1466
        %v1570 = vpop.f32.mrb[0].mxu0
        %v1571 = vadd.f32 0.0, %v1570
        %v1572 = vpop.f32.mrb[0].mxu0
        %v1573 = vpop.f32.mrb[0].mxu0
        %v1574 = vadd.f32 0.0, %v1573
        %v1575 = vpop.f32.mrb[0].mxu0
        %1576 = vmatprep.mubr.bf16.mxu0 0
        %1577 = vmatmul.mubr.bf16.gmra.mrb[0].mxu0 %v1469
        %v1578 = vpop.f32.mrb[0].mxu0
        %v1579 = vadd.f32 0.0, %v1578
        %v1580 = vpop.f32.mrb[0].mxu0
        %v1581 = vpop.f32.mrb[0].mxu0
        %v1582 = vadd.f32 0.0, %v1581
        %v1583 = vpop.f32.mrb[0].mxu0
        %1584 = vmatprep.mubr.bf16.mxu0 0
        %1585 = vmatmul.mubr.bf16.gmra.mrb[0].mxu0 %v1472
        %v1586 = vpop.f32.mrb[0].mxu0
        %v1587 = vadd.f32 0.0, %v1586
        %v1588 = vpop.f32.mrb[0].mxu0
        %v1589 = vpop.f32.mrb[0].mxu0
        %v1590 = vadd.f32 0.0, %v1589
        %v1591 = vpop.f32.mrb[0].mxu0
        %1592 = vmatprep.mubr.bf16.mxu0 0
        %1593 = vmatmul.mubr.bf16.gmra.mrb[0].mxu0 %v1475
        %v1594 = vpop.f32.mrb[0].mxu0
        %v1595 = vadd.f32 0.0, %v1594
        %v1596 = vpop.f32.mrb[0].mxu0
        %v1597 = vpop.f32.mrb[0].mxu0
        %v1598 = vadd.f32 0.0, %v1597
        %v1599 = vpop.f32.mrb[0].mxu0
        %1600 = vmatprep.mubr.bf16.mxu0 0
        %1601 = vmatmul.mubr.bf16.gmra.mrb[0].mxu0 %v1478
        %v1602 = vpop.f32.mrb[0].mxu0
        %v1603 = vadd.f32 0.0, %v1602
        %v1604 = vpop.f32.mrb[0].mxu0
        %v1605 = vpop.f32.mrb[0].mxu0
        %v1606 = vadd.f32 0.0, %v1605
        %v1607 = vpop.f32.mrb[0].mxu0
        %1608 = vmatprep.mubr.bf16.mxu0 0
        %1609 = vmatmul.mubr.bf16.gmra.mrb[0].mxu0 %v1481
        %v1610 = vpop.f32.mrb[0].mxu0
        %v1611 = vadd.f32 0.0, %v1610
        %v1612 = vpop.f32.mrb[0].mxu0
        %v1613 = vpop.f32.mrb[0].mxu0
        %v1614 = vadd.f32 0.0, %v1613
        %v1615 = vpop.f32.mrb[0].mxu0
        %1616 = vmatprep.mubr.bf16.mxu0 0
        %1617 = vmatmul.mubr.bf16.gmra.mrb[0].mxu0 %v1484
        %v1618 = vpop.f32.mrb[0].mxu0
        %v1619 = vadd.f32 0.0, %v1618
        %v1620 = vpop.f32.mrb[0].mxu0
        %v1621 = vpop.f32.mrb[0].mxu0
        %v1622 = vadd.f32 0.0, %v1621
        %v1623 = vpop.f32.mrb[0].mxu0
        %1624 = vmatprep.mubr.bf16.mxu0 0
        %1625 = vmatmul.mubr.bf16.gmra.mrb[0].mxu0 %v1487
        %v1626 = vpop.f32.mrb[0].mxu0
        %v1627 = vadd.f32 0.0, %v1626
        %v1628 = vpop.f32.mrb[0].mxu0
        %v1629 = vpop.f32.mrb[0].mxu0
        %v1630 = vadd.f32 0.0, %v1629
        %v1631 = vpop.f32.mrb[0].mxu0
        %1632 = vmatprep.mubr.bf16.mxu0 0
        %1633 = vmatmul.mubr.bf16.gmra.mrb[0].mxu0 %v1490
        %v1634 = vpop.f32.mrb[0].mxu0
        %v1635 = vadd.f32 0.0, %v1634
        %v1636 = vpop.f32.mrb[0].mxu0
        %v1637 = vpop.f32.mrb[0].mxu0
        %v1638 = vadd.f32 0.0, %v1637
        %v1639 = vpop.f32.mrb[0].mxu0
        %1640 = vmatprep.mubr.bf16.mxu0 0
        %1641 = vmatmul.mubr.bf16.gmra.mrb[0].mxu0 %v1493
        %v1642 = vpop.f32.mrb[0].mxu0
        %v1643 = vadd.f32 0.0, %v1642
        %v1644 = vpop.f32.mrb[0].mxu0
        %v1645 = vpop.f32.mrb[0].mxu0
        %v1646 = vadd.f32 0.0, %v1645
        %v1647 = vpop.f32.mrb[0].mxu0
        %1648 = vmatprep.mubr.bf16.mxu0 0
        %1649 = vmatmul.mubr.bf16.gmra.mrb[0].mxu0 %v1496
        %v1650 = vpop.f32.mrb[0].mxu0
        %v1651 = vadd.f32 0.0, %v1650
        %v1652 = vpop.f32.mrb[0].mxu0
        %v1653 = vpop.f32.mrb[0].mxu0
        %v1654 = vadd.f32 0.0, %v1653
        %v1655 = vpop.f32.mrb[0].mxu0
        %1656 = vmatprep.mubr.bf16.mxu0 0
        %1657 = vmatmul.mubr.bf16.gmra.mrb[0].mxu0 %v1499
        %v1658 = vpop.f32.mrb[0].mxu0
        %v1659 = vadd.f32 0.0, %v1658
        %v1660 = vpop.f32.mrb[0].mxu0
        %v1661 = vpop.f32.mrb[0].mxu0
        %v1662 = vadd.f32 0.0, %v1661
        %v1663 = vpop.f32.mrb[0].mxu0
        %1664 = vdwg.mxu0
        %v1665 = vadd.f32 %v930, %v1539
        %v1666 = vadd.f32 %v931, %v1542
        %v1667 = vadd.f32 %v932, %v1547
        %v1668 = vadd.f32 %v933, %v1550
        %v1669 = vadd.f32 %v934, %v1555
        %v1670 = vadd.f32 %v935, %v1558
        %v1671 = vadd.f32 %v936, %v1563
        %v1672 = vadd.f32 %v937, %v1566
        %v1673 = vadd.f32 %v938, %v1571
        %v1674 = vadd.f32 %v939, %v1574
        %v1675 = vadd.f32 %v940, %v1579
        %v1676 = vadd.f32 %v941, %v1582
        %v1677 = vadd.f32 %v942, %v1587
        %v1678 = vadd.f32 %v943, %v1590
        %v1679 = vadd.f32 %v944, %v1595
        %v1680 = vadd.f32 %v945, %v1598
        %v1681 = vadd.f32 %v946, %v1603
        %v1682 = vadd.f32 %v947, %v1606
        %v1683 = vadd.f32 %v948, %v1611
        %v1684 = vadd.f32 %v949, %v1614
        %v1685 = vadd.f32 %v950, %v1619
        %v1686 = vadd.f32 %v951, %v1622
        %v1687 = vadd.f32 %v952, %v1627
        %v1688 = vadd.f32 %v953, %v1630
        %v1689 = vadd.f32 %v954, %v1635
        %v1690 = vadd.f32 %v955, %v1638
        %v1691 = vadd.f32 %v956, %v1643
        %v1692 = vadd.f32 %v957, %v1646
        %v1693 = vadd.f32 %v958, %v1651
        %v1694 = vadd.f32 %v959, %v1654
        %v1695 = vadd.f32 %v960, %v1659
        %v1696 = vadd.f32 %v961, %v1662
        %v1698 = vshrl.u32 %v1010, 16
        %v1700 = vrot.slane %v1698, 4
        %v1701 = vshll.u32 %v1010, 16
        %v1703 = vrot.slane %v1701, 5
        %v1704 = vor.u32 %v1700, %v1703
        %v1705 = vrot.slane %v1704, 4
        %v1707 = vshll.u32 %v1011, 16
        %v1709 = vrot.slane %v1707, 5
        %v1710 = vsel %vm1018, %v1705, %v1709
        %v1711 = vshrl.u32 %v1011, 16
        %v1713 = vrot.slane %v1711, 4
        %v1714 = vor.u32 %v1713, %v1709
        %v1715 = vrot.slane %v1714, 4
        %v1717 = vshll.u32 %v1012, 16
        %v1719 = vrot.slane %v1717, 5
        %v1720 = vsel %vm1018, %v1715, %v1719
        %s1721 = scalar_lea.vmem %s1, 8
        %v1722 = vld [vmem:[%s1721] sm:$0x3]
        %v1723 = vunpack.c.l.b16 %v1710
        %v1724 = vunpack.c.l.b16 %v1720
        %v1725 = vpack.c.b16 %v1724, %v1723
        %v1727 = vsel %vm370, %v1725, 0
        %v1730 = vsel %vm419, %v1722, 0
        %1732 = vmatprep.subr.bf16.mxu0 0
        %1733 = vmatpush1.bf16.msra.mxu0 %v1730
        %1734 = vmatprep.subr.bf16.mxu0 0
        %1735 = vmatpush1.bf16.msra.mxu0 0
        %1736 = vmatprep.subr.bf16.mxu0 0
        %1737 = vmatpush1.bf16.msra.mxu0 0
        %1738 = vmatprep.subr.bf16.mxu0 0
        %1739 = vmatpush1.bf16.msra.mxu0 0
        %1740 = vmatprep.subr.bf16.mxu0 0
        %1741 = vmatpush1.bf16.msra.mxu0 0
        %1742 = vmatprep.subr.bf16.mxu0 0
        %1743 = vmatpush1.bf16.msra.mxu0 0
        %1744 = vmatprep.subr.bf16.mxu0 0
        %1745 = vmatpush1.bf16.msra.mxu0 0
        %1746 = vmatprep.subr.bf16.mxu0 0
        %1747 = vmatpush1.bf16.msra.mxu0 0
        %1748 = vmatprep.subr.bf16.mxu0 0
        %1749 = vmatpush1.bf16.msra.mxu0 0
        %1750 = vmatprep.subr.bf16.mxu0 0
        %1751 = vmatpush1.bf16.msra.mxu0 0
        %1752 = vmatprep.subr.bf16.mxu0 0
        %1753 = vmatpush1.bf16.msra.mxu0 0
        %1754 = vmatprep.subr.bf16.mxu0 0
        %1755 = vmatpush1.bf16.msra.mxu0 0
        %1756 = vmatprep.subr.bf16.mxu0 0
        %1757 = vmatpush1.bf16.msra.mxu0 0
        %1758 = vmatprep.subr.bf16.mxu0 0
        %1759 = vmatpush1.bf16.msra.mxu0 0
        %1760 = vmatprep.subr.bf16.mxu0 0
        %1761 = vmatpush1.bf16.msra.mxu0 0
        %1762 = vmatprep.subr.bf16.mxu0 0
        %1763 = vmatpush1.bf16.msra.mxu0 0
        %1764 = vmatprep.mubr.bf16.mxu0 0
        %1765 = vmatmul.mubr.bf16.gmra.mrb[0].mxu0 %v1457
        %v1766 = vpop.f32.mrb[0].mxu0
        %v1767 = vadd.f32 0.0, %v1766
        %v1768 = vpop.f32.mrb[0].mxu0
        %v1769 = vpop.f32.mrb[0].mxu0
        %v1770 = vadd.f32 0.0, %v1769
        %v1771 = vpop.f32.mrb[0].mxu0
        %1772 = vmatprep.mubr.bf16.mxu0 0
        %1773 = vmatmul.mubr.bf16.gmra.mrb[0].mxu0 %v1460
        %v1774 = vpop.f32.mrb[0].mxu0
        %v1775 = vadd.f32 0.0, %v1774
        %v1776 = vpop.f32.mrb[0].mxu0
        %v1777 = vpop.f32.mrb[0].mxu0
        %v1778 = vadd.f32 0.0, %v1777
        %v1779 = vpop.f32.mrb[0].mxu0
        %1780 = vmatprep.mubr.bf16.mxu0 0
        %1781 = vmatmul.mubr.bf16.gmra.mrb[0].mxu0 %v1463
        %v1782 = vpop.f32.mrb[0].mxu0
        %v1783 = vadd.f32 0.0, %v1782
        %v1784 = vpop.f32.mrb[0].mxu0
        %v1785 = vpop.f32.mrb[0].mxu0
        %v1786 = vadd.f32 0.0, %v1785
        %v1787 = vpop.f32.mrb[0].mxu0
        %1788 = vmatprep.mubr.bf16.mxu0 0
        %1789 = vmatmul.mubr.bf16.gmra.mrb[0].mxu0 %v1466
        %v1790 = vpop.f32.mrb[0].mxu0
        %v1791 = vadd.f32 0.0, %v1790
        %v1792 = vpop.f32.mrb[0].mxu0
        %v1793 = vpop.f32.mrb[0].mxu0
        %v1794 = vadd.f32 0.0, %v1793
        %v1795 = vpop.f32.mrb[0].mxu0
        %1796 = vmatprep.mubr.bf16.mxu0 0
        %1797 = vmatmul.mubr.bf16.gmra.mrb[0].mxu0 %v1469
        %v1798 = vpop.f32.mrb[0].mxu0
        %v1799 = vadd.f32 0.0, %v1798
        %v1800 = vpop.f32.mrb[0].mxu0
        %v1801 = vpop.f32.mrb[0].mxu0
        %v1802 = vadd.f32 0.0, %v1801
        %v1803 = vpop.f32.mrb[0].mxu0
        %1804 = vmatprep.mubr.bf16.mxu0 0
        %1805 = vmatmul.mubr.bf16.gmra.mrb[0].mxu0 %v1472
        %v1806 = vpop.f32.mrb[0].mxu0
        %v1807 = vadd.f32 0.0, %v1806
        %v1808 = vpop.f32.mrb[0].mxu0
        %v1809 = vpop.f32.mrb[0].mxu0
        %v1810 = vadd.f32 0.0, %v1809
        %v1811 = vpop.f32.mrb[0].mxu0
        %1812 = vmatprep.mubr.bf16.mxu0 0
        %1813 = vmatmul.mubr.bf16.gmra.mrb[0].mxu0 %v1475
        %v1814 = vpop.f32.mrb[0].mxu0
        %v1815 = vadd.f32 0.0, %v1814
        %v1816 = vpop.f32.mrb[0].mxu0
        %v1817 = vpop.f32.mrb[0].mxu0
        %v1818 = vadd.f32 0.0, %v1817
        %v1819 = vpop.f32.mrb[0].mxu0
        %1820 = vmatprep.mubr.bf16.mxu0 0
        %1821 = vmatmul.mubr.bf16.gmra.mrb[0].mxu0 %v1478
        %v1822 = vpop.f32.mrb[0].mxu0
        %v1823 = vadd.f32 0.0, %v1822
        %v1824 = vpop.f32.mrb[0].mxu0
        %v1825 = vpop.f32.mrb[0].mxu0
        %v1826 = vadd.f32 0.0, %v1825
        %v1827 = vpop.f32.mrb[0].mxu0
        %1828 = vmatprep.mubr.bf16.mxu0 0
        %1829 = vmatmul.mubr.bf16.gmra.mrb[0].mxu0 %v1481
        %v1830 = vpop.f32.mrb[0].mxu0
        %v1831 = vadd.f32 0.0, %v1830
        %v1832 = vpop.f32.mrb[0].mxu0
        %v1833 = vpop.f32.mrb[0].mxu0
        %v1834 = vadd.f32 0.0, %v1833
        %v1835 = vpop.f32.mrb[0].mxu0
        %1836 = vmatprep.mubr.bf16.mxu0 0
        %1837 = vmatmul.mubr.bf16.gmra.mrb[0].mxu0 %v1484
        %v1838 = vpop.f32.mrb[0].mxu0
        %v1839 = vadd.f32 0.0, %v1838
        %v1840 = vpop.f32.mrb[0].mxu0
        %v1841 = vpop.f32.mrb[0].mxu0
        %v1842 = vadd.f32 0.0, %v1841
        %v1843 = vpop.f32.mrb[0].mxu0
        %1844 = vmatprep.mubr.bf16.mxu0 0
        %1845 = vmatmul.mubr.bf16.gmra.mrb[0].mxu0 %v1487
        %v1846 = vpop.f32.mrb[0].mxu0
        %v1847 = vadd.f32 0.0, %v1846
        %v1848 = vpop.f32.mrb[0].mxu0
        %v1849 = vpop.f32.mrb[0].mxu0
        %v1850 = vadd.f32 0.0, %v1849
        %v1851 = vpop.f32.mrb[0].mxu0
        %1852 = vmatprep.mubr.bf16.mxu0 0
        %1853 = vmatmul.mubr.bf16.gmra.mrb[0].mxu0 %v1490
        %v1854 = vpop.f32.mrb[0].mxu0
        %v1855 = vadd.f32 0.0, %v1854
        %v1856 = vpop.f32.mrb[0].mxu0
        %v1857 = vpop.f32.mrb[0].mxu0
        %v1858 = vadd.f32 0.0, %v1857
        %v1859 = vpop.f32.mrb[0].mxu0
        %1860 = vmatprep.mubr.bf16.mxu0 0
        %1861 = vmatmul.mubr.bf16.gmra.mrb[0].mxu0 %v1493
        %v1862 = vpop.f32.mrb[0].mxu0
        %v1863 = vadd.f32 0.0, %v1862
        %v1864 = vpop.f32.mrb[0].mxu0
        %v1865 = vpop.f32.mrb[0].mxu0
        %v1866 = vadd.f32 0.0, %v1865
        %v1867 = vpop.f32.mrb[0].mxu0
        %1868 = vmatprep.mubr.bf16.mxu0 0
        %1869 = vmatmul.mubr.bf16.gmra.mrb[0].mxu0 %v1496
        %v1870 = vpop.f32.mrb[0].mxu0
        %v1871 = vadd.f32 0.0, %v1870
        %v1872 = vpop.f32.mrb[0].mxu0
        %v1873 = vpop.f32.mrb[0].mxu0
        %v1874 = vadd.f32 0.0, %v1873
        %v1875 = vpop.f32.mrb[0].mxu0
        %1876 = vmatprep.mubr.bf16.mxu0 0
        %1877 = vmatmul.mubr.bf16.gmra.mrb[0].mxu0 %v1499
        %v1878 = vpop.f32.mrb[0].mxu0
        %v1879 = vadd.f32 0.0, %v1878
        %v1880 = vpop.f32.mrb[0].mxu0
        %v1881 = vpop.f32.mrb[0].mxu0
        %v1882 = vadd.f32 0.0, %v1881
        %v1883 = vpop.f32.mrb[0].mxu0
        %1884 = vmatprep.mubr.bf16.mxu0 0
        %1885 = vmatmul.mubr.bf16.gmra.mrb[0].mxu0 %v1727
        %v1886 = vpop.f32.mrb[0].mxu0
        %v1887 = vadd.f32 0.0, %v1886
        %v1888 = vpop.f32.mrb[0].mxu0
        %v1889 = vpop.f32.mrb[0].mxu0
        %v1890 = vadd.f32 0.0, %v1889
        %v1891 = vpop.f32.mrb[0].mxu0
        %1892 = vdwg.mxu0
        %v1893 = vadd.f32 %v1665, %v1767
        %v1894 = vadd.f32 %v1666, %v1770
        %v1895 = vadd.f32 %v1667, %v1775
        %v1896 = vadd.f32 %v1668, %v1778
        %v1897 = vadd.f32 %v1669, %v1783
        %v1898 = vadd.f32 %v1670, %v1786
        %v1899 = vadd.f32 %v1671, %v1791
        %v1900 = vadd.f32 %v1672, %v1794
        %v1901 = vadd.f32 %v1673, %v1799
        %v1902 = vadd.f32 %v1674, %v1802
        %v1903 = vadd.f32 %v1675, %v1807
        %v1904 = vadd.f32 %v1676, %v1810
        %v1905 = vadd.f32 %v1677, %v1815
        %v1906 = vadd.f32 %v1678, %v1818
        %v1907 = vadd.f32 %v1679, %v1823
        %v1908 = vadd.f32 %v1680, %v1826
        %v1909 = vadd.f32 %v1681, %v1831
        %v1910 = vadd.f32 %v1682, %v1834
        %v1911 = vadd.f32 %v1683, %v1839
        %v1912 = vadd.f32 %v1684, %v1842
        %v1913 = vadd.f32 %v1685, %v1847
        %v1914 = vadd.f32 %v1686, %v1850
        %v1915 = vadd.f32 %v1687, %v1855
        %v1916 = vadd.f32 %v1688, %v1858
        %v1917 = vadd.f32 %v1689, %v1863
        %v1918 = vadd.f32 %v1690, %v1866
        %v1919 = vadd.f32 %v1691, %v1871
        %v1920 = vadd.f32 %v1692, %v1874
        %v1921 = vadd.f32 %v1693, %v1879
        %v1922 = vadd.f32 %v1694, %v1882
        %v1923 = vadd.f32 %v1695, %v1887
        %v1924 = vadd.f32 %v1696, %v1890
        %v1926 = vshrl.u32 %v1013, 16
        %v1928 = vrot.slane %v1926, 4
        %v1929 = vshll.u32 %v1013, 16
        %v1931 = vrot.slane %v1929, 5
        %v1932 = vor.u32 %v1928, %v1931
        %v1933 = vrot.slane %v1932, 4
        %v1935 = vshll.u32 %v1014, 16
        %v1937 = vrot.slane %v1935, 5
        %v1938 = vsel %vm1018, %v1933, %v1937
        %v1939 = vshrl.u32 %v1014, 16
        %v1941 = vrot.slane %v1939, 4
        %v1942 = vor.u32 %v1941, %v1937
        %v1943 = vrot.slane %v1942, 4
        %v1945 = vshll.u32 %v1015, 16
        %v1947 = vrot.slane %v1945, 5
        %v1948 = vsel %vm1018, %v1943, %v1947
        %s1949 = scalar_lea.vmem %s1, 14
        %v1950 = vld [vmem:[%s1949] sm:$0x3]
        %v1951 = vunpack.c.l.b16 %v1938
        %v1952 = vunpack.c.l.b16 %v1948
        %v1953 = vpack.c.b16 %v1952, %v1951
        %v1955 = vsel %vm370, %v1953, 0
        %v1958 = vsel %vm419, %v1950, 0
        %1960 = vmatprep.subr.bf16.mxu0 0
        %1961 = vmatpush1.bf16.msra.mxu0 %v1958
        %1962 = vmatprep.subr.bf16.mxu0 0
        %1963 = vmatpush1.bf16.msra.mxu0 0
        %1964 = vmatprep.subr.bf16.mxu0 0
        %1965 = vmatpush1.bf16.msra.mxu0 0
        %1966 = vmatprep.subr.bf16.mxu0 0
        %1967 = vmatpush1.bf16.msra.mxu0 0
        %1968 = vmatprep.subr.bf16.mxu0 0
        %1969 = vmatpush1.bf16.msra.mxu0 0
        %1970 = vmatprep.subr.bf16.mxu0 0
        %1971 = vmatpush1.bf16.msra.mxu0 0
        %1972 = vmatprep.subr.bf16.mxu0 0
        %1973 = vmatpush1.bf16.msra.mxu0 0
        %1974 = vmatprep.subr.bf16.mxu0 0
        %1975 = vmatpush1.bf16.msra.mxu0 0
        %1976 = vmatprep.subr.bf16.mxu0 0
        %1977 = vmatpush1.bf16.msra.mxu0 0
        %1978 = vmatprep.subr.bf16.mxu0 0
        %1979 = vmatpush1.bf16.msra.mxu0 0
        %1980 = vmatprep.subr.bf16.mxu0 0
        %1981 = vmatpush1.bf16.msra.mxu0 0
        %1982 = vmatprep.subr.bf16.mxu0 0
        %1983 = vmatpush1.bf16.msra.mxu0 0
        %1984 = vmatprep.subr.bf16.mxu0 0
        %1985 = vmatpush1.bf16.msra.mxu0 0
        %1986 = vmatprep.subr.bf16.mxu0 0
        %1987 = vmatpush1.bf16.msra.mxu0 0
        %1988 = vmatprep.subr.bf16.mxu0 0
        %1989 = vmatpush1.bf16.msra.mxu0 0
        %1990 = vmatprep.subr.bf16.mxu0 0
        %1991 = vmatpush1.bf16.msra.mxu0 0
        %1992 = vmatprep.mubr.bf16.mxu0 0
        %1993 = vmatmul.mubr.bf16.gmra.mrb[0].mxu0 %v1460
        %v1994 = vpop.f32.mrb[0].mxu0
        %v1995 = vadd.f32 0.0, %v1994
        %v1996 = vpop.f32.mrb[0].mxu0
        %v1997 = vpop.f32.mrb[0].mxu0
        %v1998 = vadd.f32 0.0, %v1997
        %v1999 = vpop.f32.mrb[0].mxu0
        %2000 = vmatprep.mubr.bf16.mxu0 0
        %2001 = vmatmul.mubr.bf16.gmra.mrb[0].mxu0 %v1463
        %v2002 = vpop.f32.mrb[0].mxu0
        %v2003 = vadd.f32 0.0, %v2002
        %v2004 = vpop.f32.mrb[0].mxu0
        %v2005 = vpop.f32.mrb[0].mxu0
        %v2006 = vadd.f32 0.0, %v2005
        %v2007 = vpop.f32.mrb[0].mxu0
        %2008 = vmatprep.mubr.bf16.mxu0 0
        %2009 = vmatmul.mubr.bf16.gmra.mrb[0].mxu0 %v1466
        %v2010 = vpop.f32.mrb[0].mxu0
        %v2011 = vadd.f32 0.0, %v2010
        %v2012 = vpop.f32.mrb[0].mxu0
        %v2013 = vpop.f32.mrb[0].mxu0
        %v2014 = vadd.f32 0.0, %v2013
        %v2015 = vpop.f32.mrb[0].mxu0
        %2016 = vmatprep.mubr.bf16.mxu0 0
        %2017 = vmatmul.mubr.bf16.gmra.mrb[0].mxu0 %v1469
        %v2018 = vpop.f32.mrb[0].mxu0
        %v2019 = vadd.f32 0.0, %v2018
        %v2020 = vpop.f32.mrb[0].mxu0
        %v2021 = vpop.f32.mrb[0].mxu0
        %v2022 = vadd.f32 0.0, %v2021
        %v2023 = vpop.f32.mrb[0].mxu0
        %2024 = vmatprep.mubr.bf16.mxu0 0
        %2025 = vmatmul.mubr.bf16.gmra.mrb[0].mxu0 %v1472
        %v2026 = vpop.f32.mrb[0].mxu0
        %v2027 = vadd.f32 0.0, %v2026
        %v2028 = vpop.f32.mrb[0].mxu0
        %v2029 = vpop.f32.mrb[0].mxu0
        %v2030 = vadd.f32 0.0, %v2029
        %v2031 = vpop.f32.mrb[0].mxu0
        %2032 = vmatprep.mubr.bf16.mxu0 0
        %2033 = vmatmul.mubr.bf16.gmra.mrb[0].mxu0 %v1475
        %v2034 = vpop.f32.mrb[0].mxu0
        %v2035 = vadd.f32 0.0, %v2034
        %v2036 = vpop.f32.mrb[0].mxu0
        %v2037 = vpop.f32.mrb[0].mxu0
        %v2038 = vadd.f32 0.0, %v2037
        %v2039 = vpop.f32.mrb[0].mxu0
        %2040 = vmatprep.mubr.bf16.mxu0 0
        %2041 = vmatmul.mubr.bf16.gmra.mrb[0].mxu0 %v1478
        %v2042 = vpop.f32.mrb[0].mxu0
        %v2043 = vadd.f32 0.0, %v2042
        %v2044 = vpop.f32.mrb[0].mxu0
        %v2045 = vpop.f32.mrb[0].mxu0
        %v2046 = vadd.f32 0.0, %v2045
        %v2047 = vpop.f32.mrb[0].mxu0
        %2048 = vmatprep.mubr.bf16.mxu0 0
        %2049 = vmatmul.mubr.bf16.gmra.mrb[0].mxu0 %v1481
        %v2050 = vpop.f32.mrb[0].mxu0
        %v2051 = vadd.f32 0.0, %v2050
        %v2052 = vpop.f32.mrb[0].mxu0
        %v2053 = vpop.f32.mrb[0].mxu0
        %v2054 = vadd.f32 0.0, %v2053
        %v2055 = vpop.f32.mrb[0].mxu0
        %2056 = vmatprep.mubr.bf16.mxu0 0
        %2057 = vmatmul.mubr.bf16.gmra.mrb[0].mxu0 %v1484
        %v2058 = vpop.f32.mrb[0].mxu0
        %v2059 = vadd.f32 0.0, %v2058
        %v2060 = vpop.f32.mrb[0].mxu0
        %v2061 = vpop.f32.mrb[0].mxu0
        %v2062 = vadd.f32 0.0, %v2061
        %v2063 = vpop.f32.mrb[0].mxu0
        %2064 = vmatprep.mubr.bf16.mxu0 0
        %2065 = vmatmul.mubr.bf16.gmra.mrb[0].mxu0 %v1487
        %v2066 = vpop.f32.mrb[0].mxu0
        %v2067 = vadd.f32 0.0, %v2066
        %v2068 = vpop.f32.mrb[0].mxu0
        %v2069 = vpop.f32.mrb[0].mxu0
        %v2070 = vadd.f32 0.0, %v2069
        %v2071 = vpop.f32.mrb[0].mxu0
        %2072 = vmatprep.mubr.bf16.mxu0 0
        %2073 = vmatmul.mubr.bf16.gmra.mrb[0].mxu0 %v1490
        %v2074 = vpop.f32.mrb[0].mxu0
        %v2075 = vadd.f32 0.0, %v2074
        %v2076 = vpop.f32.mrb[0].mxu0
        %v2077 = vpop.f32.mrb[0].mxu0
        %v2078 = vadd.f32 0.0, %v2077
        %v2079 = vpop.f32.mrb[0].mxu0
        %2080 = vmatprep.mubr.bf16.mxu0 0
        %2081 = vmatmul.mubr.bf16.gmra.mrb[0].mxu0 %v1493
        %v2082 = vpop.f32.mrb[0].mxu0
        %v2083 = vadd.f32 0.0, %v2082
        %v2084 = vpop.f32.mrb[0].mxu0
        %v2085 = vpop.f32.mrb[0].mxu0
        %v2086 = vadd.f32 0.0, %v2085
        %v2087 = vpop.f32.mrb[0].mxu0
        %2088 = vmatprep.mubr.bf16.mxu0 0
        %2089 = vmatmul.mubr.bf16.gmra.mrb[0].mxu0 %v1496
        %v2090 = vpop.f32.mrb[0].mxu0
        %v2091 = vadd.f32 0.0, %v2090
        %v2092 = vpop.f32.mrb[0].mxu0
        %v2093 = vpop.f32.mrb[0].mxu0
        %v2094 = vadd.f32 0.0, %v2093
        %v2095 = vpop.f32.mrb[0].mxu0
        %2096 = vmatprep.mubr.bf16.mxu0 0
        %2097 = vmatmul.mubr.bf16.gmra.mrb[0].mxu0 %v1499
        %v2098 = vpop.f32.mrb[0].mxu0
        %v2099 = vadd.f32 0.0, %v2098
        %v2100 = vpop.f32.mrb[0].mxu0
        %v2101 = vpop.f32.mrb[0].mxu0
        %v2102 = vadd.f32 0.0, %v2101
        %v2103 = vpop.f32.mrb[0].mxu0
        %2104 = vmatprep.mubr.bf16.mxu0 0
        %2105 = vmatmul.mubr.bf16.gmra.mrb[0].mxu0 %v1727
        %v2106 = vpop.f32.mrb[0].mxu0
        %v2107 = vadd.f32 0.0, %v2106
        %v2108 = vpop.f32.mrb[0].mxu0
        %v2109 = vpop.f32.mrb[0].mxu0
        %v2110 = vadd.f32 0.0, %v2109
        %v2111 = vpop.f32.mrb[0].mxu0
        %2112 = vmatprep.mubr.bf16.mxu0 0
        %2113 = vmatmul.mubr.bf16.gmra.mrb[0].mxu0 %v1955
        %v2114 = vpop.f32.mrb[0].mxu0
        %v2115 = vadd.f32 0.0, %v2114
        %v2116 = vpop.f32.mrb[0].mxu0
        %v2117 = vpop.f32.mrb[0].mxu0
        %v2118 = vadd.f32 0.0, %v2117
        %v2119 = vpop.f32.mrb[0].mxu0
        %2120 = vdwg.mxu0
        %v2121 = vadd.f32 %v1893, %v1995
        %v2122 = vadd.f32 %v1894, %v1998
        %v2123 = vadd.f32 %v1895, %v2003
        %v2124 = vadd.f32 %v1896, %v2006
        %v2125 = vadd.f32 %v1897, %v2011
        %v2126 = vadd.f32 %v1898, %v2014
        %v2127 = vadd.f32 %v1899, %v2019
        %v2128 = vadd.f32 %v1900, %v2022
        %v2129 = vadd.f32 %v1901, %v2027
        %v2130 = vadd.f32 %v1902, %v2030
        %v2131 = vadd.f32 %v1903, %v2035
        %v2132 = vadd.f32 %v1904, %v2038
        %v2133 = vadd.f32 %v1905, %v2043
        %v2134 = vadd.f32 %v1906, %v2046
        %v2135 = vadd.f32 %v1907, %v2051
        %v2136 = vadd.f32 %v1908, %v2054
        %v2137 = vadd.f32 %v1909, %v2059
        %v2138 = vadd.f32 %v1910, %v2062
        %v2139 = vadd.f32 %v1911, %v2067
        %v2140 = vadd.f32 %v1912, %v2070
        %v2141 = vadd.f32 %v1913, %v2075
        %v2142 = vadd.f32 %v1914, %v2078
        %v2143 = vadd.f32 %v1915, %v2083
        %v2144 = vadd.f32 %v1916, %v2086
        %v2145 = vadd.f32 %v1917, %v2091
        %v2146 = vadd.f32 %v1918, %v2094
        %v2147 = vadd.f32 %v1919, %v2099
        %v2148 = vadd.f32 %v1920, %v2102
        %v2149 = vadd.f32 %v1921, %v2107
        %v2150 = vadd.f32 %v1922, %v2110
        %v2151 = vadd.f32 %v1923, %v2115
        %v2152 = vadd.f32 %v1924, %v2118
        %v2153 = vld [vmem:[%s250] sm:$0xe]
        %v2154 = vld [vmem:[%s250 + $0xc] sm:$0xe]
        %v2155 = vld [vmem:[%s250 + $0x18] sm:$0xe]
        %v2156 = vld [vmem:[%s250 + $0x24] sm:$0xe]
        %v2157 = vld [vmem:[%s250 + $0x30] sm:$0xe]
        %v2158 = vld [vmem:[%s250 + $0x3c] sm:$0xe]
        %v2159 = vld [vmem:[%s250 + $0x48] sm:$0xe]
        %v2160 = vld [vmem:[%s250 + $0x54] sm:$0xe]
        %v2161 = vld [vmem:[%s250 + $0x60] sm:$0xe]
        %v2162 = vld [vmem:[%s250 + $0x6c] sm:$0xe]
        %v2163 = vld [vmem:[%s250 + $0x78] sm:$0xe]
        %v2164 = vld [vmem:[%s250 + $0x84] sm:$0xe]
        %v2165 = vld [vmem:[%s250 + $0x90] sm:$0xe]
        %v2166 = vld [vmem:[%s250 + $0x9c] sm:$0xe]
        %v2167 = vld [vmem:[%s250 + $0xa8] sm:$0xe]
        %v2168 = vld [vmem:[%s250 + $0xb4] sm:$0xe]
        %v2169 = vld [vmem:[%s250 + $0xc0] sm:$0xe]
        %v2170 = vld [vmem:[%s250 + $0xcc] sm:$0xe]
        %vm2219 = vcmask 1042432
        %vm2220 = vcmask 1046532
        %vm2221 = vmor %vm2219, %vm2220
        %v2222 = vrot.slane %v2153, 5
        %v2223 = vrot.slane %v2222, 4
        %v2224 = vrot.slane %v963, 5
        %v2225 = vsel %vm2221, %v2223, %v2224
        %v2226 = vrot.slane %v2224, 4
        %v2227 = vrot.slane %v964, 5
        %v2228 = vsel %vm2221, %v2226, %v2227
        %v2229 = vrot.slane %v2154, 5
        %v2230 = vrot.slane %v2229, 4
        %v2231 = vrot.slane %v966, 5
        %v2232 = vsel %vm2221, %v2230, %v2231
        %v2233 = vrot.slane %v2231, 4
        %v2234 = vrot.slane %v967, 5
        %v2235 = vsel %vm2221, %v2233, %v2234
        %v2236 = vrot.slane %v2155, 5
        %v2237 = vrot.slane %v2236, 4
        %v2238 = vrot.slane %v969, 5
        %v2239 = vsel %vm2221, %v2237, %v2238
        %v2240 = vrot.slane %v2238, 4
        %v2241 = vrot.slane %v970, 5
        %v2242 = vsel %vm2221, %v2240, %v2241
        %v2243 = vrot.slane %v2156, 5
        %v2244 = vrot.slane %v2243, 4
        %v2245 = vrot.slane %v972, 5
        %v2246 = vsel %vm2221, %v2244, %v2245
        %v2247 = vrot.slane %v2245, 4
        %v2248 = vrot.slane %v973, 5
        %v2249 = vsel %vm2221, %v2247, %v2248
        %v2250 = vrot.slane %v2157, 5
        %v2251 = vrot.slane %v2250, 4
        %v2252 = vrot.slane %v975, 5
        %v2253 = vsel %vm2221, %v2251, %v2252
        %v2254 = vrot.slane %v2252, 4
        %v2255 = vrot.slane %v976, 5
        %v2256 = vsel %vm2221, %v2254, %v2255
        %v2257 = vrot.slane %v2158, 5
        %v2258 = vrot.slane %v2257, 4
        %v2259 = vrot.slane %v978, 5
        %v2260 = vsel %vm2221, %v2258, %v2259
        %v2261 = vrot.slane %v2259, 4
        %v2262 = vrot.slane %v979, 5
        %v2263 = vsel %vm2221, %v2261, %v2262
        %v2264 = vrot.slane %v2159, 5
        %v2265 = vrot.slane %v2264, 4
        %v2266 = vrot.slane %v981, 5
        %v2267 = vsel %vm2221, %v2265, %v2266
        %v2268 = vrot.slane %v2266, 4
        %v2269 = vrot.slane %v982, 5
        %v2270 = vsel %vm2221, %v2268, %v2269
        %v2271 = vrot.slane %v2160, 5
        %v2272 = vrot.slane %v2271, 4
        %v2273 = vrot.slane %v984, 5
        %v2274 = vsel %vm2221, %v2272, %v2273
        %v2275 = vrot.slane %v2273, 4
        %v2276 = vrot.slane %v985, 5
        %v2277 = vsel %vm2221, %v2275, %v2276
        %v2278 = vrot.slane %v2161, 5
        %v2279 = vrot.slane %v2278, 4
        %v2280 = vrot.slane %v987, 5
        %v2281 = vsel %vm2221, %v2279, %v2280
        %v2282 = vrot.slane %v2280, 4
        %v2283 = vrot.slane %v988, 5
        %v2284 = vsel %vm2221, %v2282, %v2283
        %v2285 = vrot.slane %v2162, 5
        %v2286 = vrot.slane %v2285, 4
        %v2287 = vrot.slane %v990, 5
        %v2288 = vsel %vm2221, %v2286, %v2287
        %v2289 = vrot.slane %v2287, 4
        %v2290 = vrot.slane %v991, 5
        %v2291 = vsel %vm2221, %v2289, %v2290
        %v2292 = vrot.slane %v2163, 5
        %v2293 = vrot.slane %v2292, 4
        %v2294 = vrot.slane %v993, 5
        %v2295 = vsel %vm2221, %v2293, %v2294
        %v2296 = vrot.slane %v2294, 4
        %v2297 = vrot.slane %v994, 5
        %v2298 = vsel %vm2221, %v2296, %v2297
        %v2299 = vrot.slane %v2164, 5
        %v2300 = vrot.slane %v2299, 4
        %v2301 = vrot.slane %v996, 5
        %v2302 = vsel %vm2221, %v2300, %v2301
        %v2303 = vrot.slane %v2301, 4
        %v2304 = vrot.slane %v997, 5
        %v2305 = vsel %vm2221, %v2303, %v2304
        %v2306 = vrot.slane %v2165, 5
        %v2307 = vrot.slane %v2306, 4
        %v2308 = vrot.slane %v999, 5
        %v2309 = vsel %vm2221, %v2307, %v2308
        %v2310 = vrot.slane %v2308, 4
        %v2311 = vrot.slane %v1000, 5
        %v2312 = vsel %vm2221, %v2310, %v2311
        %v2313 = vrot.slane %v2166, 5
        %v2314 = vrot.slane %v2313, 4
        %v2315 = vrot.slane %v1002, 5
        %v2316 = vsel %vm2221, %v2314, %v2315
        %v2317 = vrot.slane %v2315, 4
        %v2318 = vrot.slane %v1003, 5
        %v2319 = vsel %vm2221, %v2317, %v2318
        %v2320 = vrot.slane %v2167, 5
        %v2321 = vrot.slane %v2320, 4
        %v2322 = vrot.slane %v1005, 5
        %v2323 = vsel %vm2221, %v2321, %v2322
        %v2324 = vrot.slane %v2322, 4
        %v2325 = vrot.slane %v1006, 5
        %v2326 = vsel %vm2221, %v2324, %v2325
        %v2327 = vrot.slane %v2168, 5
        %v2328 = vrot.slane %v2327, 4
        %v2329 = vrot.slane %v1008, 5
        %v2330 = vsel %vm2221, %v2328, %v2329
        %v2331 = vrot.slane %v2329, 4
        %v2332 = vrot.slane %v1009, 5
        %v2333 = vsel %vm2221, %v2331, %v2332
        %s2334 = scalar_lea.vmem %s1, 4
        %v2335 = vld [vmem:[%s2334] sm:$0x3]
        %v2336 = vunpack.c.l.b16 %v2225
        %v2337 = vunpack.c.l.b16 %v2228
        %v2338 = vunpack.c.l.b16 %v2232
        %v2339 = vunpack.c.l.b16 %v2235
        %v2340 = vunpack.c.l.b16 %v2239
        %v2341 = vunpack.c.l.b16 %v2242
        %v2342 = vunpack.c.l.b16 %v2246
        %v2343 = vunpack.c.l.b16 %v2249
        %v2344 = vunpack.c.l.b16 %v2253
        %v2345 = vunpack.c.l.b16 %v2256
        %v2346 = vunpack.c.l.b16 %v2260
        %v2347 = vunpack.c.l.b16 %v2263
        %v2348 = vunpack.c.l.b16 %v2267
        %v2349 = vunpack.c.l.b16 %v2270
        %v2350 = vunpack.c.l.b16 %v2274
        %v2351 = vunpack.c.l.b16 %v2277
        %v2352 = vunpack.c.l.b16 %v2281
        %v2353 = vunpack.c.l.b16 %v2284
        %v2354 = vunpack.c.l.b16 %v2288
        %v2355 = vunpack.c.l.b16 %v2291
        %v2356 = vunpack.c.l.b16 %v2295
        %v2357 = vunpack.c.l.b16 %v2298
        %v2358 = vunpack.c.l.b16 %v2302
        %v2359 = vunpack.c.l.b16 %v2305
        %v2360 = vunpack.c.l.b16 %v2309
        %v2361 = vunpack.c.l.b16 %v2312
        %v2362 = vunpack.c.l.b16 %v2316
        %v2363 = vunpack.c.l.b16 %v2319
        %v2364 = vunpack.c.l.b16 %v2323
        %v2365 = vunpack.c.l.b16 %v2326
        %v2366 = vunpack.c.l.b16 %v2330
        %v2367 = vunpack.c.l.b16 %v2333
        %v2368 = vpack.c.b16 %v2337, %v2336
        %v2369 = vpack.c.b16 %v2339, %v2338
        %v2370 = vpack.c.b16 %v2341, %v2340
        %v2371 = vpack.c.b16 %v2343, %v2342
        %v2372 = vpack.c.b16 %v2345, %v2344
        %v2373 = vpack.c.b16 %v2347, %v2346
        %v2374 = vpack.c.b16 %v2349, %v2348
        %v2375 = vpack.c.b16 %v2351, %v2350
        %v2376 = vpack.c.b16 %v2353, %v2352
        %v2377 = vpack.c.b16 %v2355, %v2354
        %v2378 = vpack.c.b16 %v2357, %v2356
        %v2379 = vpack.c.b16 %v2359, %v2358
        %v2380 = vpack.c.b16 %v2361, %v2360
        %v2381 = vpack.c.b16 %v2363, %v2362
        %v2382 = vpack.c.b16 %v2365, %v2364
        %v2383 = vpack.c.b16 %v2367, %v2366
        %v2385 = vsel %vm370, %v2368, 0
        %v2388 = vsel %vm370, %v2369, 0
        %v2391 = vsel %vm370, %v2370, 0
        %v2394 = vsel %vm370, %v2371, 0
        %v2397 = vsel %vm370, %v2372, 0
        %v2400 = vsel %vm370, %v2373, 0
        %v2403 = vsel %vm370, %v2374, 0
        %v2406 = vsel %vm370, %v2375, 0
        %v2409 = vsel %vm370, %v2376, 0
        %v2412 = vsel %vm370, %v2377, 0
        %v2415 = vsel %vm370, %v2378, 0
        %v2418 = vsel %vm370, %v2379, 0
        %v2421 = vsel %vm370, %v2380, 0
        %v2424 = vsel %vm370, %v2381, 0
        %v2427 = vsel %vm370, %v2382, 0
        %v2430 = vsel %vm370, %v2383, 0
        %v2433 = vsel %vm419, %v2335, 0
        %2435 = vmatprep.subr.bf16.mxu0 0
        %2436 = vmatpush1.bf16.msra.mxu0 %v2433
        %2437 = vmatprep.subr.bf16.mxu0 0
        %2438 = vmatpush1.bf16.msra.mxu0 0
        %2439 = vmatprep.subr.bf16.mxu0 0
        %2440 = vmatpush1.bf16.msra.mxu0 0
        %2441 = vmatprep.subr.bf16.mxu0 0
        %2442 = vmatpush1.bf16.msra.mxu0 0
        %2443 = vmatprep.subr.bf16.mxu0 0
        %2444 = vmatpush1.bf16.msra.mxu0 0
        %2445 = vmatprep.subr.bf16.mxu0 0
        %2446 = vmatpush1.bf16.msra.mxu0 0
        %2447 = vmatprep.subr.bf16.mxu0 0
        %2448 = vmatpush1.bf16.msra.mxu0 0
        %2449 = vmatprep.subr.bf16.mxu0 0
        %2450 = vmatpush1.bf16.msra.mxu0 0
        %2451 = vmatprep.subr.bf16.mxu0 0
        %2452 = vmatpush1.bf16.msra.mxu0 0
        %2453 = vmatprep.subr.bf16.mxu0 0
        %2454 = vmatpush1.bf16.msra.mxu0 0
        %2455 = vmatprep.subr.bf16.mxu0 0
        %2456 = vmatpush1.bf16.msra.mxu0 0
        %2457 = vmatprep.subr.bf16.mxu0 0
        %2458 = vmatpush1.bf16.msra.mxu0 0
        %2459 = vmatprep.subr.bf16.mxu0 0
        %2460 = vmatpush1.bf16.msra.mxu0 0
        %2461 = vmatprep.subr.bf16.mxu0 0
        %2462 = vmatpush1.bf16.msra.mxu0 0
        %2463 = vmatprep.subr.bf16.mxu0 0
        %2464 = vmatpush1.bf16.msra.mxu0 0
        %2465 = vmatprep.subr.bf16.mxu0 0
        %2466 = vmatpush1.bf16.msra.mxu0 0
        %2467 = vmatprep.mubr.bf16.mxu0 0
        %2468 = vmatmul.mubr.bf16.gmra.mrb[0].mxu0 %v2385
        %v2469 = vpop.f32.mrb[0].mxu0
        %v2470 = vadd.f32 0.0, %v2469
        %v2471 = vpop.f32.mrb[0].mxu0
        %v2472 = vpop.f32.mrb[0].mxu0
        %v2473 = vadd.f32 0.0, %v2472
        %v2474 = vpop.f32.mrb[0].mxu0
        %2475 = vmatprep.mubr.bf16.mxu0 0
        %2476 = vmatmul.mubr.bf16.gmra.mrb[0].mxu0 %v2388
        %v2477 = vpop.f32.mrb[0].mxu0
        %v2478 = vadd.f32 0.0, %v2477
        %v2479 = vpop.f32.mrb[0].mxu0
        %v2480 = vpop.f32.mrb[0].mxu0
        %v2481 = vadd.f32 0.0, %v2480
        %v2482 = vpop.f32.mrb[0].mxu0
        %2483 = vmatprep.mubr.bf16.mxu0 0
        %2484 = vmatmul.mubr.bf16.gmra.mrb[0].mxu0 %v2391
        %v2485 = vpop.f32.mrb[0].mxu0
        %v2486 = vadd.f32 0.0, %v2485
        %v2487 = vpop.f32.mrb[0].mxu0
        %v2488 = vpop.f32.mrb[0].mxu0
        %v2489 = vadd.f32 0.0, %v2488
        %v2490 = vpop.f32.mrb[0].mxu0
        %2491 = vmatprep.mubr.bf16.mxu0 0
        %2492 = vmatmul.mubr.bf16.gmra.mrb[0].mxu0 %v2394
        %v2493 = vpop.f32.mrb[0].mxu0
        %v2494 = vadd.f32 0.0, %v2493
        %v2495 = vpop.f32.mrb[0].mxu0
        %v2496 = vpop.f32.mrb[0].mxu0
        %v2497 = vadd.f32 0.0, %v2496
        %v2498 = vpop.f32.mrb[0].mxu0
        %2499 = vmatprep.mubr.bf16.mxu0 0
        %2500 = vmatmul.mubr.bf16.gmra.mrb[0].mxu0 %v2397
        %v2501 = vpop.f32.mrb[0].mxu0
        %v2502 = vadd.f32 0.0, %v2501
        %v2503 = vpop.f32.mrb[0].mxu0
        %v2504 = vpop.f32.mrb[0].mxu0
        %v2505 = vadd.f32 0.0, %v2504
        %v2506 = vpop.f32.mrb[0].mxu0
        %2507 = vmatprep.mubr.bf16.mxu0 0
        %2508 = vmatmul.mubr.bf16.gmra.mrb[0].mxu0 %v2400
        %v2509 = vpop.f32.mrb[0].mxu0
        %v2510 = vadd.f32 0.0, %v2509
        %v2511 = vpop.f32.mrb[0].mxu0
        %v2512 = vpop.f32.mrb[0].mxu0
        %v2513 = vadd.f32 0.0, %v2512
        %v2514 = vpop.f32.mrb[0].mxu0
        %2515 = vmatprep.mubr.bf16.mxu0 0
        %2516 = vmatmul.mubr.bf16.gmra.mrb[0].mxu0 %v2403
        %v2517 = vpop.f32.mrb[0].mxu0
        %v2518 = vadd.f32 0.0, %v2517
        %v2519 = vpop.f32.mrb[0].mxu0
        %v2520 = vpop.f32.mrb[0].mxu0
        %v2521 = vadd.f32 0.0, %v2520
        %v2522 = vpop.f32.mrb[0].mxu0
        %2523 = vmatprep.mubr.bf16.mxu0 0
        %2524 = vmatmul.mubr.bf16.gmra.mrb[0].mxu0 %v2406
        %v2525 = vpop.f32.mrb[0].mxu0
        %v2526 = vadd.f32 0.0, %v2525
        %v2527 = vpop.f32.mrb[0].mxu0
        %v2528 = vpop.f32.mrb[0].mxu0
        %v2529 = vadd.f32 0.0, %v2528
        %v2530 = vpop.f32.mrb[0].mxu0
        %2531 = vmatprep.mubr.bf16.mxu0 0
        %2532 = vmatmul.mubr.bf16.gmra.mrb[0].mxu0 %v2409
        %v2533 = vpop.f32.mrb[0].mxu0
        %v2534 = vadd.f32 0.0, %v2533
        %v2535 = vpop.f32.mrb[0].mxu0
        %v2536 = vpop.f32.mrb[0].mxu0
        %v2537 = vadd.f32 0.0, %v2536
        %v2538 = vpop.f32.mrb[0].mxu0
        %2539 = vmatprep.mubr.bf16.mxu0 0
        %2540 = vmatmul.mubr.bf16.gmra.mrb[0].mxu0 %v2412
        %v2541 = vpop.f32.mrb[0].mxu0
        %v2542 = vadd.f32 0.0, %v2541
        %v2543 = vpop.f32.mrb[0].mxu0
        %v2544 = vpop.f32.mrb[0].mxu0
        %v2545 = vadd.f32 0.0, %v2544
        %v2546 = vpop.f32.mrb[0].mxu0
        %2547 = vmatprep.mubr.bf16.mxu0 0
        %2548 = vmatmul.mubr.bf16.gmra.mrb[0].mxu0 %v2415
        %v2549 = vpop.f32.mrb[0].mxu0
        %v2550 = vadd.f32 0.0, %v2549
        %v2551 = vpop.f32.mrb[0].mxu0
        %v2552 = vpop.f32.mrb[0].mxu0
        %v2553 = vadd.f32 0.0, %v2552
        %v2554 = vpop.f32.mrb[0].mxu0
        %2555 = vmatprep.mubr.bf16.mxu0 0
        %2556 = vmatmul.mubr.bf16.gmra.mrb[0].mxu0 %v2418
        %v2557 = vpop.f32.mrb[0].mxu0
        %v2558 = vadd.f32 0.0, %v2557
        %v2559 = vpop.f32.mrb[0].mxu0
        %v2560 = vpop.f32.mrb[0].mxu0
        %v2561 = vadd.f32 0.0, %v2560
        %v2562 = vpop.f32.mrb[0].mxu0
        %2563 = vmatprep.mubr.bf16.mxu0 0
        %2564 = vmatmul.mubr.bf16.gmra.mrb[0].mxu0 %v2421
        %v2565 = vpop.f32.mrb[0].mxu0
        %v2566 = vadd.f32 0.0, %v2565
        %v2567 = vpop.f32.mrb[0].mxu0
        %v2568 = vpop.f32.mrb[0].mxu0
        %v2569 = vadd.f32 0.0, %v2568
        %v2570 = vpop.f32.mrb[0].mxu0
        %2571 = vmatprep.mubr.bf16.mxu0 0
        %2572 = vmatmul.mubr.bf16.gmra.mrb[0].mxu0 %v2424
        %v2573 = vpop.f32.mrb[0].mxu0
        %v2574 = vadd.f32 0.0, %v2573
        %v2575 = vpop.f32.mrb[0].mxu0
        %v2576 = vpop.f32.mrb[0].mxu0
        %v2577 = vadd.f32 0.0, %v2576
        %v2578 = vpop.f32.mrb[0].mxu0
        %2579 = vmatprep.mubr.bf16.mxu0 0
        %2580 = vmatmul.mubr.bf16.gmra.mrb[0].mxu0 %v2427
        %v2581 = vpop.f32.mrb[0].mxu0
        %v2582 = vadd.f32 0.0, %v2581
        %v2583 = vpop.f32.mrb[0].mxu0
        %v2584 = vpop.f32.mrb[0].mxu0
        %v2585 = vadd.f32 0.0, %v2584
        %v2586 = vpop.f32.mrb[0].mxu0
        %2587 = vmatprep.mubr.bf16.mxu0 0
        %2588 = vmatmul.mubr.bf16.gmra.mrb[0].mxu0 %v2430
        %v2589 = vpop.f32.mrb[0].mxu0
        %v2590 = vadd.f32 0.0, %v2589
        %v2591 = vpop.f32.mrb[0].mxu0
        %v2592 = vpop.f32.mrb[0].mxu0
        %v2593 = vadd.f32 0.0, %v2592
        %v2594 = vpop.f32.mrb[0].mxu0
        %2595 = vdwg.mxu0
        %v2596 = vadd.f32 %v2121, %v2470
        %v2597 = vadd.f32 %v2122, %v2473
        %v2598 = vadd.f32 %v2123, %v2478
        %v2599 = vadd.f32 %v2124, %v2481
        %v2600 = vadd.f32 %v2125, %v2486
        %v2601 = vadd.f32 %v2126, %v2489
        %v2602 = vadd.f32 %v2127, %v2494
        %v2603 = vadd.f32 %v2128, %v2497
        %v2604 = vadd.f32 %v2129, %v2502
        %v2605 = vadd.f32 %v2130, %v2505
        %v2606 = vadd.f32 %v2131, %v2510
        %v2607 = vadd.f32 %v2132, %v2513
        %v2608 = vadd.f32 %v2133, %v2518
        %v2609 = vadd.f32 %v2134, %v2521
        %v2610 = vadd.f32 %v2135, %v2526
        %v2611 = vadd.f32 %v2136, %v2529
        %v2612 = vadd.f32 %v2137, %v2534
        %v2613 = vadd.f32 %v2138, %v2537
        %v2614 = vadd.f32 %v2139, %v2542
        %v2615 = vadd.f32 %v2140, %v2545
        %v2616 = vadd.f32 %v2141, %v2550
        %v2617 = vadd.f32 %v2142, %v2553
        %v2618 = vadd.f32 %v2143, %v2558
        %v2619 = vadd.f32 %v2144, %v2561
        %v2620 = vadd.f32 %v2145, %v2566
        %v2621 = vadd.f32 %v2146, %v2569
        %v2622 = vadd.f32 %v2147, %v2574
        %v2623 = vadd.f32 %v2148, %v2577
        %v2624 = vadd.f32 %v2149, %v2582
        %v2625 = vadd.f32 %v2150, %v2585
        %v2626 = vadd.f32 %v2151, %v2590
        %v2627 = vadd.f32 %v2152, %v2593
        %v2631 = vrot.slane %v2169, 5
        %v2632 = vrot.slane %v2631, 4
        %v2633 = vrot.slane %v1011, 5
        %v2634 = vsel %vm2221, %v2632, %v2633
        %v2635 = vrot.slane %v2633, 4
        %v2636 = vrot.slane %v1012, 5
        %v2637 = vsel %vm2221, %v2635, %v2636
        %s2638 = scalar_lea.vmem %s1, 10
        %v2639 = vld [vmem:[%s2638] sm:$0x3]
        %v2640 = vunpack.c.l.b16 %v2634
        %v2641 = vunpack.c.l.b16 %v2637
        %v2642 = vpack.c.b16 %v2641, %v2640
        %v2644 = vsel %vm370, %v2642, 0
        %v2647 = vsel %vm419, %v2639, 0
        %2649 = vmatprep.subr.bf16.mxu0 0
        %2650 = vmatpush1.bf16.msra.mxu0 %v2647
        %2651 = vmatprep.subr.bf16.mxu0 0
        %2652 = vmatpush1.bf16.msra.mxu0 0
        %2653 = vmatprep.subr.bf16.mxu0 0
        %2654 = vmatpush1.bf16.msra.mxu0 0
        %2655 = vmatprep.subr.bf16.mxu0 0
        %2656 = vmatpush1.bf16.msra.mxu0 0
        %2657 = vmatprep.subr.bf16.mxu0 0
        %2658 = vmatpush1.bf16.msra.mxu0 0
        %2659 = vmatprep.subr.bf16.mxu0 0
        %2660 = vmatpush1.bf16.msra.mxu0 0
        %2661 = vmatprep.subr.bf16.mxu0 0
        %2662 = vmatpush1.bf16.msra.mxu0 0
        %2663 = vmatprep.subr.bf16.mxu0 0
        %2664 = vmatpush1.bf16.msra.mxu0 0
        %2665 = vmatprep.subr.bf16.mxu0 0
        %2666 = vmatpush1.bf16.msra.mxu0 0
        %2667 = vmatprep.subr.bf16.mxu0 0
        %2668 = vmatpush1.bf16.msra.mxu0 0
        %2669 = vmatprep.subr.bf16.mxu0 0
        %2670 = vmatpush1.bf16.msra.mxu0 0
        %2671 = vmatprep.subr.bf16.mxu0 0
        %2672 = vmatpush1.bf16.msra.mxu0 0
        %2673 = vmatprep.subr.bf16.mxu0 0
        %2674 = vmatpush1.bf16.msra.mxu0 0
        %2675 = vmatprep.subr.bf16.mxu0 0
        %2676 = vmatpush1.bf16.msra.mxu0 0
        %2677 = vmatprep.subr.bf16.mxu0 0
        %2678 = vmatpush1.bf16.msra.mxu0 0
        %2679 = vmatprep.subr.bf16.mxu0 0
        %2680 = vmatpush1.bf16.msra.mxu0 0
        %2681 = vmatprep.mubr.bf16.mxu0 0
        %2682 = vmatmul.mubr.bf16.gmra.mrb[0].mxu0 %v2388
        %v2683 = vpop.f32.mrb[0].mxu0
        %v2684 = vadd.f32 0.0, %v2683
        %v2685 = vpop.f32.mrb[0].mxu0
        %v2686 = vpop.f32.mrb[0].mxu0
        %v2687 = vadd.f32 0.0, %v2686
        %v2688 = vpop.f32.mrb[0].mxu0
        %2689 = vmatprep.mubr.bf16.mxu0 0
        %2690 = vmatmul.mubr.bf16.gmra.mrb[0].mxu0 %v2391
        %v2691 = vpop.f32.mrb[0].mxu0
        %v2692 = vadd.f32 0.0, %v2691
        %v2693 = vpop.f32.mrb[0].mxu0
        %v2694 = vpop.f32.mrb[0].mxu0
        %v2695 = vadd.f32 0.0, %v2694
        %v2696 = vpop.f32.mrb[0].mxu0
        %2697 = vmatprep.mubr.bf16.mxu0 0
        %2698 = vmatmul.mubr.bf16.gmra.mrb[0].mxu0 %v2394
        %v2699 = vpop.f32.mrb[0].mxu0
        %v2700 = vadd.f32 0.0, %v2699
        %v2701 = vpop.f32.mrb[0].mxu0
        %v2702 = vpop.f32.mrb[0].mxu0
        %v2703 = vadd.f32 0.0, %v2702
        %v2704 = vpop.f32.mrb[0].mxu0
        %2705 = vmatprep.mubr.bf16.mxu0 0
        %2706 = vmatmul.mubr.bf16.gmra.mrb[0].mxu0 %v2397
        %v2707 = vpop.f32.mrb[0].mxu0
        %v2708 = vadd.f32 0.0, %v2707
        %v2709 = vpop.f32.mrb[0].mxu0
        %v2710 = vpop.f32.mrb[0].mxu0
        %v2711 = vadd.f32 0.0, %v2710
        %v2712 = vpop.f32.mrb[0].mxu0
        %2713 = vmatprep.mubr.bf16.mxu0 0
        %2714 = vmatmul.mubr.bf16.gmra.mrb[0].mxu0 %v2400
        %v2715 = vpop.f32.mrb[0].mxu0
        %v2716 = vadd.f32 0.0, %v2715
        %v2717 = vpop.f32.mrb[0].mxu0
        %v2718 = vpop.f32.mrb[0].mxu0
        %v2719 = vadd.f32 0.0, %v2718
        %v2720 = vpop.f32.mrb[0].mxu0
        %2721 = vmatprep.mubr.bf16.mxu0 0
        %2722 = vmatmul.mubr.bf16.gmra.mrb[0].mxu0 %v2403
        %v2723 = vpop.f32.mrb[0].mxu0
        %v2724 = vadd.f32 0.0, %v2723
        %v2725 = vpop.f32.mrb[0].mxu0
        %v2726 = vpop.f32.mrb[0].mxu0
        %v2727 = vadd.f32 0.0, %v2726
        %v2728 = vpop.f32.mrb[0].mxu0
        %2729 = vmatprep.mubr.bf16.mxu0 0
        %2730 = vmatmul.mubr.bf16.gmra.mrb[0].mxu0 %v2406
        %v2731 = vpop.f32.mrb[0].mxu0
        %v2732 = vadd.f32 0.0, %v2731
        %v2733 = vpop.f32.mrb[0].mxu0
        %v2734 = vpop.f32.mrb[0].mxu0
        %v2735 = vadd.f32 0.0, %v2734
        %v2736 = vpop.f32.mrb[0].mxu0
        %2737 = vmatprep.mubr.bf16.mxu0 0
        %2738 = vmatmul.mubr.bf16.gmra.mrb[0].mxu0 %v2409
        %v2739 = vpop.f32.mrb[0].mxu0
        %v2740 = vadd.f32 0.0, %v2739
        %v2741 = vpop.f32.mrb[0].mxu0
        %v2742 = vpop.f32.mrb[0].mxu0
        %v2743 = vadd.f32 0.0, %v2742
        %v2744 = vpop.f32.mrb[0].mxu0
        %2745 = vmatprep.mubr.bf16.mxu0 0
        %2746 = vmatmul.mubr.bf16.gmra.mrb[0].mxu0 %v2412
        %v2747 = vpop.f32.mrb[0].mxu0
        %v2748 = vadd.f32 0.0, %v2747
        %v2749 = vpop.f32.mrb[0].mxu0
        %v2750 = vpop.f32.mrb[0].mxu0
        %v2751 = vadd.f32 0.0, %v2750
        %v2752 = vpop.f32.mrb[0].mxu0
        %2753 = vmatprep.mubr.bf16.mxu0 0
        %2754 = vmatmul.mubr.bf16.gmra.mrb[0].mxu0 %v2415
        %v2755 = vpop.f32.mrb[0].mxu0
        %v2756 = vadd.f32 0.0, %v2755
        %v2757 = vpop.f32.mrb[0].mxu0
        %v2758 = vpop.f32.mrb[0].mxu0
        %v2759 = vadd.f32 0.0, %v2758
        %v2760 = vpop.f32.mrb[0].mxu0
        %2761 = vmatprep.mubr.bf16.mxu0 0
        %2762 = vmatmul.mubr.bf16.gmra.mrb[0].mxu0 %v2418
        %v2763 = vpop.f32.mrb[0].mxu0
        %v2764 = vadd.f32 0.0, %v2763
        %v2765 = vpop.f32.mrb[0].mxu0
        %v2766 = vpop.f32.mrb[0].mxu0
        %v2767 = vadd.f32 0.0, %v2766
        %v2768 = vpop.f32.mrb[0].mxu0
        %2769 = vmatprep.mubr.bf16.mxu0 0
        %2770 = vmatmul.mubr.bf16.gmra.mrb[0].mxu0 %v2421
        %v2771 = vpop.f32.mrb[0].mxu0
        %v2772 = vadd.f32 0.0, %v2771
        %v2773 = vpop.f32.mrb[0].mxu0
        %v2774 = vpop.f32.mrb[0].mxu0
        %v2775 = vadd.f32 0.0, %v2774
        %v2776 = vpop.f32.mrb[0].mxu0
        %2777 = vmatprep.mubr.bf16.mxu0 0
        %2778 = vmatmul.mubr.bf16.gmra.mrb[0].mxu0 %v2424
        %v2779 = vpop.f32.mrb[0].mxu0
        %v2780 = vadd.f32 0.0, %v2779
        %v2781 = vpop.f32.mrb[0].mxu0
        %v2782 = vpop.f32.mrb[0].mxu0
        %v2783 = vadd.f32 0.0, %v2782
        %v2784 = vpop.f32.mrb[0].mxu0
        %2785 = vmatprep.mubr.bf16.mxu0 0
        %2786 = vmatmul.mubr.bf16.gmra.mrb[0].mxu0 %v2427
        %v2787 = vpop.f32.mrb[0].mxu0
        %v2788 = vadd.f32 0.0, %v2787
        %v2789 = vpop.f32.mrb[0].mxu0
        %v2790 = vpop.f32.mrb[0].mxu0
        %v2791 = vadd.f32 0.0, %v2790
        %v2792 = vpop.f32.mrb[0].mxu0
        %2793 = vmatprep.mubr.bf16.mxu0 0
        %2794 = vmatmul.mubr.bf16.gmra.mrb[0].mxu0 %v2430
        %v2795 = vpop.f32.mrb[0].mxu0
        %v2796 = vadd.f32 0.0, %v2795
        %v2797 = vpop.f32.mrb[0].mxu0
        %v2798 = vpop.f32.mrb[0].mxu0
        %v2799 = vadd.f32 0.0, %v2798
        %v2800 = vpop.f32.mrb[0].mxu0
        %2801 = vmatprep.mubr.bf16.mxu0 0
        %2802 = vmatmul.mubr.bf16.gmra.mrb[0].mxu0 %v2644
        %v2803 = vpop.f32.mrb[0].mxu0
        %v2804 = vadd.f32 0.0, %v2803
        %v2805 = vpop.f32.mrb[0].mxu0
        %v2806 = vpop.f32.mrb[0].mxu0
        %v2807 = vadd.f32 0.0, %v2806
        %v2808 = vpop.f32.mrb[0].mxu0
        %2809 = vdwg.mxu0
        %v2810 = vadd.f32 %v2596, %v2684
        %v2811 = vadd.f32 %v2597, %v2687
        %v2812 = vadd.f32 %v2598, %v2692
        %v2813 = vadd.f32 %v2599, %v2695
        %v2814 = vadd.f32 %v2600, %v2700
        %v2815 = vadd.f32 %v2601, %v2703
        %v2816 = vadd.f32 %v2602, %v2708
        %v2817 = vadd.f32 %v2603, %v2711
        %v2818 = vadd.f32 %v2604, %v2716
        %v2819 = vadd.f32 %v2605, %v2719
        %v2820 = vadd.f32 %v2606, %v2724
        %v2821 = vadd.f32 %v2607, %v2727
        %v2822 = vadd.f32 %v2608, %v2732
        %v2823 = vadd.f32 %v2609, %v2735
        %v2824 = vadd.f32 %v2610, %v2740
        %v2825 = vadd.f32 %v2611, %v2743
        %v2826 = vadd.f32 %v2612, %v2748
        %v2827 = vadd.f32 %v2613, %v2751
        %v2828 = vadd.f32 %v2614, %v2756
        %v2829 = vadd.f32 %v2615, %v2759
        %v2830 = vadd.f32 %v2616, %v2764
        %v2831 = vadd.f32 %v2617, %v2767
        %v2832 = vadd.f32 %v2618, %v2772
        %v2833 = vadd.f32 %v2619, %v2775
        %v2834 = vadd.f32 %v2620, %v2780
        %v2835 = vadd.f32 %v2621, %v2783
        %v2836 = vadd.f32 %v2622, %v2788
        %v2837 = vadd.f32 %v2623, %v2791
        %v2838 = vadd.f32 %v2624, %v2796
        %v2839 = vadd.f32 %v2625, %v2799
        %v2840 = vadd.f32 %v2626, %v2804
        %v2841 = vadd.f32 %v2627, %v2807
        %v2845 = vrot.slane %v2170, 5
        %v2846 = vrot.slane %v2845, 4
        %v2847 = vrot.slane %v1014, 5
        %v2848 = vsel %vm2221, %v2846, %v2847
        %v2849 = vrot.slane %v2847, 4
        %v2850 = vrot.slane %v1015, 5
        %v2851 = vsel %vm2221, %v2849, %v2850
        %s2852 = scalar_lea.vmem %s1, 16
        %v2853 = vld [vmem:[%s2852] sm:$0x3]
        %v2854 = vunpack.c.l.b16 %v2848
        %v2855 = vunpack.c.l.b16 %v2851
        %v2856 = vpack.c.b16 %v2855, %v2854
        %v2858 = vsel %vm370, %v2856, 0
        %v2861 = vsel %vm419, %v2853, 0
        %2863 = vmatprep.subr.bf16.mxu0 0
        %2864 = vmatpush1.bf16.msra.mxu0 %v2861
        %2865 = vmatprep.subr.bf16.mxu0 0
        %2866 = vmatpush1.bf16.msra.mxu0 0
        %2867 = vmatprep.subr.bf16.mxu0 0
        %2868 = vmatpush1.bf16.msra.mxu0 0
        %2869 = vmatprep.subr.bf16.mxu0 0
        %2870 = vmatpush1.bf16.msra.mxu0 0
        %2871 = vmatprep.subr.bf16.mxu0 0
        %2872 = vmatpush1.bf16.msra.mxu0 0
        %2873 = vmatprep.subr.bf16.mxu0 0
        %2874 = vmatpush1.bf16.msra.mxu0 0
        %2875 = vmatprep.subr.bf16.mxu0 0
        %2876 = vmatpush1.bf16.msra.mxu0 0
        %2877 = vmatprep.subr.bf16.mxu0 0
        %2878 = vmatpush1.bf16.msra.mxu0 0
        %2879 = vmatprep.subr.bf16.mxu0 0
        %2880 = vmatpush1.bf16.msra.mxu0 0
        %2881 = vmatprep.subr.bf16.mxu0 0
        %2882 = vmatpush1.bf16.msra.mxu0 0
        %2883 = vmatprep.subr.bf16.mxu0 0
        %2884 = vmatpush1.bf16.msra.mxu0 0
        %2885 = vmatprep.subr.bf16.mxu0 0
        %2886 = vmatpush1.bf16.msra.mxu0 0
        %2887 = vmatprep.subr.bf16.mxu0 0
        %2888 = vmatpush1.bf16.msra.mxu0 0
        %2889 = vmatprep.subr.bf16.mxu0 0
        %2890 = vmatpush1.bf16.msra.mxu0 0
        %2891 = vmatprep.subr.bf16.mxu0 0
        %2892 = vmatpush1.bf16.msra.mxu0 0
        %2893 = vmatprep.subr.bf16.mxu0 0
        %2894 = vmatpush1.bf16.msra.mxu0 0
        %2895 = vmatprep.mubr.bf16.mxu0 0
        %2896 = vmatmul.mubr.bf16.gmra.mrb[0].mxu0 %v2391
        %v2897 = vpop.f32.mrb[0].mxu0
        %v2898 = vadd.f32 0.0, %v2897
        %v2899 = vpop.f32.mrb[0].mxu0
        %v2900 = vpop.f32.mrb[0].mxu0
        %v2901 = vadd.f32 0.0, %v2900
        %v2902 = vpop.f32.mrb[0].mxu0
        %2903 = vmatprep.mubr.bf16.mxu0 0
        %2904 = vmatmul.mubr.bf16.gmra.mrb[0].mxu0 %v2394
        %v2905 = vpop.f32.mrb[0].mxu0
        %v2906 = vadd.f32 0.0, %v2905
        %v2907 = vpop.f32.mrb[0].mxu0
        %v2908 = vpop.f32.mrb[0].mxu0
        %v2909 = vadd.f32 0.0, %v2908
        %v2910 = vpop.f32.mrb[0].mxu0
        %2911 = vmatprep.mubr.bf16.mxu0 0
        %2912 = vmatmul.mubr.bf16.gmra.mrb[0].mxu0 %v2397
        %v2913 = vpop.f32.mrb[0].mxu0
        %v2914 = vadd.f32 0.0, %v2913
        %v2915 = vpop.f32.mrb[0].mxu0
        %v2916 = vpop.f32.mrb[0].mxu0
        %v2917 = vadd.f32 0.0, %v2916
        %v2918 = vpop.f32.mrb[0].mxu0
        %2919 = vmatprep.mubr.bf16.mxu0 0
        %2920 = vmatmul.mubr.bf16.gmra.mrb[0].mxu0 %v2400
        %v2921 = vpop.f32.mrb[0].mxu0
        %v2922 = vadd.f32 0.0, %v2921
        %v2923 = vpop.f32.mrb[0].mxu0
        %v2924 = vpop.f32.mrb[0].mxu0
        %v2925 = vadd.f32 0.0, %v2924
        %v2926 = vpop.f32.mrb[0].mxu0
        %2927 = vmatprep.mubr.bf16.mxu0 0
        %2928 = vmatmul.mubr.bf16.gmra.mrb[0].mxu0 %v2403
        %v2929 = vpop.f32.mrb[0].mxu0
        %v2930 = vadd.f32 0.0, %v2929
        %v2931 = vpop.f32.mrb[0].mxu0
        %v2932 = vpop.f32.mrb[0].mxu0
        %v2933 = vadd.f32 0.0, %v2932
        %v2934 = vpop.f32.mrb[0].mxu0
        %2935 = vmatprep.mubr.bf16.mxu0 0
        %2936 = vmatmul.mubr.bf16.gmra.mrb[0].mxu0 %v2406
        %v2937 = vpop.f32.mrb[0].mxu0
        %v2938 = vadd.f32 0.0, %v2937
        %v2939 = vpop.f32.mrb[0].mxu0
        %v2940 = vpop.f32.mrb[0].mxu0
        %v2941 = vadd.f32 0.0, %v2940
        %v2942 = vpop.f32.mrb[0].mxu0
        %2943 = vmatprep.mubr.bf16.mxu0 0
        %2944 = vmatmul.mubr.bf16.gmra.mrb[0].mxu0 %v2409
        %v2945 = vpop.f32.mrb[0].mxu0
        %v2946 = vadd.f32 0.0, %v2945
        %v2947 = vpop.f32.mrb[0].mxu0
        %v2948 = vpop.f32.mrb[0].mxu0
        %v2949 = vadd.f32 0.0, %v2948
        %v2950 = vpop.f32.mrb[0].mxu0
        %2951 = vmatprep.mubr.bf16.mxu0 0
        %2952 = vmatmul.mubr.bf16.gmra.mrb[0].mxu0 %v2412
        %v2953 = vpop.f32.mrb[0].mxu0
        %v2954 = vadd.f32 0.0, %v2953
        %v2955 = vpop.f32.mrb[0].mxu0
        %v2956 = vpop.f32.mrb[0].mxu0
        %v2957 = vadd.f32 0.0, %v2956
        %v2958 = vpop.f32.mrb[0].mxu0
        %2959 = vmatprep.mubr.bf16.mxu0 0
        %2960 = vmatmul.mubr.bf16.gmra.mrb[0].mxu0 %v2415
        %v2961 = vpop.f32.mrb[0].mxu0
        %v2962 = vadd.f32 0.0, %v2961
        %v2963 = vpop.f32.mrb[0].mxu0
        %v2964 = vpop.f32.mrb[0].mxu0
        %v2965 = vadd.f32 0.0, %v2964
        %v2966 = vpop.f32.mrb[0].mxu0
        %2967 = vmatprep.mubr.bf16.mxu0 0
        %2968 = vmatmul.mubr.bf16.gmra.mrb[0].mxu0 %v2418
        %v2969 = vpop.f32.mrb[0].mxu0
        %v2970 = vadd.f32 0.0, %v2969
        %v2971 = vpop.f32.mrb[0].mxu0
        %v2972 = vpop.f32.mrb[0].mxu0
        %v2973 = vadd.f32 0.0, %v2972
        %v2974 = vpop.f32.mrb[0].mxu0
        %2975 = vmatprep.mubr.bf16.mxu0 0
        %2976 = vmatmul.mubr.bf16.gmra.mrb[0].mxu0 %v2421
        %v2977 = vpop.f32.mrb[0].mxu0
        %v2978 = vadd.f32 0.0, %v2977
        %v2979 = vpop.f32.mrb[0].mxu0
        %v2980 = vpop.f32.mrb[0].mxu0
        %v2981 = vadd.f32 0.0, %v2980
        %v2982 = vpop.f32.mrb[0].mxu0
        %2983 = vmatprep.mubr.bf16.mxu0 0
        %2984 = vmatmul.mubr.bf16.gmra.mrb[0].mxu0 %v2424
        %v2985 = vpop.f32.mrb[0].mxu0
        %v2986 = vadd.f32 0.0, %v2985
        %v2987 = vpop.f32.mrb[0].mxu0
        %v2988 = vpop.f32.mrb[0].mxu0
        %v2989 = vadd.f32 0.0, %v2988
        %v2990 = vpop.f32.mrb[0].mxu0
        %2991 = vmatprep.mubr.bf16.mxu0 0
        %2992 = vmatmul.mubr.bf16.gmra.mrb[0].mxu0 %v2427
        %v2993 = vpop.f32.mrb[0].mxu0
        %v2994 = vadd.f32 0.0, %v2993
        %v2995 = vpop.f32.mrb[0].mxu0
        %v2996 = vpop.f32.mrb[0].mxu0
        %v2997 = vadd.f32 0.0, %v2996
        %v2998 = vpop.f32.mrb[0].mxu0
        %2999 = vmatprep.mubr.bf16.mxu0 0
        %3000 = vmatmul.mubr.bf16.gmra.mrb[0].mxu0 %v2430
        %v3001 = vpop.f32.mrb[0].mxu0
        %v3002 = vadd.f32 0.0, %v3001
        %v3003 = vpop.f32.mrb[0].mxu0
        %v3004 = vpop.f32.mrb[0].mxu0
        %v3005 = vadd.f32 0.0, %v3004
        %v3006 = vpop.f32.mrb[0].mxu0
        %3007 = vmatprep.mubr.bf16.mxu0 0
        %3008 = vmatmul.mubr.bf16.gmra.mrb[0].mxu0 %v2644
        %v3009 = vpop.f32.mrb[0].mxu0
        %v3010 = vadd.f32 0.0, %v3009
        %v3011 = vpop.f32.mrb[0].mxu0
        %v3012 = vpop.f32.mrb[0].mxu0
        %v3013 = vadd.f32 0.0, %v3012
        %v3014 = vpop.f32.mrb[0].mxu0
        %3015 = vmatprep.mubr.bf16.mxu0 0
        %3016 = vmatmul.mubr.bf16.gmra.mrb[0].mxu0 %v2858
        %v3017 = vpop.f32.mrb[0].mxu0
        %v3018 = vadd.f32 0.0, %v3017
        %v3019 = vpop.f32.mrb[0].mxu0
        %v3020 = vpop.f32.mrb[0].mxu0
        %v3021 = vadd.f32 0.0, %v3020
        %v3022 = vpop.f32.mrb[0].mxu0
        %3023 = vdwg.mxu0
        %v3024 = vadd.f32 %v2810, %v2898
        %v3025 = vadd.f32 %v2811, %v2901
        %v3026 = vadd.f32 %v2812, %v2906
        %v3027 = vadd.f32 %v2813, %v2909
        %v3028 = vadd.f32 %v2814, %v2914
        %v3029 = vadd.f32 %v2815, %v2917
        %v3030 = vadd.f32 %v2816, %v2922
        %v3031 = vadd.f32 %v2817, %v2925
        %v3032 = vadd.f32 %v2818, %v2930
        %v3033 = vadd.f32 %v2819, %v2933
        %v3034 = vadd.f32 %v2820, %v2938
        %v3035 = vadd.f32 %v2821, %v2941
        %v3036 = vadd.f32 %v2822, %v2946
        %v3037 = vadd.f32 %v2823, %v2949
        %v3038 = vadd.f32 %v2824, %v2954
        %v3039 = vadd.f32 %v2825, %v2957
        %v3040 = vadd.f32 %v2826, %v2962
        %v3041 = vadd.f32 %v2827, %v2965
        %v3042 = vadd.f32 %v2828, %v2970
        %v3043 = vadd.f32 %v2829, %v2973
        %v3044 = vadd.f32 %v2830, %v2978
        %v3045 = vadd.f32 %v2831, %v2981
        %v3046 = vadd.f32 %v2832, %v2986
        %v3047 = vadd.f32 %v2833, %v2989
        %v3048 = vadd.f32 %v2834, %v2994
        %v3049 = vadd.f32 %v2835, %v2997
        %v3050 = vadd.f32 %v2836, %v3002
        %v3051 = vadd.f32 %v2837, %v3005
        %v3052 = vadd.f32 %v2838, %v3010
        %v3053 = vadd.f32 %v2839, %v3013
        %v3054 = vadd.f32 %v2840, %v3018
        %v3055 = vadd.f32 %v2841, %v3021
        %v3056 = vpack.c.bf16 %v3025, %v3024
        %v3057 = vpack.c.bf16 %v3027, %v3026
        %v3058 = vpack.c.bf16 %v3029, %v3028
        %v3059 = vpack.c.bf16 %v3031, %v3030
        %v3060 = vpack.c.bf16 %v3033, %v3032
        %v3061 = vpack.c.bf16 %v3035, %v3034
        %v3062 = vpack.c.bf16 %v3037, %v3036
        %v3063 = vpack.c.bf16 %v3039, %v3038
        %v3064 = vpack.c.bf16 %v3041, %v3040
        %v3065 = vpack.c.bf16 %v3043, %v3042
        %v3066 = vpack.c.bf16 %v3045, %v3044
        %v3067 = vpack.c.bf16 %v3047, %v3046
        %v3068 = vpack.c.bf16 %v3049, %v3048
        %v3069 = vpack.c.bf16 %v3051, %v3050
        %v3070 = vpack.c.bf16 %v3053, %v3052
        %v3071 = vpack.c.bf16 %v3055, %v3054
        %v3088 = vunpack.c.l.b16 %v3056
        %v3089 = vunpack.c.h.b16 %v3056
        %v3090 = vunpack.c.l.b16 %v3057
        %v3091 = vunpack.c.h.b16 %v3057
        %v3092 = vunpack.c.l.b16 %v3058
        %v3093 = vunpack.c.h.b16 %v3058
        %v3094 = vunpack.c.l.b16 %v3059
        %v3095 = vunpack.c.h.b16 %v3059
        %v3096 = vunpack.c.l.b16 %v3060
        %v3097 = vunpack.c.h.b16 %v3060
        %v3098 = vunpack.c.l.b16 %v3061
        %v3099 = vunpack.c.h.b16 %v3061
        %v3100 = vunpack.c.l.b16 %v3062
        %v3101 = vunpack.c.h.b16 %v3062
        %v3102 = vunpack.c.l.b16 %v3063
        %v3103 = vunpack.c.h.b16 %v3063
        %v3104 = vunpack.c.l.b16 %v3064
        %v3105 = vunpack.c.h.b16 %v3064
        %v3106 = vunpack.c.l.b16 %v3065
        %v3107 = vunpack.c.h.b16 %v3065
        %v3108 = vunpack.c.l.b16 %v3066
        %v3109 = vunpack.c.h.b16 %v3066
        %v3110 = vunpack.c.l.b16 %v3067
        %v3111 = vunpack.c.h.b16 %v3067
        %v3112 = vunpack.c.l.b16 %v3068
        %v3113 = vunpack.c.h.b16 %v3068
        %v3114 = vunpack.c.l.b16 %v3069
        %v3115 = vunpack.c.h.b16 %v3069
        %v3116 = vunpack.c.l.b16 %v3070
        %v3117 = vunpack.c.h.b16 %v3070
        %v3118 = vunpack.c.l.b16 %v3071
        %v3119 = vunpack.c.h.b16 %v3071
        %v3120 = vpack.c.b16 %v3088, %v3088
        %v3121 = vpack.c.b16 %v3089, %v3089
        %v3122 = vpack.c.b16 %v3090, %v3090
        %v3123 = vpack.c.b16 %v3091, %v3091
        %v3124 = vpack.c.b16 %v3092, %v3092
        %v3125 = vpack.c.b16 %v3093, %v3093
        %v3126 = vpack.c.b16 %v3094, %v3094
        %v3127 = vpack.c.b16 %v3095, %v3095
        %v3128 = vpack.c.b16 %v3096, %v3096
        %v3129 = vpack.c.b16 %v3097, %v3097
        %v3130 = vpack.c.b16 %v3098, %v3098
        %v3131 = vpack.c.b16 %v3099, %v3099
        %v3132 = vpack.c.b16 %v3100, %v3100
        %v3133 = vpack.c.b16 %v3101, %v3101
        %v3134 = vpack.c.b16 %v3102, %v3102
        %v3135 = vpack.c.b16 %v3103, %v3103
        %v3136 = vpack.c.b16 %v3104, %v3104
        %v3137 = vpack.c.b16 %v3105, %v3105
        %v3138 = vpack.c.b16 %v3106, %v3106
        %v3139 = vpack.c.b16 %v3107, %v3107
        %v3140 = vpack.c.b16 %v3108, %v3108
        %v3141 = vpack.c.b16 %v3109, %v3109
        %v3142 = vpack.c.b16 %v3110, %v3110
        %v3143 = vpack.c.b16 %v3111, %v3111
        %v3144 = vpack.c.b16 %v3112, %v3112
        %v3145 = vpack.c.b16 %v3113, %v3113
        %v3146 = vpack.c.b16 %v3114, %v3114
        %v3147 = vpack.c.b16 %v3115, %v3115
        %v3148 = vpack.c.b16 %v3116, %v3116
        %v3149 = vpack.c.b16 %v3117, %v3117
        %v3150 = vpack.c.b16 %v3118, %v3118
        %v3151 = vpack.c.b16 %v3119, %v3119
        %vm3184 = vcmask 60416
        %3185 = vst.msk [vmem:[%s244] sm:$0xf] %vm3184, %v3120
        %3186 = vst.msk [vmem:[%s244 + $0x4] sm:$0xf] %vm3184, %v3121
        %3187 = vst.msk [vmem:[%s244 + $0x8] sm:$0xf] %vm3184, %v3122
        %3188 = vst.msk [vmem:[%s244 + $0xc] sm:$0xf] %vm3184, %v3123
        %3189 = vst.msk [vmem:[%s244 + $0x10] sm:$0xf] %vm3184, %v3124
        %3190 = vst.msk [vmem:[%s244 + $0x14] sm:$0xf] %vm3184, %v3125
        %3191 = vst.msk [vmem:[%s244 + $0x18] sm:$0xf] %vm3184, %v3126
        %3192 = vst.msk [vmem:[%s244 + $0x1c] sm:$0xf] %vm3184, %v3127
        %3193 = vst.msk [vmem:[%s244 + $0x20] sm:$0xf] %vm3184, %v3128
        %3194 = vst.msk [vmem:[%s244 + $0x24] sm:$0xf] %vm3184, %v3129
        %3195 = vst.msk [vmem:[%s244 + $0x28] sm:$0xf] %vm3184, %v3130
        %3196 = vst.msk [vmem:[%s244 + $0x2c] sm:$0xf] %vm3184, %v3131
        %3197 = vst.msk [vmem:[%s244 + $0x30] sm:$0xf] %vm3184, %v3132
        %3198 = vst.msk [vmem:[%s244 + $0x34] sm:$0xf] %vm3184, %v3133
        %3199 = vst.msk [vmem:[%s244 + $0x38] sm:$0xf] %vm3184, %v3134
        %3200 = vst.msk [vmem:[%s244 + $0x3c] sm:$0xf] %vm3184, %v3135
        %3201 = vst.msk [vmem:[%s244 + $0x40] sm:$0xf] %vm3184, %v3136
        %3202 = vst.msk [vmem:[%s244 + $0x44] sm:$0xf] %vm3184, %v3137
        %3203 = vst.msk [vmem:[%s244 + $0x48] sm:$0xf] %vm3184, %v3138
        %3204 = vst.msk [vmem:[%s244 + $0x4c] sm:$0xf] %vm3184, %v3139
        %3205 = vst.msk [vmem:[%s244 + $0x50] sm:$0xf] %vm3184, %v3140
        %3206 = vst.msk [vmem:[%s244 + $0x54] sm:$0xf] %vm3184, %v3141
        %3207 = vst.msk [vmem:[%s244 + $0x58] sm:$0xf] %vm3184, %v3142
        %3208 = vst.msk [vmem:[%s244 + $0x5c] sm:$0xf] %vm3184, %v3143
        %3209 = vst.msk [vmem:[%s244 + $0x60] sm:$0xf] %vm3184, %v3144
        %3210 = vst.msk [vmem:[%s244 + $0x64] sm:$0xf] %vm3184, %v3145
        %3211 = vst.msk [vmem:[%s244 + $0x68] sm:$0xf] %vm3184, %v3146
        %3212 = vst.msk [vmem:[%s244 + $0x6c] sm:$0xf] %vm3184, %v3147
        %3213 = vst.msk [vmem:[%s244 + $0x70] sm:$0xf] %vm3184, %v3148
        %3214 = vst.msk [vmem:[%s244 + $0x74] sm:$0xf] %vm3184, %v3149
        %3215 = vst.msk [vmem:[%s244 + $0x78] sm:$0xf] %vm3184, %v3150
        %3216 = vst.msk [vmem:[%s244 + $0x7c] sm:$0xf] %vm3184, %v3151
        %vm3217 = vcmask 64512
        %v3218 = vsel %vm3217, %v3024, 0.0
        %v3219 = vsel %vm3217, %v3025, 0.0
        %v3220 = vadd.f32 %v3218, %v3219
        %v3221 = vsel %vm3217, %v3026, 0.0
        %v3222 = vadd.f32 %v3220, %v3221
        %v3223 = vsel %vm3217, %v3027, 0.0
        %v3224 = vadd.f32 %v3222, %v3223
        %v3225 = vsel %vm3217, %v3028, 0.0
        %v3226 = vadd.f32 %v3224, %v3225
        %v3227 = vsel %vm3217, %v3029, 0.0
        %v3228 = vadd.f32 %v3226, %v3227
        %v3229 = vsel %vm3217, %v3030, 0.0
        %v3230 = vadd.f32 %v3228, %v3229
        %v3231 = vsel %vm3217, %v3031, 0.0
        %v3232 = vadd.f32 %v3230, %v3231
        %v3233 = vsel %vm3217, %v3032, 0.0
        %v3234 = vadd.f32 %v3232, %v3233
        %v3235 = vsel %vm3217, %v3033, 0.0
        %v3236 = vadd.f32 %v3234, %v3235
        %v3237 = vsel %vm3217, %v3034, 0.0
        %v3238 = vadd.f32 %v3236, %v3237
        %v3239 = vsel %vm3217, %v3035, 0.0
        %v3240 = vadd.f32 %v3238, %v3239
        %v3241 = vsel %vm3217, %v3036, 0.0
        %v3242 = vadd.f32 %v3240, %v3241
        %v3243 = vsel %vm3217, %v3037, 0.0
        %v3244 = vadd.f32 %v3242, %v3243
        %v3245 = vsel %vm3217, %v3038, 0.0
        %v3246 = vadd.f32 %v3244, %v3245
        %v3247 = vsel %vm3217, %v3039, 0.0
        %v3248 = vadd.f32 %v3246, %v3247
        %v3249 = vsel %vm3217, %v3040, 0.0
        %v3250 = vadd.f32 %v3248, %v3249
        %v3251 = vsel %vm3217, %v3041, 0.0
        %v3252 = vadd.f32 %v3250, %v3251
        %v3253 = vsel %vm3217, %v3042, 0.0
        %v3254 = vadd.f32 %v3252, %v3253
        %v3255 = vsel %vm3217, %v3043, 0.0
        %v3256 = vadd.f32 %v3254, %v3255
        %v3257 = vsel %vm3217, %v3044, 0.0
        %v3258 = vadd.f32 %v3256, %v3257
        %v3259 = vsel %vm3217, %v3045, 0.0
        %v3260 = vadd.f32 %v3258, %v3259
        %v3261 = vsel %vm3217, %v3046, 0.0
        %v3262 = vadd.f32 %v3260, %v3261
        %v3263 = vsel %vm3217, %v3047, 0.0
        %v3264 = vadd.f32 %v3262, %v3263
        %v3265 = vsel %vm3217, %v3048, 0.0
        %v3266 = vadd.f32 %v3264, %v3265
        %v3267 = vsel %vm3217, %v3049, 0.0
        %v3268 = vadd.f32 %v3266, %v3267
        %v3269 = vsel %vm3217, %v3050, 0.0
        %v3270 = vadd.f32 %v3268, %v3269
        %v3271 = vsel %vm3217, %v3051, 0.0
        %v3272 = vadd.f32 %v3270, %v3271
        %v3273 = vsel %vm3217, %v3052, 0.0
        %v3274 = vadd.f32 %v3272, %v3273
        %v3275 = vsel %vm3217, %v3053, 0.0
        %v3276 = vadd.f32 %v3274, %v3275
        %v3277 = vsel %vm3217, %v3054, 0.0
        %v3278 = vadd.f32 %v3276, %v3277
        %v3279 = vsel %vm3217, %v3055, 0.0
        %v3280 = vadd.f32 %v3278, %v3279
        %v3281 = vrot.slane %v3280, 4
        %v3282 = vadd.f32 %v3280, %v3281
        %v3283 = vrot.slane %v3282, 2
        %v3284 = vadd.f32 %v3282, %v3283
        %v3285 = vrot.slane %v3284, 1
        %v3286 = vadd.f32 %v3284, %v3285
        %v3287 = vmul.f32 %v3024, %v3024
        %v3288 = vmul.f32 %v3025, %v3025
        %v3289 = vmul.f32 %v3026, %v3026
        %v3290 = vmul.f32 %v3027, %v3027
        %v3291 = vmul.f32 %v3028, %v3028
        %v3292 = vmul.f32 %v3029, %v3029
        %v3293 = vmul.f32 %v3030, %v3030
        %v3294 = vmul.f32 %v3031, %v3031
        %v3295 = vmul.f32 %v3032, %v3032
        %v3296 = vmul.f32 %v3033, %v3033
        %v3297 = vmul.f32 %v3034, %v3034
        %v3298 = vmul.f32 %v3035, %v3035
        %v3299 = vmul.f32 %v3036, %v3036
        %v3300 = vmul.f32 %v3037, %v3037
        %v3301 = vmul.f32 %v3038, %v3038
        %v3302 = vmul.f32 %v3039, %v3039
        %v3303 = vmul.f32 %v3040, %v3040
        %v3304 = vmul.f32 %v3041, %v3041
        %v3305 = vmul.f32 %v3042, %v3042
        %v3306 = vmul.f32 %v3043, %v3043
        %v3307 = vmul.f32 %v3044, %v3044
        %v3308 = vmul.f32 %v3045, %v3045
        %v3309 = vmul.f32 %v3046, %v3046
        %v3310 = vmul.f32 %v3047, %v3047
        %v3311 = vmul.f32 %v3048, %v3048
        %v3312 = vmul.f32 %v3049, %v3049
        %v3313 = vmul.f32 %v3050, %v3050
        %v3314 = vmul.f32 %v3051, %v3051
        %v3315 = vmul.f32 %v3052, %v3052
        %v3316 = vmul.f32 %v3053, %v3053
        %v3317 = vmul.f32 %v3054, %v3054
        %v3318 = vmul.f32 %v3055, %v3055
        %v3319 = vsel %vm3217, %v3287, 0.0
        %v3320 = vsel %vm3217, %v3288, 0.0
        %v3321 = vadd.f32 %v3319, %v3320
        %v3322 = vsel %vm3217, %v3289, 0.0
        %v3323 = vadd.f32 %v3321, %v3322
        %v3324 = vsel %vm3217, %v3290, 0.0
        %v3325 = vadd.f32 %v3323, %v3324
        %v3326 = vsel %vm3217, %v3291, 0.0
        %v3327 = vadd.f32 %v3325, %v3326
        %v3328 = vsel %vm3217, %v3292, 0.0
        %v3329 = vadd.f32 %v3327, %v3328
        %v3330 = vsel %vm3217, %v3293, 0.0
        %v3331 = vadd.f32 %v3329, %v3330
        %v3332 = vsel %vm3217, %v3294, 0.0
        %v3333 = vadd.f32 %v3331, %v3332
        %v3334 = vsel %vm3217, %v3295, 0.0
        %v3335 = vadd.f32 %v3333, %v3334
        %v3336 = vsel %vm3217, %v3296, 0.0
        %v3337 = vadd.f32 %v3335, %v3336
        %v3338 = vsel %vm3217, %v3297, 0.0
        %v3339 = vadd.f32 %v3337, %v3338
        %v3340 = vsel %vm3217, %v3298, 0.0
        %v3341 = vadd.f32 %v3339, %v3340
        %v3342 = vsel %vm3217, %v3299, 0.0
        %v3343 = vadd.f32 %v3341, %v3342
        %v3344 = vsel %vm3217, %v3300, 0.0
        %v3345 = vadd.f32 %v3343, %v3344
        %v3346 = vsel %vm3217, %v3301, 0.0
        %v3347 = vadd.f32 %v3345, %v3346
        %v3348 = vsel %vm3217, %v3302, 0.0
        %v3349 = vadd.f32 %v3347, %v3348
        %v3350 = vsel %vm3217, %v3303, 0.0
        %v3351 = vadd.f32 %v3349, %v3350
        %v3352 = vsel %vm3217, %v3304, 0.0
        %v3353 = vadd.f32 %v3351, %v3352
        %v3354 = vsel %vm3217, %v3305, 0.0
        %v3355 = vadd.f32 %v3353, %v3354
        %v3356 = vsel %vm3217, %v3306, 0.0
        %v3357 = vadd.f32 %v3355, %v3356
        %v3358 = vsel %vm3217, %v3307, 0.0
        %v3359 = vadd.f32 %v3357, %v3358
        %v3360 = vsel %vm3217, %v3308, 0.0
        %v3361 = vadd.f32 %v3359, %v3360
        %v3362 = vsel %vm3217, %v3309, 0.0
        %v3363 = vadd.f32 %v3361, %v3362
        %v3364 = vsel %vm3217, %v3310, 0.0
        %v3365 = vadd.f32 %v3363, %v3364
        %v3366 = vsel %vm3217, %v3311, 0.0
        %v3367 = vadd.f32 %v3365, %v3366
        %v3368 = vsel %vm3217, %v3312, 0.0
        %v3369 = vadd.f32 %v3367, %v3368
        %v3370 = vsel %vm3217, %v3313, 0.0
        %v3371 = vadd.f32 %v3369, %v3370
        %v3372 = vsel %vm3217, %v3314, 0.0
        %v3373 = vadd.f32 %v3371, %v3372
        %v3374 = vsel %vm3217, %v3315, 0.0
        %v3375 = vadd.f32 %v3373, %v3374
        %v3376 = vsel %vm3217, %v3316, 0.0
        %v3377 = vadd.f32 %v3375, %v3376
        %v3378 = vsel %vm3217, %v3317, 0.0
        %v3379 = vadd.f32 %v3377, %v3378
        %v3380 = vsel %vm3217, %v3318, 0.0
        %v3381 = vadd.f32 %v3379, %v3380
        %v3382 = vrot.slane %v3381, 4
        %v3383 = vadd.f32 %v3381, %v3382
        %v3384 = vrot.slane %v3383, 2
        %v3385 = vadd.f32 %v3383, %v3384
        %v3386 = vrot.slane %v3385, 1
        %v3387 = vadd.f32 %v3385, %v3386
        %3388 = vst.msk [vmem:[%s223] sm:$0xff] %vm3217, %v3286
        %3389 = vst.msk [vmem:[%s230] sm:$0xff] %vm3217, %v3387
        %s3390 = smul.u32 32, %s27
        %p3391 = scmp.lt.s32.totalorder %s26, 1
        %s3392 = scalar_select %p3391, %s26, 1
        %p3393 = scmp.lt.s32.totalorder %s3390, 31
        %s3394 = scalar_select %p3393, %s3390, 31
        %s3395 = smul.addr %s3392, 32
        %s3396 = sadd.s32 %s3394, %s3395
        %s3397 = smul.addr %s3396, 4
        %s3398 = scalar_lea.vmem %s2, %s3397
        %s3399 = sand.u32 %s119, 1
        %s3400 = scalar_lea.sflag [#allocation3], %s3399
        %s3401 = sand.u32 %s119, 1
        %s3402 = smul.addr %s3401, 8
        %s3403 = scalar_lea.vmem [#allocation2], %s3402
        %s3404 = sand.u32 %s147, 1
        %s3405 = scalar_lea.sflag [#allocation5], %s3404
        %s3406 = sand.u32 %s147, 1
        %s3407 = smul.addr %s3406, 8
        %s3408 = scalar_lea.vmem [#allocation4], %s3407
        // Predicated region
        $region29: #{tpu_custom_call.1} parent=27 // pred_check
          %p3409 = pneg %p101
        $region30: #{tpu_custom_call.1} parent=27 // pred_check_branch
          %3411 = sbr.rel (%p3409) target = $region32
        $region31: #{tpu_custom_call.1} parent=27 // pred_region
          %s3412 = smul.u32 32, %s27
        $region32: #{tpu_custom_call.1} parent=27 // pred_fallthru
          _
        // Predicated region
        $region33: #{tpu_custom_call.1} parent=27 // pred_check
          %p3413 = pneg %p129
        $region34: #{tpu_custom_call.1} parent=27 // pred_check_branch
          %3415 = sbr.rel (%p3413) target = $region36
        $region35: #{tpu_custom_call.1} parent=27 // pred_region
          %s3417 = ssub.s32 128, 128
          %3418 = vsyncadd %s3400, %s3417
          %s3419 = sadd.s32 %s27, %s26
          %s3420 = smul.addr %s3419, 128
          %s3421 = scalar_lea.hbm %s3, %s3420
          %s3423 = sshll.u32 %s3403, 4
          %s3424 = int_to_ptr.vmem [resolvable:$true] %s3423
          %3426 = dma.vmem_to_hbm [thread:$0]  %s3424, 128, %s3421, %s3400
        $region36: #{tpu_custom_call.1} parent=27 // pred_fallthru
          _
        // Predicated region
        $region37: #{tpu_custom_call.1} parent=27 // pred_check
          %p3427 = pneg %p157
        $region38: #{tpu_custom_call.1} parent=27 // pred_check_branch
          %3429 = sbr.rel (%p3427) target = $region40
        $region39: #{tpu_custom_call.1} parent=27 // pred_region
          %s3431 = ssub.s32 128, 128
          %3432 = vsyncadd %s3405, %s3431
          %s3433 = sadd.s32 %s27, %s26
          %s3434 = smul.addr %s3433, 128
          %s3435 = scalar_lea.hbm %s4, %s3434
          %s3437 = sshll.u32 %s3408, 4
          %s3438 = int_to_ptr.vmem [resolvable:$true] %s3437
          %3440 = dma.vmem_to_hbm [thread:$0]  %s3438, 128, %s3435, %s3405
        $region40: #{tpu_custom_call.1} parent=27 // pred_fallthru
          _
      $region28: #{tpu_custom_call.1} parent=5 // pred_fallthru
        _
      %p3441 = scmp.le.s32.totalorder 2, %s17
      // Predicated region
      $region41: #{tpu_custom_call.1} parent=5 // pred_check
        %p3442 = pneg %p3441
      $region42: #{tpu_custom_call.1} parent=5 // pred_check_branch
        %3444 = sbr.rel (%p3442) target = $region44
      $region43: #{tpu_custom_call.1} parent=5 // pred_region
        %s3445 = ssub.s32 %s17, 2
        // Predicated region
        $region45: #{tpu_custom_call.1} parent=43 // pred_check
          %p3446 = pneg %p107
        $region46: #{tpu_custom_call.1} parent=43 // pred_check_branch
          %3448 = sbr.rel (%p3446) target = $region48
        $region47: #{tpu_custom_call.1} parent=43 // pred_region
          %s3449 = smul.u32 32, %s29
          %p3450 = scmp.lt.s32.totalorder %s28, 1
          %s3451 = scalar_select %p3450, %s28, 1
          %p3452 = scmp.lt.s32.totalorder %s3449, 31
          %s3453 = scalar_select %p3452, %s3449, 31
          %s3454 = smul.addr %s3451, 32
          %s3455 = sadd.s32 %s3453, %s3454
          %s3456 = smul.addr %s3455, 4
          %s3457 = scalar_lea.vmem %s2, %s3456
        $region48: #{tpu_custom_call.1} parent=43 // pred_fallthru
          _
        // Predicated region
        $region49: #{tpu_custom_call.1} parent=43 // pred_check
          %p3458 = pneg %p135
        $region50: #{tpu_custom_call.1} parent=43 // pred_check_branch
          %3460 = sbr.rel (%p3458) target = $region52
        $region51: #{tpu_custom_call.1} parent=43 // pred_region
          %s3461 = sand.u32 %s120, 1
          %s3462 = scalar_lea.sflag [#allocation3], %s3461
          %s3463 = sand.u32 %s120, 1
          %s3464 = smul.addr %s3463, 8
          %s3465 = scalar_lea.vmem [#allocation2], %s3464
          %3466 = dma.done %s3462, 128
        $region52: #{tpu_custom_call.1} parent=43 // pred_fallthru
          _
        // Predicated region
        $region53: #{tpu_custom_call.1} parent=43 // pred_check
          %p3467 = pneg %p163
        $region54: #{tpu_custom_call.1} parent=43 // pred_check_branch
          %3469 = sbr.rel (%p3467) target = $region56
        $region55: #{tpu_custom_call.1} parent=43 // pred_region
          %s3470 = sand.u32 %s148, 1
          %s3471 = scalar_lea.sflag [#allocation5], %s3470
          %s3472 = sand.u32 %s148, 1
          %s3473 = smul.addr %s3472, 8
          %s3474 = scalar_lea.vmem [#allocation4], %s3473
          %3475 = dma.done %s3471, 128
        $region56: #{tpu_custom_call.1} parent=43 // pred_fallthru
          _
      $region44: #{tpu_custom_call.1} parent=5 // pred_fallthru
        _
    $region6: #{tpu_custom_call.1} parent=1 // loop_footer
      %s21 = sadd.s32 1, %s17
    $region7: #{tpu_custom_call.1} parent=1 // loop_footer_branch
      %16 = sbr.rel target = $region3
    $region8: #{tpu_custom_call.1} parent=1 // loop_exit
      _
    %3476 = vsyncpa [#allocation3], 1
    %s3477 = scalar_lea.sflag [#allocation3], 1
    %3478 = vsyncpa %s3477, 1
    %3479 = vsyncpa [#allocation5], 1
    %s3480 = scalar_lea.sflag [#allocation5], 1
    %3481 = vsyncpa %s3480, 1

</llo_original>
